<compile_context>
chip_gen: v7x
topology: tpu7x:2x2x1
jax: 0.10.0
libtpu: 0.0.40
codegen_flags: <defaults>
</compile_context>

<pallas_src>
import functools

import jax
import jax.numpy as jnp
from jax import lax
from jax.experimental import pallas as pl
from jax.experimental.pallas import tpu as pltpu


# ----------------------------------------------------------------------------
# Pallas kernel: one bidirectional LSTM layer (both directions, all timesteps).
# ----------------------------------------------------------------------------
def _bilstm_layer_kernel(x2d_ref, wx_ref, whf_ref, whb_ref, bf_ref, bb_ref,
                         h0f_ref, h0b_ref, c0f_ref, c0b_ref,
                         out_f_ref, out_b_ref,
                         hNf_ref, hNb_ref, cNf_ref, cNb_ref,
                         xgf_ref, xgb_ref):
    T, B, H = out_f_ref.shape          # B is the sublane-padded batch
    G = 4 * H                          # gate width per direction (i,f,g,o)

    # ---- Hoisted input projection: one wide MXU matmul covers every timestep
    # and both directions; biases are folded in so the loop body stays lean.
    xg = jnp.dot(x2d_ref[...], wx_ref[...],
                 preferred_element_type=jnp.float32)       # (T*B, 8H)
    xgf_ref[...] = xg[:, :G] + bf_ref[...]                  # fwd gates + b_fwd
    xgb_ref[...] = xg[:, G:] + bb_ref[...]                  # bwd gates + b_bwd

    # Loop-invariant weight loads (hoisted out of the time loop).
    w_hh_f = whf_ref[...]                                    # (H, 4H)
    w_hh_b = whb_ref[...]                                    # (H, 4H)

    def cell(gates, c):                                      # gates (B, 4H)
        # TODO(synk): with H=32 the per-gate slices are 32-lane sub-vreg slices;
        # padding H to 128 would make them full lane registers.
        i_g = jax.nn.sigmoid(gates[:, 0 * H:1 * H])
        f_g = jax.nn.sigmoid(gates[:, 1 * H:2 * H])
        g_g = jnp.tanh(gates[:, 2 * H:3 * H])
        o_g = jax.nn.sigmoid(gates[:, 3 * H:4 * H])
        c_new = f_g * c + i_g * g_g
        return o_g * jnp.tanh(c_new), c_new

    def step(t, carry):
        h_f, c_f, h_b, c_b = carry
        rt = T - 1 - t
        fwd_row = pl.multiple_of(t * B, 8)     # forward dir consumes time t
        bwd_row = pl.multiple_of(rt * B, 8)    # backward dir consumes T-1-t
        g_f = xgf_ref[pl.ds(fwd_row, B)] + jnp.dot(
            h_f, w_hh_f, preferred_element_type=jnp.float32)
        g_b = xgb_ref[pl.ds(bwd_row, B)] + jnp.dot(
            h_b, w_hh_b, preferred_element_type=jnp.float32)
        h_f, c_f = cell(g_f, c_f)
        h_b, c_b = cell(g_b, c_b)
        out_f_ref[t] = h_f                     # VMEM stores; HBM writeback once
        out_b_ref[rt] = h_b
        return h_f, c_f, h_b, c_b

    # Serial recurrence; fully unrolled (small T) so the scheduler packs it.
    h_f, c_f, h_b, c_b = lax.fori_loop(
        0, T, step,
        (h0f_ref[...], c0f_ref[...], h0b_ref[...], c0b_ref[...]),
        unroll=True)

    # Final states written once, after the loop.
    hNf_ref[...] = h_f
    hNb_ref[...] = h_b
    cNf_ref[...] = c_f
    cNb_ref[...] = c_b


def bilstm_layer(x_seq, w_x, w_hh_f_t, w_hh_b_t, b_f, b_b, h0f, h0b, c0f, c0b):
    """One bidirectional LSTM layer in a single pallas_call.

    x_seq:        (T, B, D) f32, time-major
    w_x:          (D, 8H)   [W_ih_fwd^T | W_ih_bwd^T], gate order i,f,g,o
    w_hh_*_t:     (H, 4H)   per-direction W_hh^T
    b_*:          (1, 4H)   per-direction b_ih + b_hh
    h0*/c0*:      (B, H)    per-direction initial states
    returns: out_f, out_b (T, B, H); final h/c per direction (B, H)
    """
    T, B, D = x_seq.shape
    H = h0f.shape[-1]

    # Pad batch to the f32 sublane count so every vreg / MXU row is full.
    B_pad = ((B + 7) // 8) * 8
    if B_pad != B:
        pb = B_pad - B
        x_seq = jnp.pad(x_seq, ((0, 0), (0, pb), (0, 0)))
        h0f, h0b, c0f, c0b = [jnp.pad(a, ((0, pb), (0, 0)))
                              for a in (h0f, h0b, c0f, c0b)]

    x2d = x_seq.reshape(T * B_pad, D)   # flat (time*batch) rows for the hoisted
                                        # input projection (one big matmul)

    vmem = pl.BlockSpec(memory_space=pltpu.MemorySpace.VMEM)
    out_shapes = (
        jax.ShapeDtypeStruct((T, B_pad, H), jnp.float32),   # forward h_t
        jax.ShapeDtypeStruct((T, B_pad, H), jnp.float32),   # backward h_t
        jax.ShapeDtypeStruct((B_pad, H), jnp.float32),      # final h fwd
        jax.ShapeDtypeStruct((B_pad, H), jnp.float32),      # final h bwd
        jax.ShapeDtypeStruct((B_pad, H), jnp.float32),      # final c fwd
        jax.ShapeDtypeStruct((B_pad, H), jnp.float32),      # final c bwd
    )
    # TODO(synk): for production sizes (large T/H) the (T*B, 4H) projection
    # scratch should be time-chunked (emit_pipeline) to fit v7x's 64 MiB VMEM.
    out = pl.pallas_call(
        _bilstm_layer_kernel,
        out_shape=out_shapes,
        in_specs=[vmem] * 10,
        out_specs=(vmem,) * 6,
        scratch_shapes=[
            pltpu.VMEM((T * B_pad, 4 * H), jnp.float32),    # fwd input proj + b
            pltpu.VMEM((T * B_pad, 4 * H), jnp.float32),    # bwd input proj + b
        ],
    )(x2d, w_x, w_hh_f_t, w_hh_b_t, b_f, b_b, h0f, h0b, c0f, c0b)

    out_f, out_b, hNf, hNb, cNf, cNb = out
    return (out_f[:, :B], out_b[:, :B], hNf[:B], hNb[:B], cNf[:B], cNb[:B])


# ----------------------------------------------------------------------------
# Encoder forward (embedding gather + stacked bi-LSTM built from the kernel).
# ----------------------------------------------------------------------------
def encoder_forward(params, x_ids, hidden0, cell0, *, num_layers, hidden_size):
    H = hidden_size
    # Embedding lookup (plain-JAX glue; padding_idx=0 handled by zeroed row 0).
    emb = params["embedding"][x_ids]                       # (B, T, H)
    layer_in = jnp.transpose(emb, (1, 0, 2))               # time-major (T, B, H)

    h_finals, c_finals = [], []
    for layer in range(num_layers):
        w_ih_f, w_hh_f, b_f = params["lstm"][2 * layer]        # PyTorch layouts
        w_ih_b, w_hh_b, b_b = params["lstm"][2 * layer + 1]
        # Fuse both directions' input projections into one (D, 8H) operand.
        w_x = jnp.concatenate([w_ih_f.T, w_ih_b.T], axis=1)

        out_f, out_b, hNf, hNb, cNf, cNb = bilstm_layer(
            layer_in, w_x, w_hh_f.T, w_hh_b.T,
            b_f[None, :], b_b[None, :],
            hidden0[2 * layer], hidden0[2 * layer + 1],
            cell0[2 * layer], cell0[2 * layer + 1])

        layer_in = jnp.concatenate([out_f, out_b], axis=-1)    # (T, B, 2H)
        h_finals += [hNf, hNb]
        c_finals += [cNf, cNb]
        # TODO(synk): nn.LSTM inter-layer dropout (p=0.1) is train-mode only;
        # inference semantics (identity) are implemented here.

    output = jnp.transpose(layer_in, (1, 0, 2))            # (B, T, 2H)
    hidden = jnp.stack(h_finals, axis=0)                   # (2*num_layers, B, H)
    cell = jnp.stack(c_finals, axis=0)
    return output, hidden, cell


# ----------------------------------------------------------------------------
# Deterministic parameter init (mirrors PyTorch module __init__ shapes).
# ----------------------------------------------------------------------------
def init_params(key, vocab_size, hidden_size, num_layers):
    keys = jax.random.split(key, 1 + 2 * num_layers)
    emb = jax.random.normal(keys[0], (vocab_size, hidden_size), jnp.float32)
    emb = emb.at[0].set(0.0)                               # padding_idx = 0

    k = 1.0 / jnp.sqrt(hidden_size)
    lstm = []
    for layer in range(num_layers):
        in_dim = hidden_size if layer == 0 else 2 * hidden_size
        for d in range(2):
            kk = jax.random.split(keys[1 + 2 * layer + d], 4)
            w_ih = jax.random.uniform(kk[0], (4 * hidden_size, in_dim),
                                      jnp.float32, -k, k)
            w_hh = jax.random.uniform(kk[1], (4 * hidden_size, hidden_size),
                                      jnp.float32, -k, k)
            b_ih = jax.random.uniform(kk[2], (4 * hidden_size,), jnp.float32, -k, k)
            b_hh = jax.random.uniform(kk[3], (4 * hidden_size,), jnp.float32, -k, k)
            lstm.append((w_ih, w_hh, b_ih + b_hh))
    return {"embedding": emb, "lstm": lstm}


# ----------------------------------------------------------------------------
# Pure-JAX reference (for self-check of the fused Pallas bi-LSTM layer).
# ----------------------------------------------------------------------------
def _ref_lstm_dir(x_seq, w_ih, w_hh, b, h0, c0, reverse):
    H = h0.shape[-1]

    def step(carry, x_t):
        h, c = carry
        gates = x_t @ w_ih.T + h @ w_hh.T + b
        i = jax.nn.sigmoid(gates[:, 0 * H:1 * H])
        f = jax.nn.sigmoid(gates[:, 1 * H:2 * H])
        g = jnp.tanh(gates[:, 2 * H:3 * H])
        o = jax.nn.sigmoid(gates[:, 3 * H:4 * H])
        c_new = f * c + i * g
        h_new = o * jnp.tanh(c_new)
        return (h_new, c_new), h_new

    xs = x_seq[::-1] if reverse else x_seq
    (hN, cN), outs = lax.scan(step, (h0, c0), xs)
    if reverse:
        outs = outs[::-1]
    return outs, hN, cN


def _ref_encoder(params, x_ids, hidden0, cell0, *, num_layers, hidden_size):
    emb = params["embedding"][x_ids]
    layer_in = jnp.transpose(emb, (1, 0, 2))
    h_finals, c_finals = [], []
    for layer in range(num_layers):
        dir_outs = []
        for d in range(2):
            idx = 2 * layer + d
            w_ih, w_hh, b = params["lstm"][idx]
            out, hN, cN = _ref_lstm_dir(layer_in, w_ih, w_hh, b,
                                        hidden0[idx], cell0[idx], d == 1)
            dir_outs.append(out)
            h_finals.append(hN)
            c_finals.append(cN)
        layer_in = jnp.concatenate(dir_outs, axis=-1)
    return (jnp.transpose(layer_in, (1, 0, 2)),
            jnp.stack(h_finals, 0), jnp.stack(c_finals, 0))


# ----------------------------------------------------------------------------
if __name__ == "__main__":
    VOCAB = 50
    HIDDEN = 32          # 4H = 128 -> per-direction gate axis is one lane reg
    NUM_LAYERS = 2
    BATCH = 2
    SEQ = 8

    key = jax.random.PRNGKey(0)
    k_param, k_x = jax.random.split(key)

    params = init_params(k_param, VOCAB, HIDDEN, NUM_LAYERS)
    x_ids = jax.random.randint(k_x, (BATCH, SEQ), 0, VOCAB, dtype=jnp.int32)
    hidden0 = jnp.zeros((2 * NUM_LAYERS, BATCH, HIDDEN), jnp.float32)  # init_hidden
    cell0 = jnp.zeros((2 * NUM_LAYERS, BATCH, HIDDEN), jnp.float32)

    fwd = functools.partial(encoder_forward,
                            num_layers=NUM_LAYERS, hidden_size=HIDDEN)
    output, hidden, cell = jax.jit(fwd)(params, x_ids, hidden0, cell0)
    jax.block_until_ready((output, hidden, cell))

    # Self-check against a pure-JAX reference.
    ref_out, ref_h, ref_c = _ref_encoder(params, x_ids, hidden0, cell0,
                                         num_layers=NUM_LAYERS,
                                         hidden_size=HIDDEN)
    assert output.shape == (BATCH, SEQ, 2 * HIDDEN)
    assert hidden.shape == (2 * NUM_LAYERS, BATCH, HIDDEN)
    assert cell.shape == (2 * NUM_LAYERS, BATCH, HIDDEN)
    assert jnp.allclose(output, ref_out, atol=1e-5, rtol=1e-5)
    assert jnp.allclose(hidden, ref_h, atol=1e-5, rtol=1e-5)
    assert jnp.allclose(cell, ref_c, atol=1e-5, rtol=1e-5)

    print("KERNEL_OK")
</pallas_src>

<mosaic_0001>
module attributes {stable_mosaic.version = 11 : i64} {
  func.func @_bilstm_layer_kernel(%arg0: memref<64x32xf32, #tpu.memory_space<vmem>>, %arg1: memref<32x256xf32, #tpu.memory_space<vmem>>, %arg2: memref<32x128xf32, #tpu.memory_space<vmem>>, %arg3: memref<32x128xf32, #tpu.memory_space<vmem>>, %arg4: memref<1x128xf32, #tpu.memory_space<vmem>>, %arg5: memref<1x128xf32, #tpu.memory_space<vmem>>, %arg6: memref<8x32xf32, #tpu.memory_space<vmem>>, %arg7: memref<8x32xf32, #tpu.memory_space<vmem>>, %arg8: memref<8x32xf32, #tpu.memory_space<vmem>>, %arg9: memref<8x32xf32, #tpu.memory_space<vmem>>, %arg10: memref<8x8x32xf32, #tpu.memory_space<vmem>>, %arg11: memref<8x8x32xf32, #tpu.memory_space<vmem>>, %arg12: memref<8x32xf32, #tpu.memory_space<vmem>>, %arg13: memref<8x32xf32, #tpu.memory_space<vmem>>, %arg14: memref<8x32xf32, #tpu.memory_space<vmem>>, %arg15: memref<8x32xf32, #tpu.memory_space<vmem>>, %arg16: memref<64x128xf32, #tpu.memory_space<vmem>>, %arg17: memref<64x128xf32, #tpu.memory_space<vmem>>) attributes {dimension_semantics = [], scalar_prefetch = 0 : i64, scratch_operands = 2 : i64, tpu.core_type = #tpu.core_type<tc>} {
    %c0 = arith.constant 0 : index
    %c0_0 = arith.constant 0 : index
    %0 = vector.load %arg0[%c0, %c0_0] : memref<64x32xf32, #tpu.memory_space<vmem>>, vector<64x32xf32>
    %c0_1 = arith.constant 0 : index
    %c0_2 = arith.constant 0 : index
    %1 = vector.load %arg1[%c0_1, %c0_2] : memref<32x256xf32, #tpu.memory_space<vmem>>, vector<32x256xf32>
    %cst = arith.constant dense<0.000000e+00> : vector<64x256xf32>
    %2 = tpu.matmul %0, %1, %cst {dimension_numbers = #tpu.dot_dimension_numbers<[1], [0], [0], [1], [0, 0, 1, 1], [], []>} : vector<64x32xf32>, vector<32x256xf32>, vector<64x256xf32> -> vector<64x256xf32>
    %3 = vector.extract_strided_slice %2 {offsets = [0, 0], sizes = [64, 128], strides = [1, 1]} : vector<64x256xf32> to vector<64x128xf32>
    %c0_3 = arith.constant 0 : index
    %c0_4 = arith.constant 0 : index
    %4 = vector.load %arg4[%c0_3, %c0_4] : memref<1x128xf32, #tpu.memory_space<vmem>>, vector<1x128xf32>
    %5 = vector.broadcast %4 : vector<1x128xf32> to vector<64x128xf32>
    %6 = arith.addf %3, %5 : vector<64x128xf32>
    %c0_5 = arith.constant 0 : index
    %c0_6 = arith.constant 0 : index
    %7 = vector.load %arg16[%c0_5, %c0_6] : memref<64x128xf32, #tpu.memory_space<vmem>>, vector<64x128xf32>
    tpu.vector_store %arg16[%c0_5, %c0_6], %6 {strides = array<i32>} : memref<64x128xf32, #tpu.memory_space<vmem>>, vector<64x128xf32>,
    %8 = vector.extract_strided_slice %2 {offsets = [0, 128], sizes = [64, 128], strides = [1, 1]} : vector<64x256xf32> to vector<64x128xf32>
    %c0_7 = arith.constant 0 : index
    %c0_8 = arith.constant 0 : index
    %9 = vector.load %arg5[%c0_7, %c0_8] : memref<1x128xf32, #tpu.memory_space<vmem>>, vector<1x128xf32>
    %10 = vector.broadcast %9 : vector<1x128xf32> to vector<64x128xf32>
    %11 = arith.addf %8, %10 : vector<64x128xf32>
    %c0_9 = arith.constant 0 : index
    %c0_10 = arith.constant 0 : index
    %12 = vector.load %arg17[%c0_9, %c0_10] : memref<64x128xf32, #tpu.memory_space<vmem>>, vector<64x128xf32>
    tpu.vector_store %arg17[%c0_9, %c0_10], %11 {strides = array<i32>} : memref<64x128xf32, #tpu.memory_space<vmem>>, vector<64x128xf32>,
    %c0_11 = arith.constant 0 : index
    %c0_12 = arith.constant 0 : index
    %13 = vector.load %arg2[%c0_11, %c0_12] : memref<32x128xf32, #tpu.memory_space<vmem>>, vector<32x128xf32>
    %c0_13 = arith.constant 0 : index
    %c0_14 = arith.constant 0 : index
    %14 = vector.load %arg3[%c0_13, %c0_14] : memref<32x128xf32, #tpu.memory_space<vmem>>, vector<32x128xf32>
    %c0_15 = arith.constant 0 : index
    %c0_16 = arith.constant 0 : index
    %15 = vector.load %arg6[%c0_15, %c0_16] : memref<8x32xf32, #tpu.memory_space<vmem>>, vector<8x32xf32>
    %c0_17 = arith.constant 0 : index
    %c0_18 = arith.constant 0 : index
    %16 = vector.load %arg8[%c0_17, %c0_18] : memref<8x32xf32, #tpu.memory_space<vmem>>, vector<8x32xf32>
    %c0_19 = arith.constant 0 : index
    %c0_20 = arith.constant 0 : index
    %17 = vector.load %arg7[%c0_19, %c0_20] : memref<8x32xf32, #tpu.memory_space<vmem>>, vector<8x32xf32>
    %c0_21 = arith.constant 0 : index
    %c0_22 = arith.constant 0 : index
    %18 = vector.load %arg9[%c0_21, %c0_22] : memref<8x32xf32, #tpu.memory_space<vmem>>, vector<8x32xf32>
    %c0_i32 = arith.constant 0 : i32
    %c7_i32 = arith.constant 7 : i32
    %19 = arith.subi %c7_i32, %c0_i32 : i32
    %c8_i32 = arith.constant 8 : i32
    %20 = arith.muli %c0_i32, %c8_i32 : i32
    %21 = tpu.assume_multiple %20, 8 : i32
    %c8_i32_23 = arith.constant 8 : i32
    %22 = arith.muli %19, %c8_i32_23 : i32
    %23 = tpu.assume_multiple %22, 8 : i32
    %24 = arith.index_cast %21 : i32 to index
    %c0_24 = arith.constant 0 : index
    %25 = vector.load %arg16[%24, %c0_24] : memref<64x128xf32, #tpu.memory_space<vmem>>, vector<8x128xf32>
    %cst_25 = arith.constant dense<0.000000e+00> : vector<8x128xf32>
    %26 = tpu.matmul %15, %13, %cst_25 {dimension_numbers = #tpu.dot_dimension_numbers<[1], [0], [0], [1], [0, 0, 1, 1], [], []>} : vector<8x32xf32>, vector<32x128xf32>, vector<8x128xf32> -> vector<8x128xf32>
    %27 = arith.addf %25, %26 : vector<8x128xf32>
    %28 = arith.index_cast %23 : i32 to index
    %c0_26 = arith.constant 0 : index
    %29 = vector.load %arg17[%28, %c0_26] : memref<64x128xf32, #tpu.memory_space<vmem>>, vector<8x128xf32>
    %cst_27 = arith.constant dense<0.000000e+00> : vector<8x128xf32>
    %30 = tpu.matmul %17, %14, %cst_27 {dimension_numbers = #tpu.dot_dimension_numbers<[1], [0], [0], [1], [0, 0, 1, 1], [], []>} : vector<8x32xf32>, vector<32x128xf32>, vector<8x128xf32> -> vector<8x128xf32>
    %31 = arith.addf %29, %30 : vector<8x128xf32>
    %32 = vector.extract_strided_slice %27 {offsets = [0, 0], sizes = [8, 32], strides = [1, 1]} : vector<8x128xf32> to vector<8x32xf32>
    %33 = arith.negf %32 : vector<8x32xf32>
    %34 = math.exp %33 : vector<8x32xf32>
    %cst_28 = arith.constant 1.000000e+00 : f32
    %35 = vector.broadcast %cst_28 : f32 to vector<8x32xf32>
    %36 = arith.addf %35, %34 : vector<8x32xf32>
    %37 = arith.divf %35, %36 : vector<8x32xf32>
    %38 = vector.extract_strided_slice %27 {offsets = [0, 32], sizes = [8, 32], strides = [1, 1]} : vector<8x128xf32> to vector<8x32xf32>
    %39 = arith.negf %38 : vector<8x32xf32>
    %40 = math.exp %39 : vector<8x32xf32>
    %cst_29 = arith.constant 1.000000e+00 : f32
    %41 = vector.broadcast %cst_29 : f32 to vector<8x32xf32>
    %42 = arith.addf %41, %40 : vector<8x32xf32>
    %43 = arith.divf %41, %42 : vector<8x32xf32>
    %44 = vector.extract_strided_slice %27 {offsets = [0, 64], sizes = [8, 32], strides = [1, 1]} : vector<8x128xf32> to vector<8x32xf32>
    %45 = math.tanh %44 : vector<8x32xf32>
    %46 = vector.extract_strided_slice %27 {offsets = [0, 96], sizes = [8, 32], strides = [1, 1]} : vector<8x128xf32> to vector<8x32xf32>
    %47 = arith.negf %46 : vector<8x32xf32>
    %48 = math.exp %47 : vector<8x32xf32>
    %cst_30 = arith.constant 1.000000e+00 : f32
    %49 = vector.broadcast %cst_30 : f32 to vector<8x32xf32>
    %50 = arith.addf %49, %48 : vector<8x32xf32>
    %51 = arith.divf %49, %50 : vector<8x32xf32>
    %52 = arith.mulf %43, %16 : vector<8x32xf32>
    %53 = arith.mulf %37, %45 : vector<8x32xf32>
    %54 = arith.addf %52, %53 : vector<8x32xf32>
    %55 = math.tanh %54 : vector<8x32xf32>
    %56 = arith.mulf %51, %55 : vector<8x32xf32>
    %57 = vector.extract_strided_slice %31 {offsets = [0, 0], sizes = [8, 32], strides = [1, 1]} : vector<8x128xf32> to vector<8x32xf32>
    %58 = arith.negf %57 : vector<8x32xf32>
    %59 = math.exp %58 : vector<8x32xf32>
    %cst_31 = arith.constant 1.000000e+00 : f32
    %60 = vector.broadcast %cst_31 : f32 to vector<8x32xf32>
    %61 = arith.addf %60, %59 : vector<8x32xf32>
    %62 = arith.divf %60, %61 : vector<8x32xf32>
    %63 = vector.extract_strided_slice %31 {offsets = [0, 32], sizes = [8, 32], strides = [1, 1]} : vector<8x128xf32> to vector<8x32xf32>
    %64 = arith.negf %63 : vector<8x32xf32>
    %65 = math.exp %64 : vector<8x32xf32>
    %cst_32 = arith.constant 1.000000e+00 : f32
    %66 = vector.broadcast %cst_32 : f32 to vector<8x32xf32>
    %67 = arith.addf %66, %65 : vector<8x32xf32>
    %68 = arith.divf %66, %67 : vector<8x32xf32>
    %69 = vector.extract_strided_slice %31 {offsets = [0, 64], sizes = [8, 32], strides = [1, 1]} : vector<8x128xf32> to vector<8x32xf32>
    %70 = math.tanh %69 : vector<8x32xf32>
    %71 = vector.extract_strided_slice %31 {offsets = [0, 96], sizes = [8, 32], strides = [1, 1]} : vector<8x128xf32> to vector<8x32xf32>
    %72 = arith.negf %71 : vector<8x32xf32>
    %73 = math.exp %72 : vector<8x32xf32>
    %cst_33 = arith.constant 1.000000e+00 : f32
    %74 = vector.broadcast %cst_33 : f32 to vector<8x32xf32>
    %75 = arith.addf %74, %73 : vector<8x32xf32>
    %76 = arith.divf %74, %75 : vector<8x32xf32>
    %77 = arith.mulf %68, %18 : vector<8x32xf32>
    %78 = arith.mulf %62, %70 : vector<8x32xf32>
    %79 = arith.addf %77, %78 : vector<8x32xf32>
    %80 = math.tanh %79 : vector<8x32xf32>
    %81 = arith.mulf %76, %80 : vector<8x32xf32>
    %82 = arith.index_cast %c0_i32 : i32 to index
    %c0_34 = arith.constant 0 : index
    %c0_35 = arith.constant 0 : index
    %83 = vector.load %arg10[%82, %c0_34, %c0_35] : memref<8x8x32xf32, #tpu.memory_space<vmem>>, vector<1x8x32xf32>
    %84 = vector.shape_cast %83 : vector<1x8x32xf32> to vector<8x32xf32>
    %85 = vector.shape_cast %56 : vector<8x32xf32> to vector<1x8x32xf32>
    tpu.vector_store %arg10[%82, %c0_34, %c0_35], %85 {strides = array<i32>} : memref<8x8x32xf32, #tpu.memory_space<vmem>>, vector<1x8x32xf32>,
    %86 = arith.index_cast %19 : i32 to index
    %c0_36 = arith.constant 0 : index
    %c0_37 = arith.constant 0 : index
    %87 = vector.load %arg11[%86, %c0_36, %c0_37] : memref<8x8x32xf32, #tpu.memory_space<vmem>>, vector<1x8x32xf32>
    %88 = vector.shape_cast %87 : vector<1x8x32xf32> to vector<8x32xf32>
    %89 = vector.shape_cast %81 : vector<8x32xf32> to vector<1x8x32xf32>
    tpu.vector_store %arg11[%86, %c0_36, %c0_37], %89 {strides = array<i32>} : memref<8x8x32xf32, #tpu.memory_space<vmem>>, vector<1x8x32xf32>,
    %c1_i32 = arith.constant 1 : i32
    %c7_i32_38 = arith.constant 7 : i32
    %90 = arith.subi %c7_i32_38, %c1_i32 : i32
    %c8_i32_39 = arith.constant 8 : i32
    %91 = arith.muli %c1_i32, %c8_i32_39 : i32
    %92 = tpu.assume_multiple %91, 8 : i32
    %c8_i32_40 = arith.constant 8 : i32
    %93 = arith.muli %90, %c8_i32_40 : i32
    %94 = tpu.assume_multiple %93, 8 : i32
    %95 = arith.index_cast %92 : i32 to index
    %c0_41 = arith.constant 0 : index
    %96 = vector.load %arg16[%95, %c0_41] : memref<64x128xf32, #tpu.memory_space<vmem>>, vector<8x128xf32>
    %cst_42 = arith.constant dense<0.000000e+00> : vector<8x128xf32>
    %97 = tpu.matmul %56, %13, %cst_42 {dimension_numbers = #tpu.dot_dimension_numbers<[1], [0], [0], [1], [0, 0, 1, 1], [], []>} : vector<8x32xf32>, vector<32x128xf32>, vector<8x128xf32> -> vector<8x128xf32>
    %98 = arith.addf %96, %97 : vector<8x128xf32>
    %99 = arith.index_cast %94 : i32 to index
    %c0_43 = arith.constant 0 : index
    %100 = vector.load %arg17[%99, %c0_43] : memref<64x128xf32, #tpu.memory_space<vmem>>, vector<8x128xf32>
    %cst_44 = arith.constant dense<0.000000e+00> : vector<8x128xf32>
    %101 = tpu.matmul %81, %14, %cst_44 {dimension_numbers = #tpu.dot_dimension_numbers<[1], [0], [0], [1], [0, 0, 1, 1], [], []>} : vector<8x32xf32>, vector<32x128xf32>, vector<8x128xf32> -> vector<8x128xf32>
    %102 = arith.addf %100, %101 : vector<8x128xf32>
    %103 = vector.extract_strided_slice %98 {offsets = [0, 0], sizes = [8, 32], strides = [1, 1]} : vector<8x128xf32> to vector<8x32xf32>
    %104 = arith.negf %103 : vector<8x32xf32>
    %105 = math.exp %104 : vector<8x32xf32>
    %cst_45 = arith.constant 1.000000e+00 : f32
    %106 = vector.broadcast %cst_45 : f32 to vector<8x32xf32>
    %107 = arith.addf %106, %105 : vector<8x32xf32>
    %108 = arith.divf %106, %107 : vector<8x32xf32>
    %109 = vector.extract_strided_slice %98 {offsets = [0, 32], sizes = [8, 32], strides = [1, 1]} : vector<8x128xf32> to vector<8x32xf32>
    %110 = arith.negf %109 : vector<8x32xf32>
    %111 = math.exp %110 : vector<8x32xf32>
    %cst_46 = arith.constant 1.000000e+00 : f32
    %112 = vector.broadcast %cst_46 : f32 to vector<8x32xf32>
    %113 = arith.addf %112, %111 : vector<8x32xf32>
    %114 = arith.divf %112, %113 : vector<8x32xf32>
    %115 = vector.extract_strided_slice %98 {offsets = [0, 64], sizes = [8, 32], strides = [1, 1]} : vector<8x128xf32> to vector<8x32xf32>
    %116 = math.tanh %115 : vector<8x32xf32>
    %117 = vector.extract_strided_slice %98 {offsets = [0, 96], sizes = [8, 32], strides = [1, 1]} : vector<8x128xf32> to vector<8x32xf32>
    %118 = arith.negf %117 : vector<8x32xf32>
    %119 = math.exp %118 : vector<8x32xf32>
    %cst_47 = arith.constant 1.000000e+00 : f32
    %120 = vector.broadcast %cst_47 : f32 to vector<8x32xf32>
    %121 = arith.addf %120, %119 : vector<8x32xf32>
    %122 = arith.divf %120, %121 : vector<8x32xf32>
    %123 = arith.mulf %114, %54 : vector<8x32xf32>
    %124 = arith.mulf %108, %116 : vector<8x32xf32>
    %125 = arith.addf %123, %124 : vector<8x32xf32>
    %126 = math.tanh %125 : vector<8x32xf32>
    %127 = arith.mulf %122, %126 : vector<8x32xf32>
    %128 = vector.extract_strided_slice %102 {offsets = [0, 0], sizes = [8, 32], strides = [1, 1]} : vector<8x128xf32> to vector<8x32xf32>
    %129 = arith.negf %128 : vector<8x32xf32>
    %130 = math.exp %129 : vector<8x32xf32>
    %cst_48 = arith.constant 1.000000e+00 : f32
    %131 = vector.broadcast %cst_48 : f32 to vector<8x32xf32>
    %132 = arith.addf %131, %130 : vector<8x32xf32>
    %133 = arith.divf %131, %132 : vector<8x32xf32>
    %134 = vector.extract_strided_slice %102 {offsets = [0, 32], sizes = [8, 32], strides = [1, 1]} : vector<8x128xf32> to vector<8x32xf32>
    %135 = arith.negf %134 : vector<8x32xf32>
    %136 = math.exp %135 : vector<8x32xf32>
    %cst_49 = arith.constant 1.000000e+00 : f32
    %137 = vector.broadcast %cst_49 : f32 to vector<8x32xf32>
    %138 = arith.addf %137, %136 : vector<8x32xf32>
    %139 = arith.divf %137, %138 : vector<8x32xf32>
    %140 = vector.extract_strided_slice %102 {offsets = [0, 64], sizes = [8, 32], strides = [1, 1]} : vector<8x128xf32> to vector<8x32xf32>
    %141 = math.tanh %140 : vector<8x32xf32>
    %142 = vector.extract_strided_slice %102 {offsets = [0, 96], sizes = [8, 32], strides = [1, 1]} : vector<8x128xf32> to vector<8x32xf32>
    %143 = arith.negf %142 : vector<8x32xf32>
    %144 = math.exp %143 : vector<8x32xf32>
    %cst_50 = arith.constant 1.000000e+00 : f32
    %145 = vector.broadcast %cst_50 : f32 to vector<8x32xf32>
    %146 = arith.addf %145, %144 : vector<8x32xf32>
    %147 = arith.divf %145, %146 : vector<8x32xf32>
    %148 = arith.mulf %139, %79 : vector<8x32xf32>
    %149 = arith.mulf %133, %141 : vector<8x32xf32>
    %150 = arith.addf %148, %149 : vector<8x32xf32>
    %151 = math.tanh %150 : vector<8x32xf32>
    %152 = arith.mulf %147, %151 : vector<8x32xf32>
    %153 = arith.index_cast %c1_i32 : i32 to index
    %c0_51 = arith.constant 0 : index
    %c0_52 = arith.constant 0 : index
    %154 = vector.load %arg10[%153, %c0_51, %c0_52] : memref<8x8x32xf32, #tpu.memory_space<vmem>>, vector<1x8x32xf32>
    %155 = vector.shape_cast %154 : vector<1x8x32xf32> to vector<8x32xf32>
    %156 = vector.shape_cast %127 : vector<8x32xf32> to vector<1x8x32xf32>
    tpu.vector_store %arg10[%153, %c0_51, %c0_52], %156 {strides = array<i32>} : memref<8x8x32xf32, #tpu.memory_space<vmem>>, vector<1x8x32xf32>,
    %157 = arith.index_cast %90 : i32 to index
    %c0_53 = arith.constant 0 : index
    %c0_54 = arith.constant 0 : index
    %158 = vector.load %arg11[%157, %c0_53, %c0_54] : memref<8x8x32xf32, #tpu.memory_space<vmem>>, vector<1x8x32xf32>
    %159 = vector.shape_cast %158 : vector<1x8x32xf32> to vector<8x32xf32>
    %160 = vector.shape_cast %152 : vector<8x32xf32> to vector<1x8x32xf32>
    tpu.vector_store %arg11[%157, %c0_53, %c0_54], %160 {strides = array<i32>} : memref<8x8x32xf32, #tpu.memory_space<vmem>>, vector<1x8x32xf32>,
    %c2_i32 = arith.constant 2 : i32
    %c7_i32_55 = arith.constant 7 : i32
    %161 = arith.subi %c7_i32_55, %c2_i32 : i32
    %c8_i32_56 = arith.constant 8 : i32
    %162 = arith.muli %c2_i32, %c8_i32_56 : i32
    %163 = tpu.assume_multiple %162, 8 : i32
    %c8_i32_57 = arith.constant 8 : i32
    %164 = arith.muli %161, %c8_i32_57 : i32
    %165 = tpu.assume_multiple %164, 8 : i32
    %166 = arith.index_cast %163 : i32 to index
    %c0_58 = arith.constant 0 : index
    %167 = vector.load %arg16[%166, %c0_58] : memref<64x128xf32, #tpu.memory_space<vmem>>, vector<8x128xf32>
    %cst_59 = arith.constant dense<0.000000e+00> : vector<8x128xf32>
    %168 = tpu.matmul %127, %13, %cst_59 {dimension_numbers = #tpu.dot_dimension_numbers<[1], [0], [0], [1], [0, 0, 1, 1], [], []>} : vector<8x32xf32>, vector<32x128xf32>, vector<8x128xf32> -> vector<8x128xf32>
    %169 = arith.addf %167, %168 : vector<8x128xf32>
    %170 = arith.index_cast %165 : i32 to index
    %c0_60 = arith.constant 0 : index
    %171 = vector.load %arg17[%170, %c0_60] : memref<64x128xf32, #tpu.memory_space<vmem>>, vector<8x128xf32>
    %cst_61 = arith.constant dense<0.000000e+00> : vector<8x128xf32>
    %172 = tpu.matmul %152, %14, %cst_61 {dimension_numbers = #tpu.dot_dimension_numbers<[1], [0], [0], [1], [0, 0, 1, 1], [], []>} : vector<8x32xf32>, vector<32x128xf32>, vector<8x128xf32> -> vector<8x128xf32>
    %173 = arith.addf %171, %172 : vector<8x128xf32>
    %174 = vector.extract_strided_slice %169 {offsets = [0, 0], sizes = [8, 32], strides = [1, 1]} : vector<8x128xf32> to vector<8x32xf32>
    %175 = arith.negf %174 : vector<8x32xf32>
    %176 = math.exp %175 : vector<8x32xf32>
    %cst_62 = arith.constant 1.000000e+00 : f32
    %177 = vector.broadcast %cst_62 : f32 to vector<8x32xf32>
    %178 = arith.addf %177, %176 : vector<8x32xf32>
    %179 = arith.divf %177, %178 : vector<8x32xf32>
    %180 = vector.extract_strided_slice %169 {offsets = [0, 32], sizes = [8, 32], strides = [1, 1]} : vector<8x128xf32> to vector<8x32xf32>
    %181 = arith.negf %180 : vector<8x32xf32>
    %182 = math.exp %181 : vector<8x32xf32>
    %cst_63 = arith.constant 1.000000e+00 : f32
    %183 = vector.broadcast %cst_63 : f32 to vector<8x32xf32>
    %184 = arith.addf %183, %182 : vector<8x32xf32>
    %185 = arith.divf %183, %184 : vector<8x32xf32>
    %186 = vector.extract_strided_slice %169 {offsets = [0, 64], sizes = [8, 32], strides = [1, 1]} : vector<8x128xf32> to vector<8x32xf32>
    %187 = math.tanh %186 : vector<8x32xf32>
    %188 = vector.extract_strided_slice %169 {offsets = [0, 96], sizes = [8, 32], strides = [1, 1]} : vector<8x128xf32> to vector<8x32xf32>
    %189 = arith.negf %188 : vector<8x32xf32>
    %190 = math.exp %189 : vector<8x32xf32>
    %cst_64 = arith.constant 1.000000e+00 : f32
    %191 = vector.broadcast %cst_64 : f32 to vector<8x32xf32>
    %192 = arith.addf %191, %190 : vector<8x32xf32>
    %193 = arith.divf %191, %192 : vector<8x32xf32>
    %194 = arith.mulf %185, %125 : vector<8x32xf32>
    %195 = arith.mulf %179, %187 : vector<8x32xf32>
    %196 = arith.addf %194, %195 : vector<8x32xf32>
    %197 = math.tanh %196 : vector<8x32xf32>
    %198 = arith.mulf %193, %197 : vector<8x32xf32>
    %199 = vector.extract_strided_slice %173 {offsets = [0, 0], sizes = [8, 32], strides = [1, 1]} : vector<8x128xf32> to vector<8x32xf32>
    %200 = arith.negf %199 : vector<8x32xf32>
    %201 = math.exp %200 : vector<8x32xf32>
    %cst_65 = arith.constant 1.000000e+00 : f32
    %202 = vector.broadcast %cst_65 : f32 to vector<8x32xf32>
    %203 = arith.addf %202, %201 : vector<8x32xf32>
    %204 = arith.divf %202, %203 : vector<8x32xf32>
    %205 = vector.extract_strided_slice %173 {offsets = [0, 32], sizes = [8, 32], strides = [1, 1]} : vector<8x128xf32> to vector<8x32xf32>
    %206 = arith.negf %205 : vector<8x32xf32>
    %207 = math.exp %206 : vector<8x32xf32>
    %cst_66 = arith.constant 1.000000e+00 : f32
    %208 = vector.broadcast %cst_66 : f32 to vector<8x32xf32>
    %209 = arith.addf %208, %207 : vector<8x32xf32>
    %210 = arith.divf %208, %209 : vector<8x32xf32>
    %211 = vector.extract_strided_slice %173 {offsets = [0, 64], sizes = [8, 32], strides = [1, 1]} : vector<8x128xf32> to vector<8x32xf32>
    %212 = math.tanh %211 : vector<8x32xf32>
    %213 = vector.extract_strided_slice %173 {offsets = [0, 96], sizes = [8, 32], strides = [1, 1]} : vector<8x128xf32> to vector<8x32xf32>
    %214 = arith.negf %213 : vector<8x32xf32>
    %215 = math.exp %214 : vector<8x32xf32>
    %cst_67 = arith.constant 1.000000e+00 : f32
    %216 = vector.broadcast %cst_67 : f32 to vector<8x32xf32>
    %217 = arith.addf %216, %215 : vector<8x32xf32>
    %218 = arith.divf %216, %217 : vector<8x32xf32>
    %219 = arith.mulf %210, %150 : vector<8x32xf32>
    %220 = arith.mulf %204, %212 : vector<8x32xf32>
    %221 = arith.addf %219, %220 : vector<8x32xf32>
    %222 = math.tanh %221 : vector<8x32xf32>
    %223 = arith.mulf %218, %222 : vector<8x32xf32>
    %224 = arith.index_cast %c2_i32 : i32 to index
    %c0_68 = arith.constant 0 : index
    %c0_69 = arith.constant 0 : index
    %225 = vector.load %arg10[%224, %c0_68, %c0_69] : memref<8x8x32xf32, #tpu.memory_space<vmem>>, vector<1x8x32xf32>
    %226 = vector.shape_cast %225 : vector<1x8x32xf32> to vector<8x32xf32>
    %227 = vector.shape_cast %198 : vector<8x32xf32> to vector<1x8x32xf32>
    tpu.vector_store %arg10[%224, %c0_68, %c0_69], %227 {strides = array<i32>} : memref<8x8x32xf32, #tpu.memory_space<vmem>>, vector<1x8x32xf32>,
    %228 = arith.index_cast %161 : i32 to index
    %c0_70 = arith.constant 0 : index
    %c0_71 = arith.constant 0 : index
    %229 = vector.load %arg11[%228, %c0_70, %c0_71] : memref<8x8x32xf32, #tpu.memory_space<vmem>>, vector<1x8x32xf32>
    %230 = vector.shape_cast %229 : vector<1x8x32xf32> to vector<8x32xf32>
    %231 = vector.shape_cast %223 : vector<8x32xf32> to vector<1x8x32xf32>
    tpu.vector_store %arg11[%228, %c0_70, %c0_71], %231 {strides = array<i32>} : memref<8x8x32xf32, #tpu.memory_space<vmem>>, vector<1x8x32xf32>,
    %c3_i32 = arith.constant 3 : i32
    %c7_i32_72 = arith.constant 7 : i32
    %232 = arith.subi %c7_i32_72, %c3_i32 : i32
    %c8_i32_73 = arith.constant 8 : i32
    %233 = arith.muli %c3_i32, %c8_i32_73 : i32
    %234 = tpu.assume_multiple %233, 8 : i32
    %c8_i32_74 = arith.constant 8 : i32
    %235 = arith.muli %232, %c8_i32_74 : i32
    %236 = tpu.assume_multiple %235, 8 : i32
    %237 = arith.index_cast %234 : i32 to index
    %c0_75 = arith.constant 0 : index
    %238 = vector.load %arg16[%237, %c0_75] : memref<64x128xf32, #tpu.memory_space<vmem>>, vector<8x128xf32>
    %cst_76 = arith.constant dense<0.000000e+00> : vector<8x128xf32>
    %239 = tpu.matmul %198, %13, %cst_76 {dimension_numbers = #tpu.dot_dimension_numbers<[1], [0], [0], [1], [0, 0, 1, 1], [], []>} : vector<8x32xf32>, vector<32x128xf32>, vector<8x128xf32> -> vector<8x128xf32>
    %240 = arith.addf %238, %239 : vector<8x128xf32>
    %241 = arith.index_cast %236 : i32 to index
    %c0_77 = arith.constant 0 : index
    %242 = vector.load %arg17[%241, %c0_77] : memref<64x128xf32, #tpu.memory_space<vmem>>, vector<8x128xf32>
    %cst_78 = arith.constant dense<0.000000e+00> : vector<8x128xf32>
    %243 = tpu.matmul %223, %14, %cst_78 {dimension_numbers = #tpu.dot_dimension_numbers<[1], [0], [0], [1], [0, 0, 1, 1], [], []>} : vector<8x32xf32>, vector<32x128xf32>, vector<8x128xf32> -> vector<8x128xf32>
    %244 = arith.addf %242, %243 : vector<8x128xf32>
    %245 = vector.extract_strided_slice %240 {offsets = [0, 0], sizes = [8, 32], strides = [1, 1]} : vector<8x128xf32> to vector<8x32xf32>
    %246 = arith.negf %245 : vector<8x32xf32>
    %247 = math.exp %246 : vector<8x32xf32>
    %cst_79 = arith.constant 1.000000e+00 : f32
    %248 = vector.broadcast %cst_79 : f32 to vector<8x32xf32>
    %249 = arith.addf %248, %247 : vector<8x32xf32>
    %250 = arith.divf %248, %249 : vector<8x32xf32>
    %251 = vector.extract_strided_slice %240 {offsets = [0, 32], sizes = [8, 32], strides = [1, 1]} : vector<8x128xf32> to vector<8x32xf32>
    %252 = arith.negf %251 : vector<8x32xf32>
    %253 = math.exp %252 : vector<8x32xf32>
    %cst_80 = arith.constant 1.000000e+00 : f32
    %254 = vector.broadcast %cst_80 : f32 to vector<8x32xf32>
    %255 = arith.addf %254, %253 : vector<8x32xf32>
    %256 = arith.divf %254, %255 : vector<8x32xf32>
    %257 = vector.extract_strided_slice %240 {offsets = [0, 64], sizes = [8, 32], strides = [1, 1]} : vector<8x128xf32> to vector<8x32xf32>
    %258 = math.tanh %257 : vector<8x32xf32>
    %259 = vector.extract_strided_slice %240 {offsets = [0, 96], sizes = [8, 32], strides = [1, 1]} : vector<8x128xf32> to vector<8x32xf32>
    %260 = arith.negf %259 : vector<8x32xf32>
    %261 = math.exp %260 : vector<8x32xf32>
    %cst_81 = arith.constant 1.000000e+00 : f32
    %262 = vector.broadcast %cst_81 : f32 to vector<8x32xf32>
    %263 = arith.addf %262, %261 : vector<8x32xf32>
    %264 = arith.divf %262, %263 : vector<8x32xf32>
    %265 = arith.mulf %256, %196 : vector<8x32xf32>
    %266 = arith.mulf %250, %258 : vector<8x32xf32>
    %267 = arith.addf %265, %266 : vector<8x32xf32>
    %268 = math.tanh %267 : vector<8x32xf32>
    %269 = arith.mulf %264, %268 : vector<8x32xf32>
    %270 = vector.extract_strided_slice %244 {offsets = [0, 0], sizes = [8, 32], strides = [1, 1]} : vector<8x128xf32> to vector<8x32xf32>
    %271 = arith.negf %270 : vector<8x32xf32>
    %272 = math.exp %271 : vector<8x32xf32>
    %cst_82 = arith.constant 1.000000e+00 : f32
    %273 = vector.broadcast %cst_82 : f32 to vector<8x32xf32>
    %274 = arith.addf %273, %272 : vector<8x32xf32>
    %275 = arith.divf %273, %274 : vector<8x32xf32>
    %276 = vector.extract_strided_slice %244 {offsets = [0, 32], sizes = [8, 32], strides = [1, 1]} : vector<8x128xf32> to vector<8x32xf32>
    %277 = arith.negf %276 : vector<8x32xf32>
    %278 = math.exp %277 : vector<8x32xf32>
    %cst_83 = arith.constant 1.000000e+00 : f32
    %279 = vector.broadcast %cst_83 : f32 to vector<8x32xf32>
    %280 = arith.addf %279, %278 : vector<8x32xf32>
    %281 = arith.divf %279, %280 : vector<8x32xf32>
    %282 = vector.extract_strided_slice %244 {offsets = [0, 64], sizes = [8, 32], strides = [1, 1]} : vector<8x128xf32> to vector<8x32xf32>
    %283 = math.tanh %282 : vector<8x32xf32>
    %284 = vector.extract_strided_slice %244 {offsets = [0, 96], sizes = [8, 32], strides = [1, 1]} : vector<8x128xf32> to vector<8x32xf32>
    %285 = arith.negf %284 : vector<8x32xf32>
    %286 = math.exp %285 : vector<8x32xf32>
    %cst_84 = arith.constant 1.000000e+00 : f32
    %287 = vector.broadcast %cst_84 : f32 to vector<8x32xf32>
    %288 = arith.addf %287, %286 : vector<8x32xf32>
    %289 = arith.divf %287, %288 : vector<8x32xf32>
    %290 = arith.mulf %281, %221 : vector<8x32xf32>
    %291 = arith.mulf %275, %283 : vector<8x32xf32>
    %292 = arith.addf %290, %291 : vector<8x32xf32>
    %293 = math.tanh %292 : vector<8x32xf32>
    %294 = arith.mulf %289, %293 : vector<8x32xf32>
    %295 = arith.index_cast %c3_i32 : i32 to index
    %c0_85 = arith.constant 0 : index
    %c0_86 = arith.constant 0 : index
    %296 = vector.load %arg10[%295, %c0_85, %c0_86] : memref<8x8x32xf32, #tpu.memory_space<vmem>>, vector<1x8x32xf32>
    %297 = vector.shape_cast %296 : vector<1x8x32xf32> to vector<8x32xf32>
    %298 = vector.shape_cast %269 : vector<8x32xf32> to vector<1x8x32xf32>
    tpu.vector_store %arg10[%295, %c0_85, %c0_86], %298 {strides = array<i32>} : memref<8x8x32xf32, #tpu.memory_space<vmem>>, vector<1x8x32xf32>,
    %299 = arith.index_cast %232 : i32 to index
    %c0_87 = arith.constant 0 : index
    %c0_88 = arith.constant 0 : index
    %300 = vector.load %arg11[%299, %c0_87, %c0_88] : memref<8x8x32xf32, #tpu.memory_space<vmem>>, vector<1x8x32xf32>
    %301 = vector.shape_cast %300 : vector<1x8x32xf32> to vector<8x32xf32>
    %302 = vector.shape_cast %294 : vector<8x32xf32> to vector<1x8x32xf32>
    tpu.vector_store %arg11[%299, %c0_87, %c0_88], %302 {strides = array<i32>} : memref<8x8x32xf32, #tpu.memory_space<vmem>>, vector<1x8x32xf32>,
    %c4_i32 = arith.constant 4 : i32
    %c7_i32_89 = arith.constant 7 : i32
    %303 = arith.subi %c7_i32_89, %c4_i32 : i32
    %c8_i32_90 = arith.constant 8 : i32
    %304 = arith.muli %c4_i32, %c8_i32_90 : i32
    %305 = tpu.assume_multiple %304, 8 : i32
    %c8_i32_91 = arith.constant 8 : i32
    %306 = arith.muli %303, %c8_i32_91 : i32
    %307 = tpu.assume_multiple %306, 8 : i32
    %308 = arith.index_cast %305 : i32 to index
    %c0_92 = arith.constant 0 : index
    %309 = vector.load %arg16[%308, %c0_92] : memref<64x128xf32, #tpu.memory_space<vmem>>, vector<8x128xf32>
    %cst_93 = arith.constant dense<0.000000e+00> : vector<8x128xf32>
    %310 = tpu.matmul %269, %13, %cst_93 {dimension_numbers = #tpu.dot_dimension_numbers<[1], [0], [0], [1], [0, 0, 1, 1], [], []>} : vector<8x32xf32>, vector<32x128xf32>, vector<8x128xf32> -> vector<8x128xf32>
    %311 = arith.addf %309, %310 : vector<8x128xf32>
    %312 = arith.index_cast %307 : i32 to index
    %c0_94 = arith.constant 0 : index
    %313 = vector.load %arg17[%312, %c0_94] : memref<64x128xf32, #tpu.memory_space<vmem>>, vector<8x128xf32>
    %cst_95 = arith.constant dense<0.000000e+00> : vector<8x128xf32>
    %314 = tpu.matmul %294, %14, %cst_95 {dimension_numbers = #tpu.dot_dimension_numbers<[1], [0], [0], [1], [0, 0, 1, 1], [], []>} : vector<8x32xf32>, vector<32x128xf32>, vector<8x128xf32> -> vector<8x128xf32>
    %315 = arith.addf %313, %314 : vector<8x128xf32>
    %316 = vector.extract_strided_slice %311 {offsets = [0, 0], sizes = [8, 32], strides = [1, 1]} : vector<8x128xf32> to vector<8x32xf32>
    %317 = arith.negf %316 : vector<8x32xf32>
    %318 = math.exp %317 : vector<8x32xf32>
    %cst_96 = arith.constant 1.000000e+00 : f32
    %319 = vector.broadcast %cst_96 : f32 to vector<8x32xf32>
    %320 = arith.addf %319, %318 : vector<8x32xf32>
    %321 = arith.divf %319, %320 : vector<8x32xf32>
    %322 = vector.extract_strided_slice %311 {offsets = [0, 32], sizes = [8, 32], strides = [1, 1]} : vector<8x128xf32> to vector<8x32xf32>
    %323 = arith.negf %322 : vector<8x32xf32>
    %324 = math.exp %323 : vector<8x32xf32>
    %cst_97 = arith.constant 1.000000e+00 : f32
    %325 = vector.broadcast %cst_97 : f32 to vector<8x32xf32>
    %326 = arith.addf %325, %324 : vector<8x32xf32>
    %327 = arith.divf %325, %326 : vector<8x32xf32>
    %328 = vector.extract_strided_slice %311 {offsets = [0, 64], sizes = [8, 32], strides = [1, 1]} : vector<8x128xf32> to vector<8x32xf32>
    %329 = math.tanh %328 : vector<8x32xf32>
    %330 = vector.extract_strided_slice %311 {offsets = [0, 96], sizes = [8, 32], strides = [1, 1]} : vector<8x128xf32> to vector<8x32xf32>
    %331 = arith.negf %330 : vector<8x32xf32>
    %332 = math.exp %331 : vector<8x32xf32>
    %cst_98 = arith.constant 1.000000e+00 : f32
    %333 = vector.broadcast %cst_98 : f32 to vector<8x32xf32>
    %334 = arith.addf %333, %332 : vector<8x32xf32>
    %335 = arith.divf %333, %334 : vector<8x32xf32>
    %336 = arith.mulf %327, %267 : vector<8x32xf32>
    %337 = arith.mulf %321, %329 : vector<8x32xf32>
    %338 = arith.addf %336, %337 : vector<8x32xf32>
    %339 = math.tanh %338 : vector<8x32xf32>
    %340 = arith.mulf %335, %339 : vector<8x32xf32>
    %341 = vector.extract_strided_slice %315 {offsets = [0, 0], sizes = [8, 32], strides = [1, 1]} : vector<8x128xf32> to vector<8x32xf32>
    %342 = arith.negf %341 : vector<8x32xf32>
    %343 = math.exp %342 : vector<8x32xf32>
    %cst_99 = arith.constant 1.000000e+00 : f32
    %344 = vector.broadcast %cst_99 : f32 to vector<8x32xf32>
    %345 = arith.addf %344, %343 : vector<8x32xf32>
    %346 = arith.divf %344, %345 : vector<8x32xf32>
    %347 = vector.extract_strided_slice %315 {offsets = [0, 32], sizes = [8, 32], strides = [1, 1]} : vector<8x128xf32> to vector<8x32xf32>
    %348 = arith.negf %347 : vector<8x32xf32>
    %349 = math.exp %348 : vector<8x32xf32>
    %cst_100 = arith.constant 1.000000e+00 : f32
    %350 = vector.broadcast %cst_100 : f32 to vector<8x32xf32>
    %351 = arith.addf %350, %349 : vector<8x32xf32>
    %352 = arith.divf %350, %351 : vector<8x32xf32>
    %353 = vector.extract_strided_slice %315 {offsets = [0, 64], sizes = [8, 32], strides = [1, 1]} : vector<8x128xf32> to vector<8x32xf32>
    %354 = math.tanh %353 : vector<8x32xf32>
    %355 = vector.extract_strided_slice %315 {offsets = [0, 96], sizes = [8, 32], strides = [1, 1]} : vector<8x128xf32> to vector<8x32xf32>
    %356 = arith.negf %355 : vector<8x32xf32>
    %357 = math.exp %356 : vector<8x32xf32>
    %cst_101 = arith.constant 1.000000e+00 : f32
    %358 = vector.broadcast %cst_101 : f32 to vector<8x32xf32>
    %359 = arith.addf %358, %357 : vector<8x32xf32>
    %360 = arith.divf %358, %359 : vector<8x32xf32>
    %361 = arith.mulf %352, %292 : vector<8x32xf32>
    %362 = arith.mulf %346, %354 : vector<8x32xf32>
    %363 = arith.addf %361, %362 : vector<8x32xf32>
    %364 = math.tanh %363 : vector<8x32xf32>
    %365 = arith.mulf %360, %364 : vector<8x32xf32>
    %366 = arith.index_cast %c4_i32 : i32 to index
    %c0_102 = arith.constant 0 : index
    %c0_103 = arith.constant 0 : index
    %367 = vector.load %arg10[%366, %c0_102, %c0_103] : memref<8x8x32xf32, #tpu.memory_space<vmem>>, vector<1x8x32xf32>
    %368 = vector.shape_cast %367 : vector<1x8x32xf32> to vector<8x32xf32>
    %369 = vector.shape_cast %340 : vector<8x32xf32> to vector<1x8x32xf32>
    tpu.vector_store %arg10[%366, %c0_102, %c0_103], %369 {strides = array<i32>} : memref<8x8x32xf32, #tpu.memory_space<vmem>>, vector<1x8x32xf32>,
    %370 = arith.index_cast %303 : i32 to index
    %c0_104 = arith.constant 0 : index
    %c0_105 = arith.constant 0 : index
    %371 = vector.load %arg11[%370, %c0_104, %c0_105] : memref<8x8x32xf32, #tpu.memory_space<vmem>>, vector<1x8x32xf32>
    %372 = vector.shape_cast %371 : vector<1x8x32xf32> to vector<8x32xf32>
    %373 = vector.shape_cast %365 : vector<8x32xf32> to vector<1x8x32xf32>
    tpu.vector_store %arg11[%370, %c0_104, %c0_105], %373 {strides = array<i32>} : memref<8x8x32xf32, #tpu.memory_space<vmem>>, vector<1x8x32xf32>,
    %c5_i32 = arith.constant 5 : i32
    %c7_i32_106 = arith.constant 7 : i32
    %374 = arith.subi %c7_i32_106, %c5_i32 : i32
    %c8_i32_107 = arith.constant 8 : i32
    %375 = arith.muli %c5_i32, %c8_i32_107 : i32
    %376 = tpu.assume_multiple %375, 8 : i32
    %c8_i32_108 = arith.constant 8 : i32
    %377 = arith.muli %374, %c8_i32_108 : i32
    %378 = tpu.assume_multiple %377, 8 : i32
    %379 = arith.index_cast %376 : i32 to index
    %c0_109 = arith.constant 0 : index
    %380 = vector.load %arg16[%379, %c0_109] : memref<64x128xf32, #tpu.memory_space<vmem>>, vector<8x128xf32>
    %cst_110 = arith.constant dense<0.000000e+00> : vector<8x128xf32>
    %381 = tpu.matmul %340, %13, %cst_110 {dimension_numbers = #tpu.dot_dimension_numbers<[1], [0], [0], [1], [0, 0, 1, 1], [], []>} : vector<8x32xf32>, vector<32x128xf32>, vector<8x128xf32> -> vector<8x128xf32>
    %382 = arith.addf %380, %381 : vector<8x128xf32>
    %383 = arith.index_cast %378 : i32 to index
    %c0_111 = arith.constant 0 : index
    %384 = vector.load %arg17[%383, %c0_111] : memref<64x128xf32, #tpu.memory_space<vmem>>, vector<8x128xf32>
    %cst_112 = arith.constant dense<0.000000e+00> : vector<8x128xf32>
    %385 = tpu.matmul %365, %14, %cst_112 {dimension_numbers = #tpu.dot_dimension_numbers<[1], [0], [0], [1], [0, 0, 1, 1], [], []>} : vector<8x32xf32>, vector<32x128xf32>, vector<8x128xf32> -> vector<8x128xf32>
    %386 = arith.addf %384, %385 : vector<8x128xf32>
    %387 = vector.extract_strided_slice %382 {offsets = [0, 0], sizes = [8, 32], strides = [1, 1]} : vector<8x128xf32> to vector<8x32xf32>
    %388 = arith.negf %387 : vector<8x32xf32>
    %389 = math.exp %388 : vector<8x32xf32>
    %cst_113 = arith.constant 1.000000e+00 : f32
    %390 = vector.broadcast %cst_113 : f32 to vector<8x32xf32>
    %391 = arith.addf %390, %389 : vector<8x32xf32>
    %392 = arith.divf %390, %391 : vector<8x32xf32>
    %393 = vector.extract_strided_slice %382 {offsets = [0, 32], sizes = [8, 32], strides = [1, 1]} : vector<8x128xf32> to vector<8x32xf32>
    %394 = arith.negf %393 : vector<8x32xf32>
    %395 = math.exp %394 : vector<8x32xf32>
    %cst_114 = arith.constant 1.000000e+00 : f32
    %396 = vector.broadcast %cst_114 : f32 to vector<8x32xf32>
    %397 = arith.addf %396, %395 : vector<8x32xf32>
    %398 = arith.divf %396, %397 : vector<8x32xf32>
    %399 = vector.extract_strided_slice %382 {offsets = [0, 64], sizes = [8, 32], strides = [1, 1]} : vector<8x128xf32> to vector<8x32xf32>
    %400 = math.tanh %399 : vector<8x32xf32>
    %401 = vector.extract_strided_slice %382 {offsets = [0, 96], sizes = [8, 32], strides = [1, 1]} : vector<8x128xf32> to vector<8x32xf32>
    %402 = arith.negf %401 : vector<8x32xf32>
    %403 = math.exp %402 : vector<8x32xf32>
    %cst_115 = arith.constant 1.000000e+00 : f32
    %404 = vector.broadcast %cst_115 : f32 to vector<8x32xf32>
    %405 = arith.addf %404, %403 : vector<8x32xf32>
    %406 = arith.divf %404, %405 : vector<8x32xf32>
    %407 = arith.mulf %398, %338 : vector<8x32xf32>
    %408 = arith.mulf %392, %400 : vector<8x32xf32>
    %409 = arith.addf %407, %408 : vector<8x32xf32>
    %410 = math.tanh %409 : vector<8x32xf32>
    %411 = arith.mulf %406, %410 : vector<8x32xf32>
    %412 = vector.extract_strided_slice %386 {offsets = [0, 0], sizes = [8, 32], strides = [1, 1]} : vector<8x128xf32> to vector<8x32xf32>
    %413 = arith.negf %412 : vector<8x32xf32>
    %414 = math.exp %413 : vector<8x32xf32>
    %cst_116 = arith.constant 1.000000e+00 : f32
    %415 = vector.broadcast %cst_116 : f32 to vector<8x32xf32>
    %416 = arith.addf %415, %414 : vector<8x32xf32>
    %417 = arith.divf %415, %416 : vector<8x32xf32>
    %418 = vector.extract_strided_slice %386 {offsets = [0, 32], sizes = [8, 32], strides = [1, 1]} : vector<8x128xf32> to vector<8x32xf32>
    %419 = arith.negf %418 : vector<8x32xf32>
    %420 = math.exp %419 : vector<8x32xf32>
    %cst_117 = arith.constant 1.000000e+00 : f32
    %421 = vector.broadcast %cst_117 : f32 to vector<8x32xf32>
    %422 = arith.addf %421, %420 : vector<8x32xf32>
    %423 = arith.divf %421, %422 : vector<8x32xf32>
    %424 = vector.extract_strided_slice %386 {offsets = [0, 64], sizes = [8, 32], strides = [1, 1]} : vector<8x128xf32> to vector<8x32xf32>
    %425 = math.tanh %424 : vector<8x32xf32>
    %426 = vector.extract_strided_slice %386 {offsets = [0, 96], sizes = [8, 32], strides = [1, 1]} : vector<8x128xf32> to vector<8x32xf32>
    %427 = arith.negf %426 : vector<8x32xf32>
    %428 = math.exp %427 : vector<8x32xf32>
    %cst_118 = arith.constant 1.000000e+00 : f32
    %429 = vector.broadcast %cst_118 : f32 to vector<8x32xf32>
    %430 = arith.addf %429, %428 : vector<8x32xf32>
    %431 = arith.divf %429, %430 : vector<8x32xf32>
    %432 = arith.mulf %423, %363 : vector<8x32xf32>
    %433 = arith.mulf %417, %425 : vector<8x32xf32>
    %434 = arith.addf %432, %433 : vector<8x32xf32>
    %435 = math.tanh %434 : vector<8x32xf32>
    %436 = arith.mulf %431, %435 : vector<8x32xf32>
    %437 = arith.index_cast %c5_i32 : i32 to index
    %c0_119 = arith.constant 0 : index
    %c0_120 = arith.constant 0 : index
    %438 = vector.load %arg10[%437, %c0_119, %c0_120] : memref<8x8x32xf32, #tpu.memory_space<vmem>>, vector<1x8x32xf32>
    %439 = vector.shape_cast %438 : vector<1x8x32xf32> to vector<8x32xf32>
    %440 = vector.shape_cast %411 : vector<8x32xf32> to vector<1x8x32xf32>
    tpu.vector_store %arg10[%437, %c0_119, %c0_120], %440 {strides = array<i32>} : memref<8x8x32xf32, #tpu.memory_space<vmem>>, vector<1x8x32xf32>,
    %441 = arith.index_cast %374 : i32 to index
    %c0_121 = arith.constant 0 : index
    %c0_122 = arith.constant 0 : index
    %442 = vector.load %arg11[%441, %c0_121, %c0_122] : memref<8x8x32xf32, #tpu.memory_space<vmem>>, vector<1x8x32xf32>
    %443 = vector.shape_cast %442 : vector<1x8x32xf32> to vector<8x32xf32>
    %444 = vector.shape_cast %436 : vector<8x32xf32> to vector<1x8x32xf32>
    tpu.vector_store %arg11[%441, %c0_121, %c0_122], %444 {strides = array<i32>} : memref<8x8x32xf32, #tpu.memory_space<vmem>>, vector<1x8x32xf32>,
    %c6_i32 = arith.constant 6 : i32
    %c7_i32_123 = arith.constant 7 : i32
    %445 = arith.subi %c7_i32_123, %c6_i32 : i32
    %c8_i32_124 = arith.constant 8 : i32
    %446 = arith.muli %c6_i32, %c8_i32_124 : i32
    %447 = tpu.assume_multiple %446, 8 : i32
    %c8_i32_125 = arith.constant 8 : i32
    %448 = arith.muli %445, %c8_i32_125 : i32
    %449 = tpu.assume_multiple %448, 8 : i32
    %450 = arith.index_cast %447 : i32 to index
    %c0_126 = arith.constant 0 : index
    %451 = vector.load %arg16[%450, %c0_126] : memref<64x128xf32, #tpu.memory_space<vmem>>, vector<8x128xf32>
    %cst_127 = arith.constant dense<0.000000e+00> : vector<8x128xf32>
    %452 = tpu.matmul %411, %13, %cst_127 {dimension_numbers = #tpu.dot_dimension_numbers<[1], [0], [0], [1], [0, 0, 1, 1], [], []>} : vector<8x32xf32>, vector<32x128xf32>, vector<8x128xf32> -> vector<8x128xf32>
    %453 = arith.addf %451, %452 : vector<8x128xf32>
    %454 = arith.index_cast %449 : i32 to index
    %c0_128 = arith.constant 0 : index
    %455 = vector.load %arg17[%454, %c0_128] : memref<64x128xf32, #tpu.memory_space<vmem>>, vector<8x128xf32>
    %cst_129 = arith.constant dense<0.000000e+00> : vector<8x128xf32>
    %456 = tpu.matmul %436, %14, %cst_129 {dimension_numbers = #tpu.dot_dimension_numbers<[1], [0], [0], [1], [0, 0, 1, 1], [], []>} : vector<8x32xf32>, vector<32x128xf32>, vector<8x128xf32> -> vector<8x128xf32>
    %457 = arith.addf %455, %456 : vector<8x128xf32>
    %458 = vector.extract_strided_slice %453 {offsets = [0, 0], sizes = [8, 32], strides = [1, 1]} : vector<8x128xf32> to vector<8x32xf32>
    %459 = arith.negf %458 : vector<8x32xf32>
    %460 = math.exp %459 : vector<8x32xf32>
    %cst_130 = arith.constant 1.000000e+00 : f32
    %461 = vector.broadcast %cst_130 : f32 to vector<8x32xf32>
    %462 = arith.addf %461, %460 : vector<8x32xf32>
    %463 = arith.divf %461, %462 : vector<8x32xf32>
    %464 = vector.extract_strided_slice %453 {offsets = [0, 32], sizes = [8, 32], strides = [1, 1]} : vector<8x128xf32> to vector<8x32xf32>
    %465 = arith.negf %464 : vector<8x32xf32>
    %466 = math.exp %465 : vector<8x32xf32>
    %cst_131 = arith.constant 1.000000e+00 : f32
    %467 = vector.broadcast %cst_131 : f32 to vector<8x32xf32>
    %468 = arith.addf %467, %466 : vector<8x32xf32>
    %469 = arith.divf %467, %468 : vector<8x32xf32>
    %470 = vector.extract_strided_slice %453 {offsets = [0, 64], sizes = [8, 32], strides = [1, 1]} : vector<8x128xf32> to vector<8x32xf32>
    %471 = math.tanh %470 : vector<8x32xf32>
    %472 = vector.extract_strided_slice %453 {offsets = [0, 96], sizes = [8, 32], strides = [1, 1]} : vector<8x128xf32> to vector<8x32xf32>
    %473 = arith.negf %472 : vector<8x32xf32>
    %474 = math.exp %473 : vector<8x32xf32>
    %cst_132 = arith.constant 1.000000e+00 : f32
    %475 = vector.broadcast %cst_132 : f32 to vector<8x32xf32>
    %476 = arith.addf %475, %474 : vector<8x32xf32>
    %477 = arith.divf %475, %476 : vector<8x32xf32>
    %478 = arith.mulf %469, %409 : vector<8x32xf32>
    %479 = arith.mulf %463, %471 : vector<8x32xf32>
    %480 = arith.addf %478, %479 : vector<8x32xf32>
    %481 = math.tanh %480 : vector<8x32xf32>
    %482 = arith.mulf %477, %481 : vector<8x32xf32>
    %483 = vector.extract_strided_slice %457 {offsets = [0, 0], sizes = [8, 32], strides = [1, 1]} : vector<8x128xf32> to vector<8x32xf32>
    %484 = arith.negf %483 : vector<8x32xf32>
    %485 = math.exp %484 : vector<8x32xf32>
    %cst_133 = arith.constant 1.000000e+00 : f32
    %486 = vector.broadcast %cst_133 : f32 to vector<8x32xf32>
    %487 = arith.addf %486, %485 : vector<8x32xf32>
    %488 = arith.divf %486, %487 : vector<8x32xf32>
    %489 = vector.extract_strided_slice %457 {offsets = [0, 32], sizes = [8, 32], strides = [1, 1]} : vector<8x128xf32> to vector<8x32xf32>
    %490 = arith.negf %489 : vector<8x32xf32>
    %491 = math.exp %490 : vector<8x32xf32>
    %cst_134 = arith.constant 1.000000e+00 : f32
    %492 = vector.broadcast %cst_134 : f32 to vector<8x32xf32>
    %493 = arith.addf %492, %491 : vector<8x32xf32>
    %494 = arith.divf %492, %493 : vector<8x32xf32>
    %495 = vector.extract_strided_slice %457 {offsets = [0, 64], sizes = [8, 32], strides = [1, 1]} : vector<8x128xf32> to vector<8x32xf32>
    %496 = math.tanh %495 : vector<8x32xf32>
    %497 = vector.extract_strided_slice %457 {offsets = [0, 96], sizes = [8, 32], strides = [1, 1]} : vector<8x128xf32> to vector<8x32xf32>
    %498 = arith.negf %497 : vector<8x32xf32>
    %499 = math.exp %498 : vector<8x32xf32>
    %cst_135 = arith.constant 1.000000e+00 : f32
    %500 = vector.broadcast %cst_135 : f32 to vector<8x32xf32>
    %501 = arith.addf %500, %499 : vector<8x32xf32>
    %502 = arith.divf %500, %501 : vector<8x32xf32>
    %503 = arith.mulf %494, %434 : vector<8x32xf32>
    %504 = arith.mulf %488, %496 : vector<8x32xf32>
    %505 = arith.addf %503, %504 : vector<8x32xf32>
    %506 = math.tanh %505 : vector<8x32xf32>
    %507 = arith.mulf %502, %506 : vector<8x32xf32>
    %508 = arith.index_cast %c6_i32 : i32 to index
    %c0_136 = arith.constant 0 : index
    %c0_137 = arith.constant 0 : index
    %509 = vector.load %arg10[%508, %c0_136, %c0_137] : memref<8x8x32xf32, #tpu.memory_space<vmem>>, vector<1x8x32xf32>
    %510 = vector.shape_cast %509 : vector<1x8x32xf32> to vector<8x32xf32>
    %511 = vector.shape_cast %482 : vector<8x32xf32> to vector<1x8x32xf32>
    tpu.vector_store %arg10[%508, %c0_136, %c0_137], %511 {strides = array<i32>} : memref<8x8x32xf32, #tpu.memory_space<vmem>>, vector<1x8x32xf32>,
    %512 = arith.index_cast %445 : i32 to index
    %c0_138 = arith.constant 0 : index
    %c0_139 = arith.constant 0 : index
    %513 = vector.load %arg11[%512, %c0_138, %c0_139] : memref<8x8x32xf32, #tpu.memory_space<vmem>>, vector<1x8x32xf32>
    %514 = vector.shape_cast %513 : vector<1x8x32xf32> to vector<8x32xf32>
    %515 = vector.shape_cast %507 : vector<8x32xf32> to vector<1x8x32xf32>
    tpu.vector_store %arg11[%512, %c0_138, %c0_139], %515 {strides = array<i32>} : memref<8x8x32xf32, #tpu.memory_space<vmem>>, vector<1x8x32xf32>,
    %c7_i32_140 = arith.constant 7 : i32
    %c7_i32_141 = arith.constant 7 : i32
    %516 = arith.subi %c7_i32_141, %c7_i32_140 : i32
    %c8_i32_142 = arith.constant 8 : i32
    %517 = arith.muli %c7_i32_140, %c8_i32_142 : i32
    %518 = tpu.assume_multiple %517, 8 : i32
    %c8_i32_143 = arith.constant 8 : i32
    %519 = arith.muli %516, %c8_i32_143 : i32
    %520 = tpu.assume_multiple %519, 8 : i32
    %521 = arith.index_cast %518 : i32 to index
    %c0_144 = arith.constant 0 : index
    %522 = vector.load %arg16[%521, %c0_144] : memref<64x128xf32, #tpu.memory_space<vmem>>, vector<8x128xf32>
    %cst_145 = arith.constant dense<0.000000e+00> : vector<8x128xf32>
    %523 = tpu.matmul %482, %13, %cst_145 {dimension_numbers = #tpu.dot_dimension_numbers<[1], [0], [0], [1], [0, 0, 1, 1], [], []>} : vector<8x32xf32>, vector<32x128xf32>, vector<8x128xf32> -> vector<8x128xf32>
    %524 = arith.addf %522, %523 : vector<8x128xf32>
    %525 = arith.index_cast %520 : i32 to index
    %c0_146 = arith.constant 0 : index
    %526 = vector.load %arg17[%525, %c0_146] : memref<64x128xf32, #tpu.memory_space<vmem>>, vector<8x128xf32>
    %cst_147 = arith.constant dense<0.000000e+00> : vector<8x128xf32>
    %527 = tpu.matmul %507, %14, %cst_147 {dimension_numbers = #tpu.dot_dimension_numbers<[1], [0], [0], [1], [0, 0, 1, 1], [], []>} : vector<8x32xf32>, vector<32x128xf32>, vector<8x128xf32> -> vector<8x128xf32>
    %528 = arith.addf %526, %527 : vector<8x128xf32>
    %529 = vector.extract_strided_slice %524 {offsets = [0, 0], sizes = [8, 32], strides = [1, 1]} : vector<8x128xf32> to vector<8x32xf32>
    %530 = arith.negf %529 : vector<8x32xf32>
    %531 = math.exp %530 : vector<8x32xf32>
    %cst_148 = arith.constant 1.000000e+00 : f32
    %532 = vector.broadcast %cst_148 : f32 to vector<8x32xf32>
    %533 = arith.addf %532, %531 : vector<8x32xf32>
    %534 = arith.divf %532, %533 : vector<8x32xf32>
    %535 = vector.extract_strided_slice %524 {offsets = [0, 32], sizes = [8, 32], strides = [1, 1]} : vector<8x128xf32> to vector<8x32xf32>
    %536 = arith.negf %535 : vector<8x32xf32>
    %537 = math.exp %536 : vector<8x32xf32>
    %cst_149 = arith.constant 1.000000e+00 : f32
    %538 = vector.broadcast %cst_149 : f32 to vector<8x32xf32>
    %539 = arith.addf %538, %537 : vector<8x32xf32>
    %540 = arith.divf %538, %539 : vector<8x32xf32>
    %541 = vector.extract_strided_slice %524 {offsets = [0, 64], sizes = [8, 32], strides = [1, 1]} : vector<8x128xf32> to vector<8x32xf32>
    %542 = math.tanh %541 : vector<8x32xf32>
    %543 = vector.extract_strided_slice %524 {offsets = [0, 96], sizes = [8, 32], strides = [1, 1]} : vector<8x128xf32> to vector<8x32xf32>
    %544 = arith.negf %543 : vector<8x32xf32>
    %545 = math.exp %544 : vector<8x32xf32>
    %cst_150 = arith.constant 1.000000e+00 : f32
    %546 = vector.broadcast %cst_150 : f32 to vector<8x32xf32>
    %547 = arith.addf %546, %545 : vector<8x32xf32>
    %548 = arith.divf %546, %547 : vector<8x32xf32>
    %549 = arith.mulf %540, %480 : vector<8x32xf32>
    %550 = arith.mulf %534, %542 : vector<8x32xf32>
    %551 = arith.addf %549, %550 : vector<8x32xf32>
    %552 = math.tanh %551 : vector<8x32xf32>
    %553 = arith.mulf %548, %552 : vector<8x32xf32>
    %554 = vector.extract_strided_slice %528 {offsets = [0, 0], sizes = [8, 32], strides = [1, 1]} : vector<8x128xf32> to vector<8x32xf32>
    %555 = arith.negf %554 : vector<8x32xf32>
    %556 = math.exp %555 : vector<8x32xf32>
    %cst_151 = arith.constant 1.000000e+00 : f32
    %557 = vector.broadcast %cst_151 : f32 to vector<8x32xf32>
    %558 = arith.addf %557, %556 : vector<8x32xf32>
    %559 = arith.divf %557, %558 : vector<8x32xf32>
    %560 = vector.extract_strided_slice %528 {offsets = [0, 32], sizes = [8, 32], strides = [1, 1]} : vector<8x128xf32> to vector<8x32xf32>
    %561 = arith.negf %560 : vector<8x32xf32>
    %562 = math.exp %561 : vector<8x32xf32>
    %cst_152 = arith.constant 1.000000e+00 : f32
    %563 = vector.broadcast %cst_152 : f32 to vector<8x32xf32>
    %564 = arith.addf %563, %562 : vector<8x32xf32>
    %565 = arith.divf %563, %564 : vector<8x32xf32>
    %566 = vector.extract_strided_slice %528 {offsets = [0, 64], sizes = [8, 32], strides = [1, 1]} : vector<8x128xf32> to vector<8x32xf32>
    %567 = math.tanh %566 : vector<8x32xf32>
    %568 = vector.extract_strided_slice %528 {offsets = [0, 96], sizes = [8, 32], strides = [1, 1]} : vector<8x128xf32> to vector<8x32xf32>
    %569 = arith.negf %568 : vector<8x32xf32>
    %570 = math.exp %569 : vector<8x32xf32>
    %cst_153 = arith.constant 1.000000e+00 : f32
    %571 = vector.broadcast %cst_153 : f32 to vector<8x32xf32>
    %572 = arith.addf %571, %570 : vector<8x32xf32>
    %573 = arith.divf %571, %572 : vector<8x32xf32>
    %574 = arith.mulf %565, %505 : vector<8x32xf32>
    %575 = arith.mulf %559, %567 : vector<8x32xf32>
    %576 = arith.addf %574, %575 : vector<8x32xf32>
    %577 = math.tanh %576 : vector<8x32xf32>
    %578 = arith.mulf %573, %577 : vector<8x32xf32>
    %579 = arith.index_cast %c7_i32_140 : i32 to index
    %c0_154 = arith.constant 0 : index
    %c0_155 = arith.constant 0 : index
    %580 = vector.load %arg10[%579, %c0_154, %c0_155] : memref<8x8x32xf32, #tpu.memory_space<vmem>>, vector<1x8x32xf32>
    %581 = vector.shape_cast %580 : vector<1x8x32xf32> to vector<8x32xf32>
    %582 = vector.shape_cast %553 : vector<8x32xf32> to vector<1x8x32xf32>
    tpu.vector_store %arg10[%579, %c0_154, %c0_155], %582 {strides = array<i32>} : memref<8x8x32xf32, #tpu.memory_space<vmem>>, vector<1x8x32xf32>,
    %583 = arith.index_cast %516 : i32 to index
    %c0_156 = arith.constant 0 : index
    %c0_157 = arith.constant 0 : index
    %584 = vector.load %arg11[%583, %c0_156, %c0_157] : memref<8x8x32xf32, #tpu.memory_space<vmem>>, vector<1x8x32xf32>
    %585 = vector.shape_cast %584 : vector<1x8x32xf32> to vector<8x32xf32>
    %586 = vector.shape_cast %578 : vector<8x32xf32> to vector<1x8x32xf32>
    tpu.vector_store %arg11[%583, %c0_156, %c0_157], %586 {strides = array<i32>} : memref<8x8x32xf32, #tpu.memory_space<vmem>>, vector<1x8x32xf32>,
    %c8_i32_158 = arith.constant 8 : i32
    %c0_159 = arith.constant 0 : index
    %c0_160 = arith.constant 0 : index
    %587 = vector.load %arg12[%c0_159, %c0_160] : memref<8x32xf32, #tpu.memory_space<vmem>>, vector<8x32xf32>
    tpu.vector_store %arg12[%c0_159, %c0_160], %553 {strides = array<i32>} : memref<8x32xf32, #tpu.memory_space<vmem>>, vector<8x32xf32>,
    %c0_161 = arith.constant 0 : index
    %c0_162 = arith.constant 0 : index
    %588 = vector.load %arg13[%c0_161, %c0_162] : memref<8x32xf32, #tpu.memory_space<vmem>>, vector<8x32xf32>
    tpu.vector_store %arg13[%c0_161, %c0_162], %578 {strides = array<i32>} : memref<8x32xf32, #tpu.memory_space<vmem>>, vector<8x32xf32>,
    %c0_163 = arith.constant 0 : index
    %c0_164 = arith.constant 0 : index
    %589 = vector.load %arg14[%c0_163, %c0_164] : memref<8x32xf32, #tpu.memory_space<vmem>>, vector<8x32xf32>
    tpu.vector_store %arg14[%c0_163, %c0_164], %551 {strides = array<i32>} : memref<8x32xf32, #tpu.memory_space<vmem>>, vector<8x32xf32>,
    %c0_165 = arith.constant 0 : index
    %c0_166 = arith.constant 0 : index
    %590 = vector.load %arg15[%c0_165, %c0_166] : memref<8x32xf32, #tpu.memory_space<vmem>>, vector<8x32xf32>
    tpu.vector_store %arg15[%c0_165, %c0_166], %576 {strides = array<i32>} : memref<8x32xf32, #tpu.memory_space<vmem>>, vector<8x32xf32>,
    return
  }
}

module attributes {stable_mosaic.version = 11 : i64} {
  func.func @_bilstm_layer_kernel(%arg0: memref<64x64xf32, #tpu.memory_space<vmem>>, %arg1: memref<64x256xf32, #tpu.memory_space<vmem>>, %arg2: memref<32x128xf32, #tpu.memory_space<vmem>>, %arg3: memref<32x128xf32, #tpu.memory_space<vmem>>, %arg4: memref<1x128xf32, #tpu.memory_space<vmem>>, %arg5: memref<1x128xf32, #tpu.memory_space<vmem>>, %arg6: memref<8x32xf32, #tpu.memory_space<vmem>>, %arg7: memref<8x32xf32, #tpu.memory_space<vmem>>, %arg8: memref<8x32xf32, #tpu.memory_space<vmem>>, %arg9: memref<8x32xf32, #tpu.memory_space<vmem>>, %arg10: memref<8x8x32xf32, #tpu.memory_space<vmem>>, %arg11: memref<8x8x32xf32, #tpu.memory_space<vmem>>, %arg12: memref<8x32xf32, #tpu.memory_space<vmem>>, %arg13: memref<8x32xf32, #tpu.memory_space<vmem>>, %arg14: memref<8x32xf32, #tpu.memory_space<vmem>>, %arg15: memref<8x32xf32, #tpu.memory_space<vmem>>, %arg16: memref<64x128xf32, #tpu.memory_space<vmem>>, %arg17: memref<64x128xf32, #tpu.memory_space<vmem>>) attributes {dimension_semantics = [], scalar_prefetch = 0 : i64, scratch_operands = 2 : i64, tpu.core_type = #tpu.core_type<tc>} {
    %c0 = arith.constant 0 : index
    %c0_0 = arith.constant 0 : index
    %0 = vector.load %arg0[%c0, %c0_0] : memref<64x64xf32, #tpu.memory_space<vmem>>, vector<64x64xf32>
    %c0_1 = arith.constant 0 : index
    %c0_2 = arith.constant 0 : index
    %1 = vector.load %arg1[%c0_1, %c0_2] : memref<64x256xf32, #tpu.memory_space<vmem>>, vector<64x256xf32>
    %cst = arith.constant dense<0.000000e+00> : vector<64x256xf32>
    %2 = tpu.matmul %0, %1, %cst {dimension_numbers = #tpu.dot_dimension_numbers<[1], [0], [0], [1], [0, 0, 1, 1], [], []>} : vector<64x64xf32>, vector<64x256xf32>, vector<64x256xf32> -> vector<64x256xf32>
    %3 = vector.extract_strided_slice %2 {offsets = [0, 0], sizes = [64, 128], strides = [1, 1]} : vector<64x256xf32> to vector<64x128xf32>
    %c0_3 = arith.constant 0 : index
    %c0_4 = arith.constant 0 : index
    %4 = vector.load %arg4[%c0_3, %c0_4] : memref<1x128xf32, #tpu.memory_space<vmem>>, vector<1x128xf32>
    %5 = vector.broadcast %4 : vector<1x128xf32> to vector<64x128xf32>
    %6 = arith.addf %3, %5 : vector<64x128xf32>
    %c0_5 = arith.constant 0 : index
    %c0_6 = arith.constant 0 : index
    %7 = vector.load %arg16[%c0_5, %c0_6] : memref<64x128xf32, #tpu.memory_space<vmem>>, vector<64x128xf32>
    tpu.vector_store %arg16[%c0_5, %c0_6], %6 {strides = array<i32>} : memref<64x128xf32, #tpu.memory_space<vmem>>, vector<64x128xf32>,
    %8 = vector.extract_strided_slice %2 {offsets = [0, 128], sizes = [64, 128], strides = [1, 1]} : vector<64x256xf32> to vector<64x128xf32>
    %c0_7 = arith.constant 0 : index
    %c0_8 = arith.constant 0 : index
    %9 = vector.load %arg5[%c0_7, %c0_8] : memref<1x128xf32, #tpu.memory_space<vmem>>, vector<1x128xf32>
    %10 = vector.broadcast %9 : vector<1x128xf32> to vector<64x128xf32>
    %11 = arith.addf %8, %10 : vector<64x128xf32>
    %c0_9 = arith.constant 0 : index
    %c0_10 = arith.constant 0 : index
    %12 = vector.load %arg17[%c0_9, %c0_10] : memref<64x128xf32, #tpu.memory_space<vmem>>, vector<64x128xf32>
    tpu.vector_store %arg17[%c0_9, %c0_10], %11 {strides = array<i32>} : memref<64x128xf32, #tpu.memory_space<vmem>>, vector<64x128xf32>,
    %c0_11 = arith.constant 0 : index
    %c0_12 = arith.constant 0 : index
    %13 = vector.load %arg2[%c0_11, %c0_12] : memref<32x128xf32, #tpu.memory_space<vmem>>, vector<32x128xf32>
    %c0_13 = arith.constant 0 : index
    %c0_14 = arith.constant 0 : index
    %14 = vector.load %arg3[%c0_13, %c0_14] : memref<32x128xf32, #tpu.memory_space<vmem>>, vector<32x128xf32>
    %c0_15 = arith.constant 0 : index
    %c0_16 = arith.constant 0 : index
    %15 = vector.load %arg6[%c0_15, %c0_16] : memref<8x32xf32, #tpu.memory_space<vmem>>, vector<8x32xf32>
    %c0_17 = arith.constant 0 : index
    %c0_18 = arith.constant 0 : index
    %16 = vector.load %arg8[%c0_17, %c0_18] : memref<8x32xf32, #tpu.memory_space<vmem>>, vector<8x32xf32>
    %c0_19 = arith.constant 0 : index
    %c0_20 = arith.constant 0 : index
    %17 = vector.load %arg7[%c0_19, %c0_20] : memref<8x32xf32, #tpu.memory_space<vmem>>, vector<8x32xf32>
    %c0_21 = arith.constant 0 : index
    %c0_22 = arith.constant 0 : index
    %18 = vector.load %arg9[%c0_21, %c0_22] : memref<8x32xf32, #tpu.memory_space<vmem>>, vector<8x32xf32>
    %c0_i32 = arith.constant 0 : i32
    %c7_i32 = arith.constant 7 : i32
    %19 = arith.subi %c7_i32, %c0_i32 : i32
    %c8_i32 = arith.constant 8 : i32
    %20 = arith.muli %c0_i32, %c8_i32 : i32
    %21 = tpu.assume_multiple %20, 8 : i32
    %c8_i32_23 = arith.constant 8 : i32
    %22 = arith.muli %19, %c8_i32_23 : i32
    %23 = tpu.assume_multiple %22, 8 : i32
    %24 = arith.index_cast %21 : i32 to index
    %c0_24 = arith.constant 0 : index
    %25 = vector.load %arg16[%24, %c0_24] : memref<64x128xf32, #tpu.memory_space<vmem>>, vector<8x128xf32>
    %cst_25 = arith.constant dense<0.000000e+00> : vector<8x128xf32>
    %26 = tpu.matmul %15, %13, %cst_25 {dimension_numbers = #tpu.dot_dimension_numbers<[1], [0], [0], [1], [0, 0, 1, 1], [], []>} : vector<8x32xf32>, vector<32x128xf32>, vector<8x128xf32> -> vector<8x128xf32>
    %27 = arith.addf %25, %26 : vector<8x128xf32>
    %28 = arith.index_cast %23 : i32 to index
    %c0_26 = arith.constant 0 : index
    %29 = vector.load %arg17[%28, %c0_26] : memref<64x128xf32, #tpu.memory_space<vmem>>, vector<8x128xf32>
    %cst_27 = arith.constant dense<0.000000e+00> : vector<8x128xf32>
    %30 = tpu.matmul %17, %14, %cst_27 {dimension_numbers = #tpu.dot_dimension_numbers<[1], [0], [0], [1], [0, 0, 1, 1], [], []>} : vector<8x32xf32>, vector<32x128xf32>, vector<8x128xf32> -> vector<8x128xf32>
    %31 = arith.addf %29, %30 : vector<8x128xf32>
    %32 = vector.extract_strided_slice %27 {offsets = [0, 0], sizes = [8, 32], strides = [1, 1]} : vector<8x128xf32> to vector<8x32xf32>
    %33 = arith.negf %32 : vector<8x32xf32>
    %34 = math.exp %33 : vector<8x32xf32>
    %cst_28 = arith.constant 1.000000e+00 : f32
    %35 = vector.broadcast %cst_28 : f32 to vector<8x32xf32>
    %36 = arith.addf %35, %34 : vector<8x32xf32>
    %37 = arith.divf %35, %36 : vector<8x32xf32>
    %38 = vector.extract_strided_slice %27 {offsets = [0, 32], sizes = [8, 32], strides = [1, 1]} : vector<8x128xf32> to vector<8x32xf32>
    %39 = arith.negf %38 : vector<8x32xf32>
    %40 = math.exp %39 : vector<8x32xf32>
    %cst_29 = arith.constant 1.000000e+00 : f32
    %41 = vector.broadcast %cst_29 : f32 to vector<8x32xf32>
    %42 = arith.addf %41, %40 : vector<8x32xf32>
    %43 = arith.divf %41, %42 : vector<8x32xf32>
    %44 = vector.extract_strided_slice %27 {offsets = [0, 64], sizes = [8, 32], strides = [1, 1]} : vector<8x128xf32> to vector<8x32xf32>
    %45 = math.tanh %44 : vector<8x32xf32>
    %46 = vector.extract_strided_slice %27 {offsets = [0, 96], sizes = [8, 32], strides = [1, 1]} : vector<8x128xf32> to vector<8x32xf32>
    %47 = arith.negf %46 : vector<8x32xf32>
    %48 = math.exp %47 : vector<8x32xf32>
    %cst_30 = arith.constant 1.000000e+00 : f32
    %49 = vector.broadcast %cst_30 : f32 to vector<8x32xf32>
    %50 = arith.addf %49, %48 : vector<8x32xf32>
    %51 = arith.divf %49, %50 : vector<8x32xf32>
    %52 = arith.mulf %43, %16 : vector<8x32xf32>
    %53 = arith.mulf %37, %45 : vector<8x32xf32>
    %54 = arith.addf %52, %53 : vector<8x32xf32>
    %55 = math.tanh %54 : vector<8x32xf32>
    %56 = arith.mulf %51, %55 : vector<8x32xf32>
    %57 = vector.extract_strided_slice %31 {offsets = [0, 0], sizes = [8, 32], strides = [1, 1]} : vector<8x128xf32> to vector<8x32xf32>
    %58 = arith.negf %57 : vector<8x32xf32>
    %59 = math.exp %58 : vector<8x32xf32>
    %cst_31 = arith.constant 1.000000e+00 : f32
    %60 = vector.broadcast %cst_31 : f32 to vector<8x32xf32>
    %61 = arith.addf %60, %59 : vector<8x32xf32>
    %62 = arith.divf %60, %61 : vector<8x32xf32>
    %63 = vector.extract_strided_slice %31 {offsets = [0, 32], sizes = [8, 32], strides = [1, 1]} : vector<8x128xf32> to vector<8x32xf32>
    %64 = arith.negf %63 : vector<8x32xf32>
    %65 = math.exp %64 : vector<8x32xf32>
    %cst_32 = arith.constant 1.000000e+00 : f32
    %66 = vector.broadcast %cst_32 : f32 to vector<8x32xf32>
    %67 = arith.addf %66, %65 : vector<8x32xf32>
    %68 = arith.divf %66, %67 : vector<8x32xf32>
    %69 = vector.extract_strided_slice %31 {offsets = [0, 64], sizes = [8, 32], strides = [1, 1]} : vector<8x128xf32> to vector<8x32xf32>
    %70 = math.tanh %69 : vector<8x32xf32>
    %71 = vector.extract_strided_slice %31 {offsets = [0, 96], sizes = [8, 32], strides = [1, 1]} : vector<8x128xf32> to vector<8x32xf32>
    %72 = arith.negf %71 : vector<8x32xf32>
    %73 = math.exp %72 : vector<8x32xf32>
    %cst_33 = arith.constant 1.000000e+00 : f32
    %74 = vector.broadcast %cst_33 : f32 to vector<8x32xf32>
    %75 = arith.addf %74, %73 : vector<8x32xf32>
    %76 = arith.divf %74, %75 : vector<8x32xf32>
    %77 = arith.mulf %68, %18 : vector<8x32xf32>
    %78 = arith.mulf %62, %70 : vector<8x32xf32>
    %79 = arith.addf %77, %78 : vector<8x32xf32>
    %80 = math.tanh %79 : vector<8x32xf32>
    %81 = arith.mulf %76, %80 : vector<8x32xf32>
    %82 = arith.index_cast %c0_i32 : i32 to index
    %c0_34 = arith.constant 0 : index
    %c0_35 = arith.constant 0 : index
    %83 = vector.load %arg10[%82, %c0_34, %c0_35] : memref<8x8x32xf32, #tpu.memory_space<vmem>>, vector<1x8x32xf32>
    %84 = vector.shape_cast %83 : vector<1x8x32xf32> to vector<8x32xf32>
    %85 = vector.shape_cast %56 : vector<8x32xf32> to vector<1x8x32xf32>
    tpu.vector_store %arg10[%82, %c0_34, %c0_35], %85 {strides = array<i32>} : memref<8x8x32xf32, #tpu.memory_space<vmem>>, vector<1x8x32xf32>,
    %86 = arith.index_cast %19 : i32 to index
    %c0_36 = arith.constant 0 : index
    %c0_37 = arith.constant 0 : index
    %87 = vector.load %arg11[%86, %c0_36, %c0_37] : memref<8x8x32xf32, #tpu.memory_space<vmem>>, vector<1x8x32xf32>
    %88 = vector.shape_cast %87 : vector<1x8x32xf32> to vector<8x32xf32>
    %89 = vector.shape_cast %81 : vector<8x32xf32> to vector<1x8x32xf32>
    tpu.vector_store %arg11[%86, %c0_36, %c0_37], %89 {strides = array<i32>} : memref<8x8x32xf32, #tpu.memory_space<vmem>>, vector<1x8x32xf32>,
    %c1_i32 = arith.constant 1 : i32
    %c7_i32_38 = arith.constant 7 : i32
    %90 = arith.subi %c7_i32_38, %c1_i32 : i32
    %c8_i32_39 = arith.constant 8 : i32
    %91 = arith.muli %c1_i32, %c8_i32_39 : i32
    %92 = tpu.assume_multiple %91, 8 : i32
    %c8_i32_40 = arith.constant 8 : i32
    %93 = arith.muli %90, %c8_i32_40 : i32
    %94 = tpu.assume_multiple %93, 8 : i32
    %95 = arith.index_cast %92 : i32 to index
    %c0_41 = arith.constant 0 : index
    %96 = vector.load %arg16[%95, %c0_41] : memref<64x128xf32, #tpu.memory_space<vmem>>, vector<8x128xf32>
    %cst_42 = arith.constant dense<0.000000e+00> : vector<8x128xf32>
    %97 = tpu.matmul %56, %13, %cst_42 {dimension_numbers = #tpu.dot_dimension_numbers<[1], [0], [0], [1], [0, 0, 1, 1], [], []>} : vector<8x32xf32>, vector<32x128xf32>, vector<8x128xf32> -> vector<8x128xf32>
    %98 = arith.addf %96, %97 : vector<8x128xf32>
    %99 = arith.index_cast %94 : i32 to index
    %c0_43 = arith.constant 0 : index
    %100 = vector.load %arg17[%99, %c0_43] : memref<64x128xf32, #tpu.memory_space<vmem>>, vector<8x128xf32>
    %cst_44 = arith.constant dense<0.000000e+00> : vector<8x128xf32>
    %101 = tpu.matmul %81, %14, %cst_44 {dimension_numbers = #tpu.dot_dimension_numbers<[1], [0], [0], [1], [0, 0, 1, 1], [], []>} : vector<8x32xf32>, vector<32x128xf32>, vector<8x128xf32> -> vector<8x128xf32>
    %102 = arith.addf %100, %101 : vector<8x128xf32>
    %103 = vector.extract_strided_slice %98 {offsets = [0, 0], sizes = [8, 32], strides = [1, 1]} : vector<8x128xf32> to vector<8x32xf32>
    %104 = arith.negf %103 : vector<8x32xf32>
    %105 = math.exp %104 : vector<8x32xf32>
    %cst_45 = arith.constant 1.000000e+00 : f32
    %106 = vector.broadcast %cst_45 : f32 to vector<8x32xf32>
    %107 = arith.addf %106, %105 : vector<8x32xf32>
    %108 = arith.divf %106, %107 : vector<8x32xf32>
    %109 = vector.extract_strided_slice %98 {offsets = [0, 32], sizes = [8, 32], strides = [1, 1]} : vector<8x128xf32> to vector<8x32xf32>
    %110 = arith.negf %109 : vector<8x32xf32>
    %111 = math.exp %110 : vector<8x32xf32>
    %cst_46 = arith.constant 1.000000e+00 : f32
    %112 = vector.broadcast %cst_46 : f32 to vector<8x32xf32>
    %113 = arith.addf %112, %111 : vector<8x32xf32>
    %114 = arith.divf %112, %113 : vector<8x32xf32>
    %115 = vector.extract_strided_slice %98 {offsets = [0, 64], sizes = [8, 32], strides = [1, 1]} : vector<8x128xf32> to vector<8x32xf32>
    %116 = math.tanh %115 : vector<8x32xf32>
    %117 = vector.extract_strided_slice %98 {offsets = [0, 96], sizes = [8, 32], strides = [1, 1]} : vector<8x128xf32> to vector<8x32xf32>
    %118 = arith.negf %117 : vector<8x32xf32>
    %119 = math.exp %118 : vector<8x32xf32>
    %cst_47 = arith.constant 1.000000e+00 : f32
    %120 = vector.broadcast %cst_47 : f32 to vector<8x32xf32>
    %121 = arith.addf %120, %119 : vector<8x32xf32>
    %122 = arith.divf %120, %121 : vector<8x32xf32>
    %123 = arith.mulf %114, %54 : vector<8x32xf32>
    %124 = arith.mulf %108, %116 : vector<8x32xf32>
    %125 = arith.addf %123, %124 : vector<8x32xf32>
    %126 = math.tanh %125 : vector<8x32xf32>
    %127 = arith.mulf %122, %126 : vector<8x32xf32>
    %128 = vector.extract_strided_slice %102 {offsets = [0, 0], sizes = [8, 32], strides = [1, 1]} : vector<8x128xf32> to vector<8x32xf32>
    %129 = arith.negf %128 : vector<8x32xf32>
    %130 = math.exp %129 : vector<8x32xf32>
    %cst_48 = arith.constant 1.000000e+00 : f32
    %131 = vector.broadcast %cst_48 : f32 to vector<8x32xf32>
    %132 = arith.addf %131, %130 : vector<8x32xf32>
    %133 = arith.divf %131, %132 : vector<8x32xf32>
    %134 = vector.extract_strided_slice %102 {offsets = [0, 32], sizes = [8, 32], strides = [1, 1]} : vector<8x128xf32> to vector<8x32xf32>
    %135 = arith.negf %134 : vector<8x32xf32>
    %136 = math.exp %135 : vector<8x32xf32>
    %cst_49 = arith.constant 1.000000e+00 : f32
    %137 = vector.broadcast %cst_49 : f32 to vector<8x32xf32>
    %138 = arith.addf %137, %136 : vector<8x32xf32>
    %139 = arith.divf %137, %138 : vector<8x32xf32>
    %140 = vector.extract_strided_slice %102 {offsets = [0, 64], sizes = [8, 32], strides = [1, 1]} : vector<8x128xf32> to vector<8x32xf32>
    %141 = math.tanh %140 : vector<8x32xf32>
    %142 = vector.extract_strided_slice %102 {offsets = [0, 96], sizes = [8, 32], strides = [1, 1]} : vector<8x128xf32> to vector<8x32xf32>
    %143 = arith.negf %142 : vector<8x32xf32>
    %144 = math.exp %143 : vector<8x32xf32>
    %cst_50 = arith.constant 1.000000e+00 : f32
    %145 = vector.broadcast %cst_50 : f32 to vector<8x32xf32>
    %146 = arith.addf %145, %144 : vector<8x32xf32>
    %147 = arith.divf %145, %146 : vector<8x32xf32>
    %148 = arith.mulf %139, %79 : vector<8x32xf32>
    %149 = arith.mulf %133, %141 : vector<8x32xf32>
    %150 = arith.addf %148, %149 : vector<8x32xf32>
    %151 = math.tanh %150 : vector<8x32xf32>
    %152 = arith.mulf %147, %151 : vector<8x32xf32>
    %153 = arith.index_cast %c1_i32 : i32 to index
    %c0_51 = arith.constant 0 : index
    %c0_52 = arith.constant 0 : index
    %154 = vector.load %arg10[%153, %c0_51, %c0_52] : memref<8x8x32xf32, #tpu.memory_space<vmem>>, vector<1x8x32xf32>
    %155 = vector.shape_cast %154 : vector<1x8x32xf32> to vector<8x32xf32>
    %156 = vector.shape_cast %127 : vector<8x32xf32> to vector<1x8x32xf32>
    tpu.vector_store %arg10[%153, %c0_51, %c0_52], %156 {strides = array<i32>} : memref<8x8x32xf32, #tpu.memory_space<vmem>>, vector<1x8x32xf32>,
    %157 = arith.index_cast %90 : i32 to index
    %c0_53 = arith.constant 0 : index
    %c0_54 = arith.constant 0 : index
    %158 = vector.load %arg11[%157, %c0_53, %c0_54] : memref<8x8x32xf32, #tpu.memory_space<vmem>>, vector<1x8x32xf32>
    %159 = vector.shape_cast %158 : vector<1x8x32xf32> to vector<8x32xf32>
    %160 = vector.shape_cast %152 : vector<8x32xf32> to vector<1x8x32xf32>
    tpu.vector_store %arg11[%157, %c0_53, %c0_54], %160 {strides = array<i32>} : memref<8x8x32xf32, #tpu.memory_space<vmem>>, vector<1x8x32xf32>,
    %c2_i32 = arith.constant 2 : i32
    %c7_i32_55 = arith.constant 7 : i32
    %161 = arith.subi %c7_i32_55, %c2_i32 : i32
    %c8_i32_56 = arith.constant 8 : i32
    %162 = arith.muli %c2_i32, %c8_i32_56 : i32
    %163 = tpu.assume_multiple %162, 8 : i32
    %c8_i32_57 = arith.constant 8 : i32
    %164 = arith.muli %161, %c8_i32_57 : i32
    %165 = tpu.assume_multiple %164, 8 : i32
    %166 = arith.index_cast %163 : i32 to index
    %c0_58 = arith.constant 0 : index
    %167 = vector.load %arg16[%166, %c0_58] : memref<64x128xf32, #tpu.memory_space<vmem>>, vector<8x128xf32>
    %cst_59 = arith.constant dense<0.000000e+00> : vector<8x128xf32>
    %168 = tpu.matmul %127, %13, %cst_59 {dimension_numbers = #tpu.dot_dimension_numbers<[1], [0], [0], [1], [0, 0, 1, 1], [], []>} : vector<8x32xf32>, vector<32x128xf32>, vector<8x128xf32> -> vector<8x128xf32>
    %169 = arith.addf %167, %168 : vector<8x128xf32>
    %170 = arith.index_cast %165 : i32 to index
    %c0_60 = arith.constant 0 : index
    %171 = vector.load %arg17[%170, %c0_60] : memref<64x128xf32, #tpu.memory_space<vmem>>, vector<8x128xf32>
    %cst_61 = arith.constant dense<0.000000e+00> : vector<8x128xf32>
    %172 = tpu.matmul %152, %14, %cst_61 {dimension_numbers = #tpu.dot_dimension_numbers<[1], [0], [0], [1], [0, 0, 1, 1], [], []>} : vector<8x32xf32>, vector<32x128xf32>, vector<8x128xf32> -> vector<8x128xf32>
    %173 = arith.addf %171, %172 : vector<8x128xf32>
    %174 = vector.extract_strided_slice %169 {offsets = [0, 0], sizes = [8, 32], strides = [1, 1]} : vector<8x128xf32> to vector<8x32xf32>
    %175 = arith.negf %174 : vector<8x32xf32>
    %176 = math.exp %175 : vector<8x32xf32>
    %cst_62 = arith.constant 1.000000e+00 : f32
    %177 = vector.broadcast %cst_62 : f32 to vector<8x32xf32>
    %178 = arith.addf %177, %176 : vector<8x32xf32>
    %179 = arith.divf %177, %178 : vector<8x32xf32>
    %180 = vector.extract_strided_slice %169 {offsets = [0, 32], sizes = [8, 32], strides = [1, 1]} : vector<8x128xf32> to vector<8x32xf32>
    %181 = arith.negf %180 : vector<8x32xf32>
    %182 = math.exp %181 : vector<8x32xf32>
    %cst_63 = arith.constant 1.000000e+00 : f32
    %183 = vector.broadcast %cst_63 : f32 to vector<8x32xf32>
    %184 = arith.addf %183, %182 : vector<8x32xf32>
    %185 = arith.divf %183, %184 : vector<8x32xf32>
    %186 = vector.extract_strided_slice %169 {offsets = [0, 64], sizes = [8, 32], strides = [1, 1]} : vector<8x128xf32> to vector<8x32xf32>
    %187 = math.tanh %186 : vector<8x32xf32>
    %188 = vector.extract_strided_slice %169 {offsets = [0, 96], sizes = [8, 32], strides = [1, 1]} : vector<8x128xf32> to vector<8x32xf32>
    %189 = arith.negf %188 : vector<8x32xf32>
    %190 = math.exp %189 : vector<8x32xf32>
    %cst_64 = arith.constant 1.000000e+00 : f32
    %191 = vector.broadcast %cst_64 : f32 to vector<8x32xf32>
    %192 = arith.addf %191, %190 : vector<8x32xf32>
    %193 = arith.divf %191, %192 : vector<8x32xf32>
    %194 = arith.mulf %185, %125 : vector<8x32xf32>
    %195 = arith.mulf %179, %187 : vector<8x32xf32>
    %196 = arith.addf %194, %195 : vector<8x32xf32>
    %197 = math.tanh %196 : vector<8x32xf32>
    %198 = arith.mulf %193, %197 : vector<8x32xf32>
    %199 = vector.extract_strided_slice %173 {offsets = [0, 0], sizes = [8, 32], strides = [1, 1]} : vector<8x128xf32> to vector<8x32xf32>
    %200 = arith.negf %199 : vector<8x32xf32>
    %201 = math.exp %200 : vector<8x32xf32>
    %cst_65 = arith.constant 1.000000e+00 : f32
    %202 = vector.broadcast %cst_65 : f32 to vector<8x32xf32>
    %203 = arith.addf %202, %201 : vector<8x32xf32>
    %204 = arith.divf %202, %203 : vector<8x32xf32>
    %205 = vector.extract_strided_slice %173 {offsets = [0, 32], sizes = [8, 32], strides = [1, 1]} : vector<8x128xf32> to vector<8x32xf32>
    %206 = arith.negf %205 : vector<8x32xf32>
    %207 = math.exp %206 : vector<8x32xf32>
    %cst_66 = arith.constant 1.000000e+00 : f32
    %208 = vector.broadcast %cst_66 : f32 to vector<8x32xf32>
    %209 = arith.addf %208, %207 : vector<8x32xf32>
    %210 = arith.divf %208, %209 : vector<8x32xf32>
    %211 = vector.extract_strided_slice %173 {offsets = [0, 64], sizes = [8, 32], strides = [1, 1]} : vector<8x128xf32> to vector<8x32xf32>
    %212 = math.tanh %211 : vector<8x32xf32>
    %213 = vector.extract_strided_slice %173 {offsets = [0, 96], sizes = [8, 32], strides = [1, 1]} : vector<8x128xf32> to vector<8x32xf32>
    %214 = arith.negf %213 : vector<8x32xf32>
    %215 = math.exp %214 : vector<8x32xf32>
    %cst_67 = arith.constant 1.000000e+00 : f32
    %216 = vector.broadcast %cst_67 : f32 to vector<8x32xf32>
    %217 = arith.addf %216, %215 : vector<8x32xf32>
    %218 = arith.divf %216, %217 : vector<8x32xf32>
    %219 = arith.mulf %210, %150 : vector<8x32xf32>
    %220 = arith.mulf %204, %212 : vector<8x32xf32>
    %221 = arith.addf %219, %220 : vector<8x32xf32>
    %222 = math.tanh %221 : vector<8x32xf32>
    %223 = arith.mulf %218, %222 : vector<8x32xf32>
    %224 = arith.index_cast %c2_i32 : i32 to index
    %c0_68 = arith.constant 0 : index
    %c0_69 = arith.constant 0 : index
    %225 = vector.load %arg10[%224, %c0_68, %c0_69] : memref<8x8x32xf32, #tpu.memory_space<vmem>>, vector<1x8x32xf32>
    %226 = vector.shape_cast %225 : vector<1x8x32xf32> to vector<8x32xf32>
    %227 = vector.shape_cast %198 : vector<8x32xf32> to vector<1x8x32xf32>
    tpu.vector_store %arg10[%224, %c0_68, %c0_69], %227 {strides = array<i32>} : memref<8x8x32xf32, #tpu.memory_space<vmem>>, vector<1x8x32xf32>,
    %228 = arith.index_cast %161 : i32 to index
    %c0_70 = arith.constant 0 : index
    %c0_71 = arith.constant 0 : index
    %229 = vector.load %arg11[%228, %c0_70, %c0_71] : memref<8x8x32xf32, #tpu.memory_space<vmem>>, vector<1x8x32xf32>
    %230 = vector.shape_cast %229 : vector<1x8x32xf32> to vector<8x32xf32>
    %231 = vector.shape_cast %223 : vector<8x32xf32> to vector<1x8x32xf32>
    tpu.vector_store %arg11[%228, %c0_70, %c0_71], %231 {strides = array<i32>} : memref<8x8x32xf32, #tpu.memory_space<vmem>>, vector<1x8x32xf32>,
    %c3_i32 = arith.constant 3 : i32
    %c7_i32_72 = arith.constant 7 : i32
    %232 = arith.subi %c7_i32_72, %c3_i32 : i32
    %c8_i32_73 = arith.constant 8 : i32
    %233 = arith.muli %c3_i32, %c8_i32_73 : i32
    %234 = tpu.assume_multiple %233, 8 : i32
    %c8_i32_74 = arith.constant 8 : i32
    %235 = arith.muli %232, %c8_i32_74 : i32
    %236 = tpu.assume_multiple %235, 8 : i32
    %237 = arith.index_cast %234 : i32 to index
    %c0_75 = arith.constant 0 : index
    %238 = vector.load %arg16[%237, %c0_75] : memref<64x128xf32, #tpu.memory_space<vmem>>, vector<8x128xf32>
    %cst_76 = arith.constant dense<0.000000e+00> : vector<8x128xf32>
    %239 = tpu.matmul %198, %13, %cst_76 {dimension_numbers = #tpu.dot_dimension_numbers<[1], [0], [0], [1], [0, 0, 1, 1], [], []>} : vector<8x32xf32>, vector<32x128xf32>, vector<8x128xf32> -> vector<8x128xf32>
    %240 = arith.addf %238, %239 : vector<8x128xf32>
    %241 = arith.index_cast %236 : i32 to index
    %c0_77 = arith.constant 0 : index
    %242 = vector.load %arg17[%241, %c0_77] : memref<64x128xf32, #tpu.memory_space<vmem>>, vector<8x128xf32>
    %cst_78 = arith.constant dense<0.000000e+00> : vector<8x128xf32>
    %243 = tpu.matmul %223, %14, %cst_78 {dimension_numbers = #tpu.dot_dimension_numbers<[1], [0], [0], [1], [0, 0, 1, 1], [], []>} : vector<8x32xf32>, vector<32x128xf32>, vector<8x128xf32> -> vector<8x128xf32>
    %244 = arith.addf %242, %243 : vector<8x128xf32>
    %245 = vector.extract_strided_slice %240 {offsets = [0, 0], sizes = [8, 32], strides = [1, 1]} : vector<8x128xf32> to vector<8x32xf32>
    %246 = arith.negf %245 : vector<8x32xf32>
    %247 = math.exp %246 : vector<8x32xf32>
    %cst_79 = arith.constant 1.000000e+00 : f32
    %248 = vector.broadcast %cst_79 : f32 to vector<8x32xf32>
    %249 = arith.addf %248, %247 : vector<8x32xf32>
    %250 = arith.divf %248, %249 : vector<8x32xf32>
    %251 = vector.extract_strided_slice %240 {offsets = [0, 32], sizes = [8, 32], strides = [1, 1]} : vector<8x128xf32> to vector<8x32xf32>
    %252 = arith.negf %251 : vector<8x32xf32>
    %253 = math.exp %252 : vector<8x32xf32>
    %cst_80 = arith.constant 1.000000e+00 : f32
    %254 = vector.broadcast %cst_80 : f32 to vector<8x32xf32>
    %255 = arith.addf %254, %253 : vector<8x32xf32>
    %256 = arith.divf %254, %255 : vector<8x32xf32>
    %257 = vector.extract_strided_slice %240 {offsets = [0, 64], sizes = [8, 32], strides = [1, 1]} : vector<8x128xf32> to vector<8x32xf32>
    %258 = math.tanh %257 : vector<8x32xf32>
    %259 = vector.extract_strided_slice %240 {offsets = [0, 96], sizes = [8, 32], strides = [1, 1]} : vector<8x128xf32> to vector<8x32xf32>
    %260 = arith.negf %259 : vector<8x32xf32>
    %261 = math.exp %260 : vector<8x32xf32>
    %cst_81 = arith.constant 1.000000e+00 : f32
    %262 = vector.broadcast %cst_81 : f32 to vector<8x32xf32>
    %263 = arith.addf %262, %261 : vector<8x32xf32>
    %264 = arith.divf %262, %263 : vector<8x32xf32>
    %265 = arith.mulf %256, %196 : vector<8x32xf32>
    %266 = arith.mulf %250, %258 : vector<8x32xf32>
    %267 = arith.addf %265, %266 : vector<8x32xf32>
    %268 = math.tanh %267 : vector<8x32xf32>
    %269 = arith.mulf %264, %268 : vector<8x32xf32>
    %270 = vector.extract_strided_slice %244 {offsets = [0, 0], sizes = [8, 32], strides = [1, 1]} : vector<8x128xf32> to vector<8x32xf32>
    %271 = arith.negf %270 : vector<8x32xf32>
    %272 = math.exp %271 : vector<8x32xf32>
    %cst_82 = arith.constant 1.000000e+00 : f32
    %273 = vector.broadcast %cst_82 : f32 to vector<8x32xf32>
    %274 = arith.addf %273, %272 : vector<8x32xf32>
    %275 = arith.divf %273, %274 : vector<8x32xf32>
    %276 = vector.extract_strided_slice %244 {offsets = [0, 32], sizes = [8, 32], strides = [1, 1]} : vector<8x128xf32> to vector<8x32xf32>
    %277 = arith.negf %276 : vector<8x32xf32>
    %278 = math.exp %277 : vector<8x32xf32>
    %cst_83 = arith.constant 1.000000e+00 : f32
    %279 = vector.broadcast %cst_83 : f32 to vector<8x32xf32>
    %280 = arith.addf %279, %278 : vector<8x32xf32>
    %281 = arith.divf %279, %280 : vector<8x32xf32>
    %282 = vector.extract_strided_slice %244 {offsets = [0, 64], sizes = [8, 32], strides = [1, 1]} : vector<8x128xf32> to vector<8x32xf32>
    %283 = math.tanh %282 : vector<8x32xf32>
    %284 = vector.extract_strided_slice %244 {offsets = [0, 96], sizes = [8, 32], strides = [1, 1]} : vector<8x128xf32> to vector<8x32xf32>
    %285 = arith.negf %284 : vector<8x32xf32>
    %286 = math.exp %285 : vector<8x32xf32>
    %cst_84 = arith.constant 1.000000e+00 : f32
    %287 = vector.broadcast %cst_84 : f32 to vector<8x32xf32>
    %288 = arith.addf %287, %286 : vector<8x32xf32>
    %289 = arith.divf %287, %288 : vector<8x32xf32>
    %290 = arith.mulf %281, %221 : vector<8x32xf32>
    %291 = arith.mulf %275, %283 : vector<8x32xf32>
    %292 = arith.addf %290, %291 : vector<8x32xf32>
    %293 = math.tanh %292 : vector<8x32xf32>
    %294 = arith.mulf %289, %293 : vector<8x32xf32>
    %295 = arith.index_cast %c3_i32 : i32 to index
    %c0_85 = arith.constant 0 : index
    %c0_86 = arith.constant 0 : index
    %296 = vector.load %arg10[%295, %c0_85, %c0_86] : memref<8x8x32xf32, #tpu.memory_space<vmem>>, vector<1x8x32xf32>
    %297 = vector.shape_cast %296 : vector<1x8x32xf32> to vector<8x32xf32>
    %298 = vector.shape_cast %269 : vector<8x32xf32> to vector<1x8x32xf32>
    tpu.vector_store %arg10[%295, %c0_85, %c0_86], %298 {strides = array<i32>} : memref<8x8x32xf32, #tpu.memory_space<vmem>>, vector<1x8x32xf32>,
    %299 = arith.index_cast %232 : i32 to index
    %c0_87 = arith.constant 0 : index
    %c0_88 = arith.constant 0 : index
    %300 = vector.load %arg11[%299, %c0_87, %c0_88] : memref<8x8x32xf32, #tpu.memory_space<vmem>>, vector<1x8x32xf32>
    %301 = vector.shape_cast %300 : vector<1x8x32xf32> to vector<8x32xf32>
    %302 = vector.shape_cast %294 : vector<8x32xf32> to vector<1x8x32xf32>
    tpu.vector_store %arg11[%299, %c0_87, %c0_88], %302 {strides = array<i32>} : memref<8x8x32xf32, #tpu.memory_space<vmem>>, vector<1x8x32xf32>,
    %c4_i32 = arith.constant 4 : i32
    %c7_i32_89 = arith.constant 7 : i32
    %303 = arith.subi %c7_i32_89, %c4_i32 : i32
    %c8_i32_90 = arith.constant 8 : i32
    %304 = arith.muli %c4_i32, %c8_i32_90 : i32
    %305 = tpu.assume_multiple %304, 8 : i32
    %c8_i32_91 = arith.constant 8 : i32
    %306 = arith.muli %303, %c8_i32_91 : i32
    %307 = tpu.assume_multiple %306, 8 : i32
    %308 = arith.index_cast %305 : i32 to index
    %c0_92 = arith.constant 0 : index
    %309 = vector.load %arg16[%308, %c0_92] : memref<64x128xf32, #tpu.memory_space<vmem>>, vector<8x128xf32>
    %cst_93 = arith.constant dense<0.000000e+00> : vector<8x128xf32>
    %310 = tpu.matmul %269, %13, %cst_93 {dimension_numbers = #tpu.dot_dimension_numbers<[1], [0], [0], [1], [0, 0, 1, 1], [], []>} : vector<8x32xf32>, vector<32x128xf32>, vector<8x128xf32> -> vector<8x128xf32>
    %311 = arith.addf %309, %310 : vector<8x128xf32>
    %312 = arith.index_cast %307 : i32 to index
    %c0_94 = arith.constant 0 : index
    %313 = vector.load %arg17[%312, %c0_94] : memref<64x128xf32, #tpu.memory_space<vmem>>, vector<8x128xf32>
    %cst_95 = arith.constant dense<0.000000e+00> : vector<8x128xf32>
    %314 = tpu.matmul %294, %14, %cst_95 {dimension_numbers = #tpu.dot_dimension_numbers<[1], [0], [0], [1], [0, 0, 1, 1], [], []>} : vector<8x32xf32>, vector<32x128xf32>, vector<8x128xf32> -> vector<8x128xf32>
    %315 = arith.addf %313, %314 : vector<8x128xf32>
    %316 = vector.extract_strided_slice %311 {offsets = [0, 0], sizes = [8, 32], strides = [1, 1]} : vector<8x128xf32> to vector<8x32xf32>
    %317 = arith.negf %316 : vector<8x32xf32>
    %318 = math.exp %317 : vector<8x32xf32>
    %cst_96 = arith.constant 1.000000e+00 : f32
    %319 = vector.broadcast %cst_96 : f32 to vector<8x32xf32>
    %320 = arith.addf %319, %318 : vector<8x32xf32>
    %321 = arith.divf %319, %320 : vector<8x32xf32>
    %322 = vector.extract_strided_slice %311 {offsets = [0, 32], sizes = [8, 32], strides = [1, 1]} : vector<8x128xf32> to vector<8x32xf32>
    %323 = arith.negf %322 : vector<8x32xf32>
    %324 = math.exp %323 : vector<8x32xf32>
    %cst_97 = arith.constant 1.000000e+00 : f32
    %325 = vector.broadcast %cst_97 : f32 to vector<8x32xf32>
    %326 = arith.addf %325, %324 : vector<8x32xf32>
    %327 = arith.divf %325, %326 : vector<8x32xf32>
    %328 = vector.extract_strided_slice %311 {offsets = [0, 64], sizes = [8, 32], strides = [1, 1]} : vector<8x128xf32> to vector<8x32xf32>
    %329 = math.tanh %328 : vector<8x32xf32>
    %330 = vector.extract_strided_slice %311 {offsets = [0, 96], sizes = [8, 32], strides = [1, 1]} : vector<8x128xf32> to vector<8x32xf32>
    %331 = arith.negf %330 : vector<8x32xf32>
    %332 = math.exp %331 : vector<8x32xf32>
    %cst_98 = arith.constant 1.000000e+00 : f32
    %333 = vector.broadcast %cst_98 : f32 to vector<8x32xf32>
    %334 = arith.addf %333, %332 : vector<8x32xf32>
    %335 = arith.divf %333, %334 : vector<8x32xf32>
    %336 = arith.mulf %327, %267 : vector<8x32xf32>
    %337 = arith.mulf %321, %329 : vector<8x32xf32>
    %338 = arith.addf %336, %337 : vector<8x32xf32>
    %339 = math.tanh %338 : vector<8x32xf32>
    %340 = arith.mulf %335, %339 : vector<8x32xf32>
    %341 = vector.extract_strided_slice %315 {offsets = [0, 0], sizes = [8, 32], strides = [1, 1]} : vector<8x128xf32> to vector<8x32xf32>
    %342 = arith.negf %341 : vector<8x32xf32>
    %343 = math.exp %342 : vector<8x32xf32>
    %cst_99 = arith.constant 1.000000e+00 : f32
    %344 = vector.broadcast %cst_99 : f32 to vector<8x32xf32>
    %345 = arith.addf %344, %343 : vector<8x32xf32>
    %346 = arith.divf %344, %345 : vector<8x32xf32>
    %347 = vector.extract_strided_slice %315 {offsets = [0, 32], sizes = [8, 32], strides = [1, 1]} : vector<8x128xf32> to vector<8x32xf32>
    %348 = arith.negf %347 : vector<8x32xf32>
    %349 = math.exp %348 : vector<8x32xf32>
    %cst_100 = arith.constant 1.000000e+00 : f32
    %350 = vector.broadcast %cst_100 : f32 to vector<8x32xf32>
    %351 = arith.addf %350, %349 : vector<8x32xf32>
    %352 = arith.divf %350, %351 : vector<8x32xf32>
    %353 = vector.extract_strided_slice %315 {offsets = [0, 64], sizes = [8, 32], strides = [1, 1]} : vector<8x128xf32> to vector<8x32xf32>
    %354 = math.tanh %353 : vector<8x32xf32>
    %355 = vector.extract_strided_slice %315 {offsets = [0, 96], sizes = [8, 32], strides = [1, 1]} : vector<8x128xf32> to vector<8x32xf32>
    %356 = arith.negf %355 : vector<8x32xf32>
    %357 = math.exp %356 : vector<8x32xf32>
    %cst_101 = arith.constant 1.000000e+00 : f32
    %358 = vector.broadcast %cst_101 : f32 to vector<8x32xf32>
    %359 = arith.addf %358, %357 : vector<8x32xf32>
    %360 = arith.divf %358, %359 : vector<8x32xf32>
    %361 = arith.mulf %352, %292 : vector<8x32xf32>
    %362 = arith.mulf %346, %354 : vector<8x32xf32>
    %363 = arith.addf %361, %362 : vector<8x32xf32>
    %364 = math.tanh %363 : vector<8x32xf32>
    %365 = arith.mulf %360, %364 : vector<8x32xf32>
    %366 = arith.index_cast %c4_i32 : i32 to index
    %c0_102 = arith.constant 0 : index
    %c0_103 = arith.constant 0 : index
    %367 = vector.load %arg10[%366, %c0_102, %c0_103] : memref<8x8x32xf32, #tpu.memory_space<vmem>>, vector<1x8x32xf32>
    %368 = vector.shape_cast %367 : vector<1x8x32xf32> to vector<8x32xf32>
    %369 = vector.shape_cast %340 : vector<8x32xf32> to vector<1x8x32xf32>
    tpu.vector_store %arg10[%366, %c0_102, %c0_103], %369 {strides = array<i32>} : memref<8x8x32xf32, #tpu.memory_space<vmem>>, vector<1x8x32xf32>,
    %370 = arith.index_cast %303 : i32 to index
    %c0_104 = arith.constant 0 : index
    %c0_105 = arith.constant 0 : index
    %371 = vector.load %arg11[%370, %c0_104, %c0_105] : memref<8x8x32xf32, #tpu.memory_space<vmem>>, vector<1x8x32xf32>
    %372 = vector.shape_cast %371 : vector<1x8x32xf32> to vector<8x32xf32>
    %373 = vector.shape_cast %365 : vector<8x32xf32> to vector<1x8x32xf32>
    tpu.vector_store %arg11[%370, %c0_104, %c0_105], %373 {strides = array<i32>} : memref<8x8x32xf32, #tpu.memory_space<vmem>>, vector<1x8x32xf32>,
    %c5_i32 = arith.constant 5 : i32
    %c7_i32_106 = arith.constant 7 : i32
    %374 = arith.subi %c7_i32_106, %c5_i32 : i32
    %c8_i32_107 = arith.constant 8 : i32
    %375 = arith.muli %c5_i32, %c8_i32_107 : i32
    %376 = tpu.assume_multiple %375, 8 : i32
    %c8_i32_108 = arith.constant 8 : i32
    %377 = arith.muli %374, %c8_i32_108 : i32
    %378 = tpu.assume_multiple %377, 8 : i32
    %379 = arith.index_cast %376 : i32 to index
    %c0_109 = arith.constant 0 : index
    %380 = vector.load %arg16[%379, %c0_109] : memref<64x128xf32, #tpu.memory_space<vmem>>, vector<8x128xf32>
    %cst_110 = arith.constant dense<0.000000e+00> : vector<8x128xf32>
    %381 = tpu.matmul %340, %13, %cst_110 {dimension_numbers = #tpu.dot_dimension_numbers<[1], [0], [0], [1], [0, 0, 1, 1], [], []>} : vector<8x32xf32>, vector<32x128xf32>, vector<8x128xf32> -> vector<8x128xf32>
    %382 = arith.addf %380, %381 : vector<8x128xf32>
    %383 = arith.index_cast %378 : i32 to index
    %c0_111 = arith.constant 0 : index
    %384 = vector.load %arg17[%383, %c0_111] : memref<64x128xf32, #tpu.memory_space<vmem>>, vector<8x128xf32>
    %cst_112 = arith.constant dense<0.000000e+00> : vector<8x128xf32>
    %385 = tpu.matmul %365, %14, %cst_112 {dimension_numbers = #tpu.dot_dimension_numbers<[1], [0], [0], [1], [0, 0, 1, 1], [], []>} : vector<8x32xf32>, vector<32x128xf32>, vector<8x128xf32> -> vector<8x128xf32>
    %386 = arith.addf %384, %385 : vector<8x128xf32>
    %387 = vector.extract_strided_slice %382 {offsets = [0, 0], sizes = [8, 32], strides = [1, 1]} : vector<8x128xf32> to vector<8x32xf32>
    %388 = arith.negf %387 : vector<8x32xf32>
    %389 = math.exp %388 : vector<8x32xf32>
    %cst_113 = arith.constant 1.000000e+00 : f32
    %390 = vector.broadcast %cst_113 : f32 to vector<8x32xf32>
    %391 = arith.addf %390, %389 : vector<8x32xf32>
    %392 = arith.divf %390, %391 : vector<8x32xf32>
    %393 = vector.extract_strided_slice %382 {offsets = [0, 32], sizes = [8, 32], strides = [1, 1]} : vector<8x128xf32> to vector<8x32xf32>
    %394 = arith.negf %393 : vector<8x32xf32>
    %395 = math.exp %394 : vector<8x32xf32>
    %cst_114 = arith.constant 1.000000e+00 : f32
    %396 = vector.broadcast %cst_114 : f32 to vector<8x32xf32>
    %397 = arith.addf %396, %395 : vector<8x32xf32>
    %398 = arith.divf %396, %397 : vector<8x32xf32>
    %399 = vector.extract_strided_slice %382 {offsets = [0, 64], sizes = [8, 32], strides = [1, 1]} : vector<8x128xf32> to vector<8x32xf32>
    %400 = math.tanh %399 : vector<8x32xf32>
    %401 = vector.extract_strided_slice %382 {offsets = [0, 96], sizes = [8, 32], strides = [1, 1]} : vector<8x128xf32> to vector<8x32xf32>
    %402 = arith.negf %401 : vector<8x32xf32>
    %403 = math.exp %402 : vector<8x32xf32>
    %cst_115 = arith.constant 1.000000e+00 : f32
    %404 = vector.broadcast %cst_115 : f32 to vector<8x32xf32>
    %405 = arith.addf %404, %403 : vector<8x32xf32>
    %406 = arith.divf %404, %405 : vector<8x32xf32>
    %407 = arith.mulf %398, %338 : vector<8x32xf32>
    %408 = arith.mulf %392, %400 : vector<8x32xf32>
    %409 = arith.addf %407, %408 : vector<8x32xf32>
    %410 = math.tanh %409 : vector<8x32xf32>
    %411 = arith.mulf %406, %410 : vector<8x32xf32>
    %412 = vector.extract_strided_slice %386 {offsets = [0, 0], sizes = [8, 32], strides = [1, 1]} : vector<8x128xf32> to vector<8x32xf32>
    %413 = arith.negf %412 : vector<8x32xf32>
    %414 = math.exp %413 : vector<8x32xf32>
    %cst_116 = arith.constant 1.000000e+00 : f32
    %415 = vector.broadcast %cst_116 : f32 to vector<8x32xf32>
    %416 = arith.addf %415, %414 : vector<8x32xf32>
    %417 = arith.divf %415, %416 : vector<8x32xf32>
    %418 = vector.extract_strided_slice %386 {offsets = [0, 32], sizes = [8, 32], strides = [1, 1]} : vector<8x128xf32> to vector<8x32xf32>
    %419 = arith.negf %418 : vector<8x32xf32>
    %420 = math.exp %419 : vector<8x32xf32>
    %cst_117 = arith.constant 1.000000e+00 : f32
    %421 = vector.broadcast %cst_117 : f32 to vector<8x32xf32>
    %422 = arith.addf %421, %420 : vector<8x32xf32>
    %423 = arith.divf %421, %422 : vector<8x32xf32>
    %424 = vector.extract_strided_slice %386 {offsets = [0, 64], sizes = [8, 32], strides = [1, 1]} : vector<8x128xf32> to vector<8x32xf32>
    %425 = math.tanh %424 : vector<8x32xf32>
    %426 = vector.extract_strided_slice %386 {offsets = [0, 96], sizes = [8, 32], strides = [1, 1]} : vector<8x128xf32> to vector<8x32xf32>
    %427 = arith.negf %426 : vector<8x32xf32>
    %428 = math.exp %427 : vector<8x32xf32>
    %cst_118 = arith.constant 1.000000e+00 : f32
    %429 = vector.broadcast %cst_118 : f32 to vector<8x32xf32>
    %430 = arith.addf %429, %428 : vector<8x32xf32>
    %431 = arith.divf %429, %430 : vector<8x32xf32>
    %432 = arith.mulf %423, %363 : vector<8x32xf32>
    %433 = arith.mulf %417, %425 : vector<8x32xf32>
    %434 = arith.addf %432, %433 : vector<8x32xf32>
    %435 = math.tanh %434 : vector<8x32xf32>
    %436 = arith.mulf %431, %435 : vector<8x32xf32>
    %437 = arith.index_cast %c5_i32 : i32 to index
    %c0_119 = arith.constant 0 : index
    %c0_120 = arith.constant 0 : index
    %438 = vector.load %arg10[%437, %c0_119, %c0_120] : memref<8x8x32xf32, #tpu.memory_space<vmem>>, vector<1x8x32xf32>
    %439 = vector.shape_cast %438 : vector<1x8x32xf32> to vector<8x32xf32>
    %440 = vector.shape_cast %411 : vector<8x32xf32> to vector<1x8x32xf32>
    tpu.vector_store %arg10[%437, %c0_119, %c0_120], %440 {strides = array<i32>} : memref<8x8x32xf32, #tpu.memory_space<vmem>>, vector<1x8x32xf32>,
    %441 = arith.index_cast %374 : i32 to index
    %c0_121 = arith.constant 0 : index
    %c0_122 = arith.constant 0 : index
    %442 = vector.load %arg11[%441, %c0_121, %c0_122] : memref<8x8x32xf32, #tpu.memory_space<vmem>>, vector<1x8x32xf32>
    %443 = vector.shape_cast %442 : vector<1x8x32xf32> to vector<8x32xf32>
    %444 = vector.shape_cast %436 : vector<8x32xf32> to vector<1x8x32xf32>
    tpu.vector_store %arg11[%441, %c0_121, %c0_122], %444 {strides = array<i32>} : memref<8x8x32xf32, #tpu.memory_space<vmem>>, vector<1x8x32xf32>,
    %c6_i32 = arith.constant 6 : i32
    %c7_i32_123 = arith.constant 7 : i32
    %445 = arith.subi %c7_i32_123, %c6_i32 : i32
    %c8_i32_124 = arith.constant 8 : i32
    %446 = arith.muli %c6_i32, %c8_i32_124 : i32
    %447 = tpu.assume_multiple %446, 8 : i32
    %c8_i32_125 = arith.constant 8 : i32
    %448 = arith.muli %445, %c8_i32_125 : i32
    %449 = tpu.assume_multiple %448, 8 : i32
    %450 = arith.index_cast %447 : i32 to index
    %c0_126 = arith.constant 0 : index
    %451 = vector.load %arg16[%450, %c0_126] : memref<64x128xf32, #tpu.memory_space<vmem>>, vector<8x128xf32>
    %cst_127 = arith.constant dense<0.000000e+00> : vector<8x128xf32>
    %452 = tpu.matmul %411, %13, %cst_127 {dimension_numbers = #tpu.dot_dimension_numbers<[1], [0], [0], [1], [0, 0, 1, 1], [], []>} : vector<8x32xf32>, vector<32x128xf32>, vector<8x128xf32> -> vector<8x128xf32>
    %453 = arith.addf %451, %452 : vector<8x128xf32>
    %454 = arith.index_cast %449 : i32 to index
    %c0_128 = arith.constant 0 : index
    %455 = vector.load %arg17[%454, %c0_128] : memref<64x128xf32, #tpu.memory_space<vmem>>, vector<8x128xf32>
    %cst_129 = arith.constant dense<0.000000e+00> : vector<8x128xf32>
    %456 = tpu.matmul %436, %14, %cst_129 {dimension_numbers = #tpu.dot_dimension_numbers<[1], [0], [0], [1], [0, 0, 1, 1], [], []>} : vector<8x32xf32>, vector<32x128xf32>, vector<8x128xf32> -> vector<8x128xf32>
    %457 = arith.addf %455, %456 : vector<8x128xf32>
    %458 = vector.extract_strided_slice %453 {offsets = [0, 0], sizes = [8, 32], strides = [1, 1]} : vector<8x128xf32> to vector<8x32xf32>
    %459 = arith.negf %458 : vector<8x32xf32>
    %460 = math.exp %459 : vector<8x32xf32>
    %cst_130 = arith.constant 1.000000e+00 : f32
    %461 = vector.broadcast %cst_130 : f32 to vector<8x32xf32>
    %462 = arith.addf %461, %460 : vector<8x32xf32>
    %463 = arith.divf %461, %462 : vector<8x32xf32>
    %464 = vector.extract_strided_slice %453 {offsets = [0, 32], sizes = [8, 32], strides = [1, 1]} : vector<8x128xf32> to vector<8x32xf32>
    %465 = arith.negf %464 : vector<8x32xf32>
    %466 = math.exp %465 : vector<8x32xf32>
    %cst_131 = arith.constant 1.000000e+00 : f32
    %467 = vector.broadcast %cst_131 : f32 to vector<8x32xf32>
    %468 = arith.addf %467, %466 : vector<8x32xf32>
    %469 = arith.divf %467, %468 : vector<8x32xf32>
    %470 = vector.extract_strided_slice %453 {offsets = [0, 64], sizes = [8, 32], strides = [1, 1]} : vector<8x128xf32> to vector<8x32xf32>
    %471 = math.tanh %470 : vector<8x32xf32>
    %472 = vector.extract_strided_slice %453 {offsets = [0, 96], sizes = [8, 32], strides = [1, 1]} : vector<8x128xf32> to vector<8x32xf32>
    %473 = arith.negf %472 : vector<8x32xf32>
    %474 = math.exp %473 : vector<8x32xf32>
    %cst_132 = arith.constant 1.000000e+00 : f32
    %475 = vector.broadcast %cst_132 : f32 to vector<8x32xf32>
    %476 = arith.addf %475, %474 : vector<8x32xf32>
    %477 = arith.divf %475, %476 : vector<8x32xf32>
    %478 = arith.mulf %469, %409 : vector<8x32xf32>
    %479 = arith.mulf %463, %471 : vector<8x32xf32>
    %480 = arith.addf %478, %479 : vector<8x32xf32>
    %481 = math.tanh %480 : vector<8x32xf32>
    %482 = arith.mulf %477, %481 : vector<8x32xf32>
    %483 = vector.extract_strided_slice %457 {offsets = [0, 0], sizes = [8, 32], strides = [1, 1]} : vector<8x128xf32> to vector<8x32xf32>
    %484 = arith.negf %483 : vector<8x32xf32>
    %485 = math.exp %484 : vector<8x32xf32>
    %cst_133 = arith.constant 1.000000e+00 : f32
    %486 = vector.broadcast %cst_133 : f32 to vector<8x32xf32>
    %487 = arith.addf %486, %485 : vector<8x32xf32>
    %488 = arith.divf %486, %487 : vector<8x32xf32>
    %489 = vector.extract_strided_slice %457 {offsets = [0, 32], sizes = [8, 32], strides = [1, 1]} : vector<8x128xf32> to vector<8x32xf32>
    %490 = arith.negf %489 : vector<8x32xf32>
    %491 = math.exp %490 : vector<8x32xf32>
    %cst_134 = arith.constant 1.000000e+00 : f32
    %492 = vector.broadcast %cst_134 : f32 to vector<8x32xf32>
    %493 = arith.addf %492, %491 : vector<8x32xf32>
    %494 = arith.divf %492, %493 : vector<8x32xf32>
    %495 = vector.extract_strided_slice %457 {offsets = [0, 64], sizes = [8, 32], strides = [1, 1]} : vector<8x128xf32> to vector<8x32xf32>
    %496 = math.tanh %495 : vector<8x32xf32>
    %497 = vector.extract_strided_slice %457 {offsets = [0, 96], sizes = [8, 32], strides = [1, 1]} : vector<8x128xf32> to vector<8x32xf32>
    %498 = arith.negf %497 : vector<8x32xf32>
    %499 = math.exp %498 : vector<8x32xf32>
    %cst_135 = arith.constant 1.000000e+00 : f32
    %500 = vector.broadcast %cst_135 : f32 to vector<8x32xf32>
    %501 = arith.addf %500, %499 : vector<8x32xf32>
    %502 = arith.divf %500, %501 : vector<8x32xf32>
    %503 = arith.mulf %494, %434 : vector<8x32xf32>
    %504 = arith.mulf %488, %496 : vector<8x32xf32>
    %505 = arith.addf %503, %504 : vector<8x32xf32>
    %506 = math.tanh %505 : vector<8x32xf32>
    %507 = arith.mulf %502, %506 : vector<8x32xf32>
    %508 = arith.index_cast %c6_i32 : i32 to index
    %c0_136 = arith.constant 0 : index
    %c0_137 = arith.constant 0 : index
    %509 = vector.load %arg10[%508, %c0_136, %c0_137] : memref<8x8x32xf32, #tpu.memory_space<vmem>>, vector<1x8x32xf32>
    %510 = vector.shape_cast %509 : vector<1x8x32xf32> to vector<8x32xf32>
    %511 = vector.shape_cast %482 : vector<8x32xf32> to vector<1x8x32xf32>
    tpu.vector_store %arg10[%508, %c0_136, %c0_137], %511 {strides = array<i32>} : memref<8x8x32xf32, #tpu.memory_space<vmem>>, vector<1x8x32xf32>,
    %512 = arith.index_cast %445 : i32 to index
    %c0_138 = arith.constant 0 : index
    %c0_139 = arith.constant 0 : index
    %513 = vector.load %arg11[%512, %c0_138, %c0_139] : memref<8x8x32xf32, #tpu.memory_space<vmem>>, vector<1x8x32xf32>
    %514 = vector.shape_cast %513 : vector<1x8x32xf32> to vector<8x32xf32>
    %515 = vector.shape_cast %507 : vector<8x32xf32> to vector<1x8x32xf32>
    tpu.vector_store %arg11[%512, %c0_138, %c0_139], %515 {strides = array<i32>} : memref<8x8x32xf32, #tpu.memory_space<vmem>>, vector<1x8x32xf32>,
    %c7_i32_140 = arith.constant 7 : i32
    %c7_i32_141 = arith.constant 7 : i32
    %516 = arith.subi %c7_i32_141, %c7_i32_140 : i32
    %c8_i32_142 = arith.constant 8 : i32
    %517 = arith.muli %c7_i32_140, %c8_i32_142 : i32
    %518 = tpu.assume_multiple %517, 8 : i32
    %c8_i32_143 = arith.constant 8 : i32
    %519 = arith.muli %516, %c8_i32_143 : i32
    %520 = tpu.assume_multiple %519, 8 : i32
    %521 = arith.index_cast %518 : i32 to index
    %c0_144 = arith.constant 0 : index
    %522 = vector.load %arg16[%521, %c0_144] : memref<64x128xf32, #tpu.memory_space<vmem>>, vector<8x128xf32>
    %cst_145 = arith.constant dense<0.000000e+00> : vector<8x128xf32>
    %523 = tpu.matmul %482, %13, %cst_145 {dimension_numbers = #tpu.dot_dimension_numbers<[1], [0], [0], [1], [0, 0, 1, 1], [], []>} : vector<8x32xf32>, vector<32x128xf32>, vector<8x128xf32> -> vector<8x128xf32>
    %524 = arith.addf %522, %523 : vector<8x128xf32>
    %525 = arith.index_cast %520 : i32 to index
    %c0_146 = arith.constant 0 : index
    %526 = vector.load %arg17[%525, %c0_146] : memref<64x128xf32, #tpu.memory_space<vmem>>, vector<8x128xf32>
    %cst_147 = arith.constant dense<0.000000e+00> : vector<8x128xf32>
    %527 = tpu.matmul %507, %14, %cst_147 {dimension_numbers = #tpu.dot_dimension_numbers<[1], [0], [0], [1], [0, 0, 1, 1], [], []>} : vector<8x32xf32>, vector<32x128xf32>, vector<8x128xf32> -> vector<8x128xf32>
    %528 = arith.addf %526, %527 : vector<8x128xf32>
    %529 = vector.extract_strided_slice %524 {offsets = [0, 0], sizes = [8, 32], strides = [1, 1]} : vector<8x128xf32> to vector<8x32xf32>
    %530 = arith.negf %529 : vector<8x32xf32>
    %531 = math.exp %530 : vector<8x32xf32>
    %cst_148 = arith.constant 1.000000e+00 : f32
    %532 = vector.broadcast %cst_148 : f32 to vector<8x32xf32>
    %533 = arith.addf %532, %531 : vector<8x32xf32>
    %534 = arith.divf %532, %533 : vector<8x32xf32>
    %535 = vector.extract_strided_slice %524 {offsets = [0, 32], sizes = [8, 32], strides = [1, 1]} : vector<8x128xf32> to vector<8x32xf32>
    %536 = arith.negf %535 : vector<8x32xf32>
    %537 = math.exp %536 : vector<8x32xf32>
    %cst_149 = arith.constant 1.000000e+00 : f32
    %538 = vector.broadcast %cst_149 : f32 to vector<8x32xf32>
    %539 = arith.addf %538, %537 : vector<8x32xf32>
    %540 = arith.divf %538, %539 : vector<8x32xf32>
    %541 = vector.extract_strided_slice %524 {offsets = [0, 64], sizes = [8, 32], strides = [1, 1]} : vector<8x128xf32> to vector<8x32xf32>
    %542 = math.tanh %541 : vector<8x32xf32>
    %543 = vector.extract_strided_slice %524 {offsets = [0, 96], sizes = [8, 32], strides = [1, 1]} : vector<8x128xf32> to vector<8x32xf32>
    %544 = arith.negf %543 : vector<8x32xf32>
    %545 = math.exp %544 : vector<8x32xf32>
    %cst_150 = arith.constant 1.000000e+00 : f32
    %546 = vector.broadcast %cst_150 : f32 to vector<8x32xf32>
    %547 = arith.addf %546, %545 : vector<8x32xf32>
    %548 = arith.divf %546, %547 : vector<8x32xf32>
    %549 = arith.mulf %540, %480 : vector<8x32xf32>
    %550 = arith.mulf %534, %542 : vector<8x32xf32>
    %551 = arith.addf %549, %550 : vector<8x32xf32>
    %552 = math.tanh %551 : vector<8x32xf32>
    %553 = arith.mulf %548, %552 : vector<8x32xf32>
    %554 = vector.extract_strided_slice %528 {offsets = [0, 0], sizes = [8, 32], strides = [1, 1]} : vector<8x128xf32> to vector<8x32xf32>
    %555 = arith.negf %554 : vector<8x32xf32>
    %556 = math.exp %555 : vector<8x32xf32>
    %cst_151 = arith.constant 1.000000e+00 : f32
    %557 = vector.broadcast %cst_151 : f32 to vector<8x32xf32>
    %558 = arith.addf %557, %556 : vector<8x32xf32>
    %559 = arith.divf %557, %558 : vector<8x32xf32>
    %560 = vector.extract_strided_slice %528 {offsets = [0, 32], sizes = [8, 32], strides = [1, 1]} : vector<8x128xf32> to vector<8x32xf32>
    %561 = arith.negf %560 : vector<8x32xf32>
    %562 = math.exp %561 : vector<8x32xf32>
    %cst_152 = arith.constant 1.000000e+00 : f32
    %563 = vector.broadcast %cst_152 : f32 to vector<8x32xf32>
    %564 = arith.addf %563, %562 : vector<8x32xf32>
    %565 = arith.divf %563, %564 : vector<8x32xf32>
    %566 = vector.extract_strided_slice %528 {offsets = [0, 64], sizes = [8, 32], strides = [1, 1]} : vector<8x128xf32> to vector<8x32xf32>
    %567 = math.tanh %566 : vector<8x32xf32>
    %568 = vector.extract_strided_slice %528 {offsets = [0, 96], sizes = [8, 32], strides = [1, 1]} : vector<8x128xf32> to vector<8x32xf32>
    %569 = arith.negf %568 : vector<8x32xf32>
    %570 = math.exp %569 : vector<8x32xf32>
    %cst_153 = arith.constant 1.000000e+00 : f32
    %571 = vector.broadcast %cst_153 : f32 to vector<8x32xf32>
    %572 = arith.addf %571, %570 : vector<8x32xf32>
    %573 = arith.divf %571, %572 : vector<8x32xf32>
    %574 = arith.mulf %565, %505 : vector<8x32xf32>
    %575 = arith.mulf %559, %567 : vector<8x32xf32>
    %576 = arith.addf %574, %575 : vector<8x32xf32>
    %577 = math.tanh %576 : vector<8x32xf32>
    %578 = arith.mulf %573, %577 : vector<8x32xf32>
    %579 = arith.index_cast %c7_i32_140 : i32 to index
    %c0_154 = arith.constant 0 : index
    %c0_155 = arith.constant 0 : index
    %580 = vector.load %arg10[%579, %c0_154, %c0_155] : memref<8x8x32xf32, #tpu.memory_space<vmem>>, vector<1x8x32xf32>
    %581 = vector.shape_cast %580 : vector<1x8x32xf32> to vector<8x32xf32>
    %582 = vector.shape_cast %553 : vector<8x32xf32> to vector<1x8x32xf32>
    tpu.vector_store %arg10[%579, %c0_154, %c0_155], %582 {strides = array<i32>} : memref<8x8x32xf32, #tpu.memory_space<vmem>>, vector<1x8x32xf32>,
    %583 = arith.index_cast %516 : i32 to index
    %c0_156 = arith.constant 0 : index
    %c0_157 = arith.constant 0 : index
    %584 = vector.load %arg11[%583, %c0_156, %c0_157] : memref<8x8x32xf32, #tpu.memory_space<vmem>>, vector<1x8x32xf32>
    %585 = vector.shape_cast %584 : vector<1x8x32xf32> to vector<8x32xf32>
    %586 = vector.shape_cast %578 : vector<8x32xf32> to vector<1x8x32xf32>
    tpu.vector_store %arg11[%583, %c0_156, %c0_157], %586 {strides = array<i32>} : memref<8x8x32xf32, #tpu.memory_space<vmem>>, vector<1x8x32xf32>,
    %c8_i32_158 = arith.constant 8 : i32
    %c0_159 = arith.constant 0 : index
    %c0_160 = arith.constant 0 : index
    %587 = vector.load %arg12[%c0_159, %c0_160] : memref<8x32xf32, #tpu.memory_space<vmem>>, vector<8x32xf32>
    tpu.vector_store %arg12[%c0_159, %c0_160], %553 {strides = array<i32>} : memref<8x32xf32, #tpu.memory_space<vmem>>, vector<8x32xf32>,
    %c0_161 = arith.constant 0 : index
    %c0_162 = arith.constant 0 : index
    %588 = vector.load %arg13[%c0_161, %c0_162] : memref<8x32xf32, #tpu.memory_space<vmem>>, vector<8x32xf32>
    tpu.vector_store %arg13[%c0_161, %c0_162], %578 {strides = array<i32>} : memref<8x32xf32, #tpu.memory_space<vmem>>, vector<8x32xf32>,
    %c0_163 = arith.constant 0 : index
    %c0_164 = arith.constant 0 : index
    %589 = vector.load %arg14[%c0_163, %c0_164] : memref<8x32xf32, #tpu.memory_space<vmem>>, vector<8x32xf32>
    tpu.vector_store %arg14[%c0_163, %c0_164], %551 {strides = array<i32>} : memref<8x32xf32, #tpu.memory_space<vmem>>, vector<8x32xf32>,
    %c0_165 = arith.constant 0 : index
    %c0_166 = arith.constant 0 : index
    %590 = vector.load %arg15[%c0_165, %c0_166] : memref<8x32xf32, #tpu.memory_space<vmem>>, vector<8x32xf32>
    tpu.vector_store %arg15[%c0_165, %c0_166], %576 {strides = array<i32>} : memref<8x32xf32, #tpu.memory_space<vmem>>, vector<8x32xf32>,
    return
  }
}

</mosaic_0001>

<llo_original>
// kernel: encoder_forward.2
$region0: #{encoder_forward.2}
  #allocation0 [shape = 'u32[]', space=smem, size = 0x4, offset = 0x4, fixed_abs, tag = 'smem constant byte address 0x4 - core index']
  #allocation1 [shape = 'u32[144,128]{1,0:T(1,128)}', space=vmem, size = 0x12000, scoped, tag = 'internal scratch']
  #allocation2 [shape = 'f32[64,128]{1,0:T(8,128)}', space=vmem, size = 0x8000, scoped, tag = 'scratch operand']
  #allocation3 [shape = 'f32[64,128]{1,0:T(8,128)}', space=vmem, size = 0x8000, scoped, tag = 'scratch operand']
  %s0 = inlined_call_operand.vmem [shape: f32[64,32], index: 0, kind: input, shape index: {}]
  %s1 = inlined_call_operand.vmem [shape: f32[32,256], index: 1, kind: input, shape index: {}]
  %s2 = inlined_call_operand.vmem [shape: f32[32,128], index: 2, kind: input, shape index: {}]
  %s3 = inlined_call_operand.vmem [shape: f32[32,128], index: 3, kind: input, shape index: {}]
  %s4 = inlined_call_operand.vmem [shape: f32[1,128], index: 4, kind: input, shape index: {}]
  %s5 = inlined_call_operand.vmem [shape: f32[1,128], index: 5, kind: input, shape index: {}]
  %s6 = inlined_call_operand.vmem [shape: f32[8,32], index: 6, kind: input, shape index: {}]
  %s7 = inlined_call_operand.vmem [shape: f32[8,32], index: 7, kind: input, shape index: {}]
  %s8 = inlined_call_operand.vmem [shape: f32[8,32], index: 8, kind: input, shape index: {}]
  %s9 = inlined_call_operand.vmem [shape: f32[8,32], index: 9, kind: input, shape index: {}]
  %s10 = inlined_call_operand.vmem [shape: f32[8,8,32], index: 10, kind: output, shape index: {0}]
  %s11 = inlined_call_operand.vmem [shape: f32[8,8,32], index: 11, kind: output, shape index: {1}]
  %s12 = inlined_call_operand.vmem [shape: f32[8,32], index: 12, kind: output, shape index: {2}]
  %s13 = inlined_call_operand.vmem [shape: f32[8,32], index: 13, kind: output, shape index: {3}]
  %s14 = inlined_call_operand.vmem [shape: f32[8,32], index: 14, kind: output, shape index: {4}]
  %s15 = inlined_call_operand.vmem [shape: f32[8,32], index: 15, kind: output, shape index: {5}]
  %16 = xla_tuple %s10, %s11, %s12, %s13, %s14, %s15
  %s17 = sld [smem:[#allocation0]]
  $region90: #{encoder_forward.2} parent=0
    _
  %s19 = ssub.s32 1, %s17
  %s20 = scalar_select 0, %s19, %s17
  // Predicated region
  $region2: #{encoder_forward.2} parent=0 // pred_check
    _
  $region3: #{encoder_forward.2} parent=0 // pred_check_branch
    %22 = sbr.rel (0) target = $region5
  $region4: #{encoder_forward.2} parent=0 // pred_region
    _
  $region5: #{encoder_forward.2} parent=0 // pred_fallthru
    _
  // Predicated region
  $region6: #{encoder_forward.2} parent=0 // pred_check
    _
  $region7: #{encoder_forward.2} parent=0 // pred_check_branch
    %24 = sbr.rel (0) target = $region9
  $region8: #{encoder_forward.2} parent=0 // pred_region
    _
  $region9: #{encoder_forward.2} parent=0 // pred_fallthru
    _
  // Predicated region
  $region10: #{encoder_forward.2} parent=0 // pred_check
    _
  $region11: #{encoder_forward.2} parent=0 // pred_check_branch
    %26 = sbr.rel (0) target = $region13
  $region12: #{encoder_forward.2} parent=0 // pred_region
    _
  $region13: #{encoder_forward.2} parent=0 // pred_fallthru
    _
  // Predicated region
  $region14: #{encoder_forward.2} parent=0 // pred_check
    _
  $region15: #{encoder_forward.2} parent=0 // pred_check_branch
    %28 = sbr.rel (0) target = $region17
  $region16: #{encoder_forward.2} parent=0 // pred_region
    _
  $region17: #{encoder_forward.2} parent=0 // pred_fallthru
    _
  // Predicated region
  $region18: #{encoder_forward.2} parent=0 // pred_check
    _
  $region19: #{encoder_forward.2} parent=0 // pred_check_branch
    %30 = sbr.rel (0) target = $region21
  $region20: #{encoder_forward.2} parent=0 // pred_region
    _
  $region21: #{encoder_forward.2} parent=0 // pred_fallthru
    _
  // Predicated region
  $region22: #{encoder_forward.2} parent=0 // pred_check
    _
  $region23: #{encoder_forward.2} parent=0 // pred_check_branch
    %32 = sbr.rel (0) target = $region25
  $region24: #{encoder_forward.2} parent=0 // pred_region
    _
  $region25: #{encoder_forward.2} parent=0 // pred_fallthru
    _
  // Predicated region
  $region26: #{encoder_forward.2} parent=0 // pred_check
    _
  $region27: #{encoder_forward.2} parent=0 // pred_check_branch
    %34 = sbr.rel (0) target = $region29
  $region28: #{encoder_forward.2} parent=0 // pred_region
    _
  $region29: #{encoder_forward.2} parent=0 // pred_fallthru
    _
  // Predicated region
  $region30: #{encoder_forward.2} parent=0 // pred_check
    _
  $region31: #{encoder_forward.2} parent=0 // pred_check_branch
    %36 = sbr.rel (0) target = $region33
  $region32: #{encoder_forward.2} parent=0 // pred_region
    _
  $region33: #{encoder_forward.2} parent=0 // pred_fallthru
    _
  // Predicated region
  $region34: #{encoder_forward.2} parent=0 // pred_check
    _
  $region35: #{encoder_forward.2} parent=0 // pred_check_branch
    %38 = sbr.rel (0) target = $region37
  $region36: #{encoder_forward.2} parent=0 // pred_region
    _
  $region37: #{encoder_forward.2} parent=0 // pred_fallthru
    _
  // Predicated region
  $region38: #{encoder_forward.2} parent=0 // pred_check
    _
  $region39: #{encoder_forward.2} parent=0 // pred_check_branch
    %40 = sbr.rel (0) target = $region41
  $region40: #{encoder_forward.2} parent=0 // pred_region
    _
  $region41: #{encoder_forward.2} parent=0 // pred_fallthru
    _
  %v41 = vld [vmem:[%s0] sm:$0xff]
  %v42 = vld [vmem:[%s0 + $0x8] sm:$0xff]
  %v43 = vld [vmem:[%s0 + $0x10] sm:$0xff]
  %v44 = vld [vmem:[%s0 + $0x18] sm:$0xff]
  %v45 = vld [vmem:[%s0 + $0x20] sm:$0xff]
  %v46 = vld [vmem:[%s0 + $0x28] sm:$0xff]
  %v47 = vld [vmem:[%s0 + $0x30] sm:$0xff]
  %v48 = vld [vmem:[%s0 + $0x38] sm:$0xff]
  %v49 = vld [vmem:[%s1] sm:$0xff]
  %v50 = vld [vmem:[%s1 + $0x8] sm:$0xff]
  %v51 = vld [vmem:[%s1 + $0x10] sm:$0xff]
  %v52 = vld [vmem:[%s1 + $0x18] sm:$0xff]
  %v53 = vld [vmem:[%s1 + $0x20] sm:$0xff]
  %v54 = vld [vmem:[%s1 + $0x28] sm:$0xff]
  %v55 = vld [vmem:[%s1 + $0x30] sm:$0xff]
  %v56 = vld [vmem:[%s1 + $0x38] sm:$0xff]
  %vm57 = vcmask 261120
  %v59 = vsel %vm57, %v41, 0
  %v62 = vsel %vm57, %v42, 0
  %v65 = vsel %vm57, %v43, 0
  %v68 = vsel %vm57, %v44, 0
  %v71 = vsel %vm57, %v45, 0
  %v74 = vsel %vm57, %v46, 0
  %v77 = vsel %vm57, %v47, 0
  %v80 = vsel %vm57, %v48, 0
  %82 = vmatprep.subr.mxu0 %v50
  %83 = vmatpush1.msra.mxu0 %v49
  %84 = vmatprep.subr.mxu0 %v52
  %85 = vmatpush1.msra.mxu0 %v51
  %86 = vmatprep.subr.mxu0 %v54
  %87 = vmatpush1.msra.mxu0 %v53
  %88 = vmatprep.subr.mxu0 %v56
  %89 = vmatpush1.msra.mxu0 %v55
  %90 = vmatprep.subr.mxu0 0.0
  %91 = vmatpush1.msra.mxu0 0.0
  %92 = vmatprep.subr.mxu0 0.0
  %93 = vmatpush1.msra.mxu0 0.0
  %94 = vmatprep.subr.mxu0 0.0
  %95 = vmatpush1.msra.mxu0 0.0
  %96 = vmatprep.subr.mxu0 0.0
  %97 = vmatpush1.msra.mxu0 0.0
  %98 = vmatprep.subr.mxu0 0.0
  %99 = vmatpush1.msra.mxu0 0.0
  %100 = vmatprep.subr.mxu0 0.0
  %101 = vmatpush1.msra.mxu0 0.0
  %102 = vmatprep.subr.mxu0 0.0
  %103 = vmatpush1.msra.mxu0 0.0
  %104 = vmatprep.subr.mxu0 0.0
  %105 = vmatpush1.msra.mxu0 0.0
  %106 = vmatprep.subr.mxu0 0.0
  %107 = vmatpush1.msra.mxu0 0.0
  %108 = vmatprep.subr.mxu0 0.0
  %109 = vmatpush1.msra.mxu0 0.0
  %110 = vmatprep.subr.mxu0 0.0
  %111 = vmatpush1.msra.mxu0 0.0
  %112 = vmatprep.subr.mxu0 0.0
  %113 = vmatpush1.msra.mxu0 0.0
  %114 = vmatprep.subr.mxu0 0.0
  %115 = vmatpush1.msra.mxu0 0.0
  %116 = vmatprep.subr.mxu0 0.0
  %117 = vmatpush1.msra.mxu0 0.0
  %118 = vmatprep.subr.mxu0 0.0
  %119 = vmatpush1.msra.mxu0 0.0
  %120 = vmatprep.subr.mxu0 0.0
  %121 = vmatpush1.msra.mxu0 0.0
  %122 = vmatprep.subr.mxu0 0.0
  %123 = vmatpush1.msra.mxu0 0.0
  %124 = vmatprep.subr.mxu0 0.0
  %125 = vmatpush1.msra.mxu0 0.0
  %126 = vmatprep.subr.mxu0 0.0
  %127 = vmatpush1.msra.mxu0 0.0
  %128 = vmatprep.subr.mxu0 0.0
  %129 = vmatpush1.msra.mxu0 0.0
  %130 = vmatprep.subr.mxu0 0.0
  %131 = vmatpush1.msra.mxu0 0.0
  %132 = vmatprep.subr.mxu0 0.0
  %133 = vmatpush1.msra.mxu0 0.0
  %134 = vmatprep.subr.mxu0 0.0
  %135 = vmatpush1.msra.mxu0 0.0
  %136 = vmatprep.subr.mxu0 0.0
  %137 = vmatpush1.msra.mxu0 0.0
  %138 = vmatprep.subr.mxu0 0.0
  %139 = vmatpush1.msra.mxu0 0.0
  %140 = vmatprep.subr.mxu0 0.0
  %141 = vmatpush1.msra.mxu0 0.0
  %142 = vmatprep.subr.mxu0 0.0
  %143 = vmatpush1.msra.mxu0 0.0
  %144 = vmatprep.subr.mxu0 0.0
  %145 = vmatpush1.msra.mxu0 0.0
  %146 = vmatprep.mubr.f32.mxu0 0.0
  %147 = vmatmul.mubr.f32.gmra.mrb[0].mxu0 %v59
  %v148 = vpop.f32.mrb[0].mxu0
  %v149 = vadd.f32 0.0, %v148
  %v150 = vpop.f32.mrb[0].mxu0
  %v151 = vadd.f32 0.0, %v150
  %152 = vmatprep.mubr.f32.mxu0 0.0
  %153 = vmatmul.mubr.f32.gmra.mrb[0].mxu0 %v62
  %v154 = vpop.f32.mrb[0].mxu0
  %v155 = vadd.f32 0.0, %v154
  %v156 = vpop.f32.mrb[0].mxu0
  %v157 = vadd.f32 0.0, %v156
  %158 = vmatprep.mubr.f32.mxu0 0.0
  %159 = vmatmul.mubr.f32.gmra.mrb[0].mxu0 %v65
  %v160 = vpop.f32.mrb[0].mxu0
  %v161 = vadd.f32 0.0, %v160
  %v162 = vpop.f32.mrb[0].mxu0
  %v163 = vadd.f32 0.0, %v162
  %164 = vmatprep.mubr.f32.mxu0 0.0
  %165 = vmatmul.mubr.f32.gmra.mrb[0].mxu0 %v68
  %v166 = vpop.f32.mrb[0].mxu0
  %v167 = vadd.f32 0.0, %v166
  %v168 = vpop.f32.mrb[0].mxu0
  %v169 = vadd.f32 0.0, %v168
  %170 = vmatprep.mubr.f32.mxu0 0.0
  %171 = vmatmul.mubr.f32.gmra.mrb[0].mxu0 %v71
  %v172 = vpop.f32.mrb[0].mxu0
  %v173 = vadd.f32 0.0, %v172
  %v174 = vpop.f32.mrb[0].mxu0
  %v175 = vadd.f32 0.0, %v174
  %176 = vmatprep.mubr.f32.mxu0 0.0
  %177 = vmatmul.mubr.f32.gmra.mrb[0].mxu0 %v74
  %v178 = vpop.f32.mrb[0].mxu0
  %v179 = vadd.f32 0.0, %v178
  %v180 = vpop.f32.mrb[0].mxu0
  %v181 = vadd.f32 0.0, %v180
  %182 = vmatprep.mubr.f32.mxu0 0.0
  %183 = vmatmul.mubr.f32.gmra.mrb[0].mxu0 %v77
  %v184 = vpop.f32.mrb[0].mxu0
  %v185 = vadd.f32 0.0, %v184
  %v186 = vpop.f32.mrb[0].mxu0
  %v187 = vadd.f32 0.0, %v186
  %188 = vmatprep.mubr.f32.mxu0 0.0
  %189 = vmatmul.mubr.f32.gmra.mrb[0].mxu0 %v80
  %v190 = vpop.f32.mrb[0].mxu0
  %v191 = vadd.f32 0.0, %v190
  %v192 = vpop.f32.mrb[0].mxu0
  %v193 = vadd.f32 0.0, %v192
  %194 = vdwg.mxu0
  %v195 = vld [vmem:[%s4] sm:$0x1]
  %v197 = vlaneseq
  %v198 = vshrl.u32 %v197, 7
  %v199 = vsub.s32 0, %v198
  %v200 = vrot.slane %v195, %v199
  %v202 = vadd.f32 %v149, %v200
  %v203 = vadd.f32 %v155, %v200
  %v204 = vadd.f32 %v161, %v200
  %v205 = vadd.f32 %v167, %v200
  %v206 = vadd.f32 %v173, %v200
  %v207 = vadd.f32 %v179, %v200
  %v208 = vadd.f32 %v185, %v200
  %v209 = vadd.f32 %v191, %v200
  %210 = vst [vmem:[#allocation2] sm:$0xff] %v202
  %211 = vst [vmem:[#allocation2 + $0x8] sm:$0xff] %v203
  %212 = vst [vmem:[#allocation2 + $0x10] sm:$0xff] %v204
  %213 = vst [vmem:[#allocation2 + $0x18] sm:$0xff] %v205
  %214 = vst [vmem:[#allocation2 + $0x20] sm:$0xff] %v206
  %215 = vst [vmem:[#allocation2 + $0x28] sm:$0xff] %v207
  %216 = vst [vmem:[#allocation2 + $0x30] sm:$0xff] %v208
  %217 = vst [vmem:[#allocation2 + $0x38] sm:$0xff] %v209
  %v218 = vld [vmem:[%s5] sm:$0x1]
  %v220 = vlaneseq
  %v221 = vshrl.u32 %v220, 7
  %v222 = vsub.s32 0, %v221
  %v223 = vrot.slane %v218, %v222
  %v225 = vadd.f32 %v151, %v223
  %v226 = vadd.f32 %v157, %v223
  %v227 = vadd.f32 %v163, %v223
  %v228 = vadd.f32 %v169, %v223
  %v229 = vadd.f32 %v175, %v223
  %v230 = vadd.f32 %v181, %v223
  %v231 = vadd.f32 %v187, %v223
  %v232 = vadd.f32 %v193, %v223
  %233 = vst [vmem:[#allocation3] sm:$0xff] %v225
  %234 = vst [vmem:[#allocation3 + $0x8] sm:$0xff] %v226
  %235 = vst [vmem:[#allocation3 + $0x10] sm:$0xff] %v227
  %236 = vst [vmem:[#allocation3 + $0x18] sm:$0xff] %v228
  %237 = vst [vmem:[#allocation3 + $0x20] sm:$0xff] %v229
  %238 = vst [vmem:[#allocation3 + $0x28] sm:$0xff] %v230
  %239 = vst [vmem:[#allocation3 + $0x30] sm:$0xff] %v231
  %240 = vst [vmem:[#allocation3 + $0x38] sm:$0xff] %v232
  %v241 = vld [vmem:[%s2] sm:$0xff]
  %v242 = vld [vmem:[%s2 + $0x8] sm:$0xff]
  %v243 = vld [vmem:[%s2 + $0x10] sm:$0xff]
  %v244 = vld [vmem:[%s2 + $0x18] sm:$0xff]
  %v245 = vld [vmem:[%s3] sm:$0xff]
  %v246 = vld [vmem:[%s3 + $0x8] sm:$0xff]
  %v247 = vld [vmem:[%s3 + $0x10] sm:$0xff]
  %v248 = vld [vmem:[%s3 + $0x18] sm:$0xff]
  %v249 = vld [vmem:[%s6] sm:$0xff]
  %v250 = vld [vmem:[%s8] sm:$0xff]
  %v251 = vld [vmem:[%s7] sm:$0xff]
  %v252 = vld [vmem:[%s9] sm:$0xff]
  %v253 = vld [vmem:[#allocation2] sm:$0xff]
  %v255 = vsel %vm57, %v249, 0
  %257 = vmatprep.subr.mxu0 0.0
  %258 = vmatpush1.msra.mxu0 %v241
  %259 = vmatprep.subr.mxu0 0.0
  %260 = vmatpush1.msra.mxu0 %v242
  %261 = vmatprep.subr.mxu0 0.0
  %262 = vmatpush1.msra.mxu0 %v243
  %263 = vmatprep.subr.mxu0 0.0
  %264 = vmatpush1.msra.mxu0 %v244
  %265 = vmatprep.subr.mxu0 0.0
  %266 = vmatpush1.msra.mxu0 0.0
  %267 = vmatprep.subr.mxu0 0.0
  %268 = vmatpush1.msra.mxu0 0.0
  %269 = vmatprep.subr.mxu0 0.0
  %270 = vmatpush1.msra.mxu0 0.0
  %271 = vmatprep.subr.mxu0 0.0
  %272 = vmatpush1.msra.mxu0 0.0
  %273 = vmatprep.subr.mxu0 0.0
  %274 = vmatpush1.msra.mxu0 0.0
  %275 = vmatprep.subr.mxu0 0.0
  %276 = vmatpush1.msra.mxu0 0.0
  %277 = vmatprep.subr.mxu0 0.0
  %278 = vmatpush1.msra.mxu0 0.0
  %279 = vmatprep.subr.mxu0 0.0
  %280 = vmatpush1.msra.mxu0 0.0
  %281 = vmatprep.subr.mxu0 0.0
  %282 = vmatpush1.msra.mxu0 0.0
  %283 = vmatprep.subr.mxu0 0.0
  %284 = vmatpush1.msra.mxu0 0.0
  %285 = vmatprep.subr.mxu0 0.0
  %286 = vmatpush1.msra.mxu0 0.0
  %287 = vmatprep.subr.mxu0 0.0
  %288 = vmatpush1.msra.mxu0 0.0
  %289 = vmatprep.subr.mxu0 0.0
  %290 = vmatpush1.msra.mxu0 0.0
  %291 = vmatprep.subr.mxu0 0.0
  %292 = vmatpush1.msra.mxu0 0.0
  %293 = vmatprep.subr.mxu0 0.0
  %294 = vmatpush1.msra.mxu0 0.0
  %295 = vmatprep.subr.mxu0 0.0
  %296 = vmatpush1.msra.mxu0 0.0
  %297 = vmatprep.subr.mxu0 0.0
  %298 = vmatpush1.msra.mxu0 0.0
  %299 = vmatprep.subr.mxu0 0.0
  %300 = vmatpush1.msra.mxu0 0.0
  %301 = vmatprep.subr.mxu0 0.0
  %302 = vmatpush1.msra.mxu0 0.0
  %303 = vmatprep.subr.mxu0 0.0
  %304 = vmatpush1.msra.mxu0 0.0
  %305 = vmatprep.subr.mxu0 0.0
  %306 = vmatpush1.msra.mxu0 0.0
  %307 = vmatprep.subr.mxu0 0.0
  %308 = vmatpush1.msra.mxu0 0.0
  %309 = vmatprep.subr.mxu0 0.0
  %310 = vmatpush1.msra.mxu0 0.0
  %311 = vmatprep.subr.mxu0 0.0
  %312 = vmatpush1.msra.mxu0 0.0
  %313 = vmatprep.subr.mxu0 0.0
  %314 = vmatpush1.msra.mxu0 0.0
  %315 = vmatprep.subr.mxu0 0.0
  %316 = vmatpush1.msra.mxu0 0.0
  %317 = vmatprep.subr.mxu0 0.0
  %318 = vmatpush1.msra.mxu0 0.0
  %319 = vmatprep.subr.mxu0 0.0
  %320 = vmatpush1.msra.mxu0 0.0
  %321 = vmatprep.mubr.f32.mxu0 0.0
  %322 = vmatmul.mubr.f32.gmra.mrb[0].mxu0 %v255
  %v323 = vpop.f32.mrb[0].mxu0
  %v324 = vadd.f32 0.0, %v323
  %v325 = vpop.f32.mrb[0].mxu0
  %326 = vdwg.mxu0
  %v327 = vadd.f32 %v253, %v324
  %s328 = scalar_lea.vmem [#allocation3], 56
  %v329 = vld [vmem:[%s328] sm:$0xff]
  %v331 = vsel %vm57, %v251, 0
  %333 = vmatprep.subr.mxu0 0.0
  %334 = vmatpush1.msra.mxu0 %v245
  %335 = vmatprep.subr.mxu0 0.0
  %336 = vmatpush1.msra.mxu0 %v246
  %337 = vmatprep.subr.mxu0 0.0
  %338 = vmatpush1.msra.mxu0 %v247
  %339 = vmatprep.subr.mxu0 0.0
  %340 = vmatpush1.msra.mxu0 %v248
  %341 = vmatprep.subr.mxu0 0.0
  %342 = vmatpush1.msra.mxu0 0.0
  %343 = vmatprep.subr.mxu0 0.0
  %344 = vmatpush1.msra.mxu0 0.0
  %345 = vmatprep.subr.mxu0 0.0
  %346 = vmatpush1.msra.mxu0 0.0
  %347 = vmatprep.subr.mxu0 0.0
  %348 = vmatpush1.msra.mxu0 0.0
  %349 = vmatprep.subr.mxu0 0.0
  %350 = vmatpush1.msra.mxu0 0.0
  %351 = vmatprep.subr.mxu0 0.0
  %352 = vmatpush1.msra.mxu0 0.0
  %353 = vmatprep.subr.mxu0 0.0
  %354 = vmatpush1.msra.mxu0 0.0
  %355 = vmatprep.subr.mxu0 0.0
  %356 = vmatpush1.msra.mxu0 0.0
  %357 = vmatprep.subr.mxu0 0.0
  %358 = vmatpush1.msra.mxu0 0.0
  %359 = vmatprep.subr.mxu0 0.0
  %360 = vmatpush1.msra.mxu0 0.0
  %361 = vmatprep.subr.mxu0 0.0
  %362 = vmatpush1.msra.mxu0 0.0
  %363 = vmatprep.subr.mxu0 0.0
  %364 = vmatpush1.msra.mxu0 0.0
  %365 = vmatprep.subr.mxu0 0.0
  %366 = vmatpush1.msra.mxu0 0.0
  %367 = vmatprep.subr.mxu0 0.0
  %368 = vmatpush1.msra.mxu0 0.0
  %369 = vmatprep.subr.mxu0 0.0
  %370 = vmatpush1.msra.mxu0 0.0
  %371 = vmatprep.subr.mxu0 0.0
  %372 = vmatpush1.msra.mxu0 0.0
  %373 = vmatprep.subr.mxu0 0.0
  %374 = vmatpush1.msra.mxu0 0.0
  %375 = vmatprep.subr.mxu0 0.0
  %376 = vmatpush1.msra.mxu0 0.0
  %377 = vmatprep.subr.mxu0 0.0
  %378 = vmatpush1.msra.mxu0 0.0
  %379 = vmatprep.subr.mxu0 0.0
  %380 = vmatpush1.msra.mxu0 0.0
  %381 = vmatprep.subr.mxu0 0.0
  %382 = vmatpush1.msra.mxu0 0.0
  %383 = vmatprep.subr.mxu0 0.0
  %384 = vmatpush1.msra.mxu0 0.0
  %385 = vmatprep.subr.mxu0 0.0
  %386 = vmatpush1.msra.mxu0 0.0
  %387 = vmatprep.subr.mxu0 0.0
  %388 = vmatpush1.msra.mxu0 0.0
  %389 = vmatprep.subr.mxu0 0.0
  %390 = vmatpush1.msra.mxu0 0.0
  %391 = vmatprep.subr.mxu0 0.0
  %392 = vmatpush1.msra.mxu0 0.0
  %393 = vmatprep.subr.mxu0 0.0
  %394 = vmatpush1.msra.mxu0 0.0
  %395 = vmatprep.subr.mxu0 0.0
  %396 = vmatpush1.msra.mxu0 0.0
  %397 = vmatprep.mubr.f32.mxu0 0.0
  %398 = vmatmul.mubr.f32.gmra.mrb[0].mxu0 %v331
  %v399 = vpop.f32.mrb[0].mxu0
  %v400 = vadd.f32 0.0, %v399
  %v401 = vpop.f32.mrb[0].mxu0
  %402 = vdwg.mxu0
  %v403 = vadd.f32 %v329, %v400
  %v404 = vxor.u32 %v327, 2147483648
  %v405 = vmul.f32 %v404, 1.442695
  %v406 = vpow.pop %v405
  %v407 = vadd.f32 %v406, 1.0
  %v408 = vrcp.pop %v407
  %v409 = vmul.f32 1.0, %v408
  %v410 = vtanh.pop %v327
  %412 = vrot.lane.b32.xlu0 %v250, 32
  %v413 = vpop.permute.xlu0 %412
  %v415 = vmul.f32 %v409, %v413
  %417 = vrot.lane.b32.xlu0 %v410, 64
  %v418 = vpop.permute.xlu0 %417
  %v420 = vmul.f32 %v409, %v418
  %422 = vrot.lane.b32.xlu0 %v420, 32
  %v423 = vpop.permute.xlu0 %422
  %v425 = vadd.f32 %v415, %v423
  %v426 = vtanh.pop %v425
  %428 = vrot.lane.b32.xlu0 %v426, 64
  %v429 = vpop.permute.xlu0 %428
  %v431 = vmul.f32 %v409, %v429
  %v432 = vxor.u32 %v403, 2147483648
  %v433 = vmul.f32 %v432, 1.442695
  %v434 = vpow.pop %v433
  %v435 = vadd.f32 %v434, 1.0
  %v436 = vrcp.pop %v435
  %v437 = vmul.f32 1.0, %v436
  %v438 = vtanh.pop %v403
  %440 = vrot.lane.b32.xlu0 %v252, 32
  %v441 = vpop.permute.xlu0 %440
  %v443 = vmul.f32 %v437, %v441
  %445 = vrot.lane.b32.xlu0 %v438, 64
  %v446 = vpop.permute.xlu0 %445
  %v448 = vmul.f32 %v437, %v446
  %450 = vrot.lane.b32.xlu0 %v448, 32
  %v451 = vpop.permute.xlu0 %450
  %v453 = vadd.f32 %v443, %v451
  %v454 = vtanh.pop %v453
  %456 = vrot.lane.b32.xlu0 %v454, 64
  %v457 = vpop.permute.xlu0 %456
  %v459 = vmul.f32 %v437, %v457
  %461 = vrot.lane.b32.xlu0 %v431, 32
  %v462 = vpop.permute.xlu0 %461
  %464 = vst.msk [vmem:[%s10] sm:$0xff] %vm57, %v462
  %466 = vrot.lane.b32.xlu0 %v459, 32
  %v467 = vpop.permute.xlu0 %466
  %s469 = scalar_lea.vmem %s11, 56
  %470 = vst.msk [vmem:[%s469] sm:$0xff] %vm57, %v467
  %s471 = scalar_lea.vmem [#allocation2], 8
  %v472 = vld [vmem:[%s471] sm:$0xff]
  %v473 = vsel %vm57, %v462, 0
  %475 = vmatprep.subr.mxu0 0.0
  %476 = vmatpush1.msra.mxu0 %v241
  %477 = vmatprep.subr.mxu0 0.0
  %478 = vmatpush1.msra.mxu0 %v242
  %479 = vmatprep.subr.mxu0 0.0
  %480 = vmatpush1.msra.mxu0 %v243
  %481 = vmatprep.subr.mxu0 0.0
  %482 = vmatpush1.msra.mxu0 %v244
  %483 = vmatprep.subr.mxu0 0.0
  %484 = vmatpush1.msra.mxu0 0.0
  %485 = vmatprep.subr.mxu0 0.0
  %486 = vmatpush1.msra.mxu0 0.0
  %487 = vmatprep.subr.mxu0 0.0
  %488 = vmatpush1.msra.mxu0 0.0
  %489 = vmatprep.subr.mxu0 0.0
  %490 = vmatpush1.msra.mxu0 0.0
  %491 = vmatprep.subr.mxu0 0.0
  %492 = vmatpush1.msra.mxu0 0.0
  %493 = vmatprep.subr.mxu0 0.0
  %494 = vmatpush1.msra.mxu0 0.0
  %495 = vmatprep.subr.mxu0 0.0
  %496 = vmatpush1.msra.mxu0 0.0
  %497 = vmatprep.subr.mxu0 0.0
  %498 = vmatpush1.msra.mxu0 0.0
  %499 = vmatprep.subr.mxu0 0.0
  %500 = vmatpush1.msra.mxu0 0.0
  %501 = vmatprep.subr.mxu0 0.0
  %502 = vmatpush1.msra.mxu0 0.0
  %503 = vmatprep.subr.mxu0 0.0
  %504 = vmatpush1.msra.mxu0 0.0
  %505 = vmatprep.subr.mxu0 0.0
  %506 = vmatpush1.msra.mxu0 0.0
  %507 = vmatprep.subr.mxu0 0.0
  %508 = vmatpush1.msra.mxu0 0.0
  %509 = vmatprep.subr.mxu0 0.0
  %510 = vmatpush1.msra.mxu0 0.0
  %511 = vmatprep.subr.mxu0 0.0
  %512 = vmatpush1.msra.mxu0 0.0
  %513 = vmatprep.subr.mxu0 0.0
  %514 = vmatpush1.msra.mxu0 0.0
  %515 = vmatprep.subr.mxu0 0.0
  %516 = vmatpush1.msra.mxu0 0.0
  %517 = vmatprep.subr.mxu0 0.0
  %518 = vmatpush1.msra.mxu0 0.0
  %519 = vmatprep.subr.mxu0 0.0
  %520 = vmatpush1.msra.mxu0 0.0
  %521 = vmatprep.subr.mxu0 0.0
  %522 = vmatpush1.msra.mxu0 0.0
  %523 = vmatprep.subr.mxu0 0.0
  %524 = vmatpush1.msra.mxu0 0.0
  %525 = vmatprep.subr.mxu0 0.0
  %526 = vmatpush1.msra.mxu0 0.0
  %527 = vmatprep.subr.mxu0 0.0
  %528 = vmatpush1.msra.mxu0 0.0
  %529 = vmatprep.subr.mxu0 0.0
  %530 = vmatpush1.msra.mxu0 0.0
  %531 = vmatprep.subr.mxu0 0.0
  %532 = vmatpush1.msra.mxu0 0.0
  %533 = vmatprep.subr.mxu0 0.0
  %534 = vmatpush1.msra.mxu0 0.0
  %535 = vmatprep.subr.mxu0 0.0
  %536 = vmatpush1.msra.mxu0 0.0
  %537 = vmatprep.subr.mxu0 0.0
  %538 = vmatpush1.msra.mxu0 0.0
  %539 = vmatprep.mubr.f32.mxu0 0.0
  %540 = vmatmul.mubr.f32.gmra.mrb[0].mxu0 %v473
  %v541 = vpop.f32.mrb[0].mxu0
  %v542 = vadd.f32 0.0, %v541
  %v543 = vpop.f32.mrb[0].mxu0
  %544 = vdwg.mxu0
  %v545 = vadd.f32 %v472, %v542
  %s546 = scalar_lea.vmem [#allocation3], 48
  %v547 = vld [vmem:[%s546] sm:$0xff]
  %v548 = vsel %vm57, %v467, 0
  %550 = vmatprep.subr.mxu0 0.0
  %551 = vmatpush1.msra.mxu0 %v245
  %552 = vmatprep.subr.mxu0 0.0
  %553 = vmatpush1.msra.mxu0 %v246
  %554 = vmatprep.subr.mxu0 0.0
  %555 = vmatpush1.msra.mxu0 %v247
  %556 = vmatprep.subr.mxu0 0.0
  %557 = vmatpush1.msra.mxu0 %v248
  %558 = vmatprep.subr.mxu0 0.0
  %559 = vmatpush1.msra.mxu0 0.0
  %560 = vmatprep.subr.mxu0 0.0
  %561 = vmatpush1.msra.mxu0 0.0
  %562 = vmatprep.subr.mxu0 0.0
  %563 = vmatpush1.msra.mxu0 0.0
  %564 = vmatprep.subr.mxu0 0.0
  %565 = vmatpush1.msra.mxu0 0.0
  %566 = vmatprep.subr.mxu0 0.0
  %567 = vmatpush1.msra.mxu0 0.0
  %568 = vmatprep.subr.mxu0 0.0
  %569 = vmatpush1.msra.mxu0 0.0
  %570 = vmatprep.subr.mxu0 0.0
  %571 = vmatpush1.msra.mxu0 0.0
  %572 = vmatprep.subr.mxu0 0.0
  %573 = vmatpush1.msra.mxu0 0.0
  %574 = vmatprep.subr.mxu0 0.0
  %575 = vmatpush1.msra.mxu0 0.0
  %576 = vmatprep.subr.mxu0 0.0
  %577 = vmatpush1.msra.mxu0 0.0
  %578 = vmatprep.subr.mxu0 0.0
  %579 = vmatpush1.msra.mxu0 0.0
  %580 = vmatprep.subr.mxu0 0.0
  %581 = vmatpush1.msra.mxu0 0.0
  %582 = vmatprep.subr.mxu0 0.0
  %583 = vmatpush1.msra.mxu0 0.0
  %584 = vmatprep.subr.mxu0 0.0
  %585 = vmatpush1.msra.mxu0 0.0
  %586 = vmatprep.subr.mxu0 0.0
  %587 = vmatpush1.msra.mxu0 0.0
  %588 = vmatprep.subr.mxu0 0.0
  %589 = vmatpush1.msra.mxu0 0.0
  %590 = vmatprep.subr.mxu0 0.0
  %591 = vmatpush1.msra.mxu0 0.0
  %592 = vmatprep.subr.mxu0 0.0
  %593 = vmatpush1.msra.mxu0 0.0
  %594 = vmatprep.subr.mxu0 0.0
  %595 = vmatpush1.msra.mxu0 0.0
  %596 = vmatprep.subr.mxu0 0.0
  %597 = vmatpush1.msra.mxu0 0.0
  %598 = vmatprep.subr.mxu0 0.0
  %599 = vmatpush1.msra.mxu0 0.0
  %600 = vmatprep.subr.mxu0 0.0
  %601 = vmatpush1.msra.mxu0 0.0
  %602 = vmatprep.subr.mxu0 0.0
  %603 = vmatpush1.msra.mxu0 0.0
  %604 = vmatprep.subr.mxu0 0.0
  %605 = vmatpush1.msra.mxu0 0.0
  %606 = vmatprep.subr.mxu0 0.0
  %607 = vmatpush1.msra.mxu0 0.0
  %608 = vmatprep.subr.mxu0 0.0
  %609 = vmatpush1.msra.mxu0 0.0
  %610 = vmatprep.subr.mxu0 0.0
  %611 = vmatpush1.msra.mxu0 0.0
  %612 = vmatprep.subr.mxu0 0.0
  %613 = vmatpush1.msra.mxu0 0.0
  %614 = vmatprep.mubr.f32.mxu0 0.0
  %615 = vmatmul.mubr.f32.gmra.mrb[0].mxu0 %v548
  %v616 = vpop.f32.mrb[0].mxu0
  %v617 = vadd.f32 0.0, %v616
  %v618 = vpop.f32.mrb[0].mxu0
  %619 = vdwg.mxu0
  %v620 = vadd.f32 %v547, %v617
  %v621 = vxor.u32 %v545, 2147483648
  %v622 = vmul.f32 %v621, 1.442695
  %v623 = vpow.pop %v622
  %v624 = vadd.f32 %v623, 1.0
  %v625 = vrcp.pop %v624
  %v626 = vmul.f32 1.0, %v625
  %v627 = vtanh.pop %v545
  %v628 = vmul.f32 %v626, %v425
  %630 = vrot.lane.b32.xlu0 %v627, 64
  %v631 = vpop.permute.xlu0 %630
  %v633 = vmul.f32 %v626, %v631
  %635 = vrot.lane.b32.xlu0 %v633, 32
  %v636 = vpop.permute.xlu0 %635
  %v638 = vadd.f32 %v628, %v636
  %v639 = vtanh.pop %v638
  %641 = vrot.lane.b32.xlu0 %v639, 64
  %v642 = vpop.permute.xlu0 %641
  %v644 = vmul.f32 %v626, %v642
  %v645 = vxor.u32 %v620, 2147483648
  %v646 = vmul.f32 %v645, 1.442695
  %v647 = vpow.pop %v646
  %v648 = vadd.f32 %v647, 1.0
  %v649 = vrcp.pop %v648
  %v650 = vmul.f32 1.0, %v649
  %v651 = vtanh.pop %v620
  %v652 = vmul.f32 %v650, %v453
  %654 = vrot.lane.b32.xlu0 %v651, 64
  %v655 = vpop.permute.xlu0 %654
  %v657 = vmul.f32 %v650, %v655
  %659 = vrot.lane.b32.xlu0 %v657, 32
  %v660 = vpop.permute.xlu0 %659
  %v662 = vadd.f32 %v652, %v660
  %v663 = vtanh.pop %v662
  %665 = vrot.lane.b32.xlu0 %v663, 64
  %v666 = vpop.permute.xlu0 %665
  %v668 = vmul.f32 %v650, %v666
  %670 = vrot.lane.b32.xlu0 %v644, 32
  %v671 = vpop.permute.xlu0 %670
  %s673 = scalar_lea.vmem %s10, 8
  %674 = vst.msk [vmem:[%s673] sm:$0xff] %vm57, %v671
  %676 = vrot.lane.b32.xlu0 %v668, 32
  %v677 = vpop.permute.xlu0 %676
  %s679 = scalar_lea.vmem %s11, 48
  %680 = vst.msk [vmem:[%s679] sm:$0xff] %vm57, %v677
  %s681 = scalar_lea.vmem [#allocation2], 16
  %v682 = vld [vmem:[%s681] sm:$0xff]
  %v683 = vsel %vm57, %v671, 0
  %685 = vmatprep.subr.mxu0 0.0
  %686 = vmatpush1.msra.mxu0 %v241
  %687 = vmatprep.subr.mxu0 0.0
  %688 = vmatpush1.msra.mxu0 %v242
  %689 = vmatprep.subr.mxu0 0.0
  %690 = vmatpush1.msra.mxu0 %v243
  %691 = vmatprep.subr.mxu0 0.0
  %692 = vmatpush1.msra.mxu0 %v244
  %693 = vmatprep.subr.mxu0 0.0
  %694 = vmatpush1.msra.mxu0 0.0
  %695 = vmatprep.subr.mxu0 0.0
  %696 = vmatpush1.msra.mxu0 0.0
  %697 = vmatprep.subr.mxu0 0.0
  %698 = vmatpush1.msra.mxu0 0.0
  %699 = vmatprep.subr.mxu0 0.0
  %700 = vmatpush1.msra.mxu0 0.0
  %701 = vmatprep.subr.mxu0 0.0
  %702 = vmatpush1.msra.mxu0 0.0
  %703 = vmatprep.subr.mxu0 0.0
  %704 = vmatpush1.msra.mxu0 0.0
  %705 = vmatprep.subr.mxu0 0.0
  %706 = vmatpush1.msra.mxu0 0.0
  %707 = vmatprep.subr.mxu0 0.0
  %708 = vmatpush1.msra.mxu0 0.0
  %709 = vmatprep.subr.mxu0 0.0
  %710 = vmatpush1.msra.mxu0 0.0
  %711 = vmatprep.subr.mxu0 0.0
  %712 = vmatpush1.msra.mxu0 0.0
  %713 = vmatprep.subr.mxu0 0.0
  %714 = vmatpush1.msra.mxu0 0.0
  %715 = vmatprep.subr.mxu0 0.0
  %716 = vmatpush1.msra.mxu0 0.0
  %717 = vmatprep.subr.mxu0 0.0
  %718 = vmatpush1.msra.mxu0 0.0
  %719 = vmatprep.subr.mxu0 0.0
  %720 = vmatpush1.msra.mxu0 0.0
  %721 = vmatprep.subr.mxu0 0.0
  %722 = vmatpush1.msra.mxu0 0.0
  %723 = vmatprep.subr.mxu0 0.0
  %724 = vmatpush1.msra.mxu0 0.0
  %725 = vmatprep.subr.mxu0 0.0
  %726 = vmatpush1.msra.mxu0 0.0
  %727 = vmatprep.subr.mxu0 0.0
  %728 = vmatpush1.msra.mxu0 0.0
  %729 = vmatprep.subr.mxu0 0.0
  %730 = vmatpush1.msra.mxu0 0.0
  %731 = vmatprep.subr.mxu0 0.0
  %732 = vmatpush1.msra.mxu0 0.0
  %733 = vmatprep.subr.mxu0 0.0
  %734 = vmatpush1.msra.mxu0 0.0
  %735 = vmatprep.subr.mxu0 0.0
  %736 = vmatpush1.msra.mxu0 0.0
  %737 = vmatprep.subr.mxu0 0.0
  %738 = vmatpush1.msra.mxu0 0.0
  %739 = vmatprep.subr.mxu0 0.0
  %740 = vmatpush1.msra.mxu0 0.0
  %741 = vmatprep.subr.mxu0 0.0
  %742 = vmatpush1.msra.mxu0 0.0
  %743 = vmatprep.subr.mxu0 0.0
  %744 = vmatpush1.msra.mxu0 0.0
  %745 = vmatprep.subr.mxu0 0.0
  %746 = vmatpush1.msra.mxu0 0.0
  %747 = vmatprep.subr.mxu0 0.0
  %748 = vmatpush1.msra.mxu0 0.0
  %749 = vmatprep.mubr.f32.mxu0 0.0
  %750 = vmatmul.mubr.f32.gmra.mrb[0].mxu0 %v683
  %v751 = vpop.f32.mrb[0].mxu0
  %v752 = vadd.f32 0.0, %v751
  %v753 = vpop.f32.mrb[0].mxu0
  %754 = vdwg.mxu0
  %v755 = vadd.f32 %v682, %v752
  %s756 = scalar_lea.vmem [#allocation3], 40
  %v757 = vld [vmem:[%s756] sm:$0xff]
  %v758 = vsel %vm57, %v677, 0
  %760 = vmatprep.subr.mxu0 0.0
  %761 = vmatpush1.msra.mxu0 %v245
  %762 = vmatprep.subr.mxu0 0.0
  %763 = vmatpush1.msra.mxu0 %v246
  %764 = vmatprep.subr.mxu0 0.0
  %765 = vmatpush1.msra.mxu0 %v247
  %766 = vmatprep.subr.mxu0 0.0
  %767 = vmatpush1.msra.mxu0 %v248
  %768 = vmatprep.subr.mxu0 0.0
  %769 = vmatpush1.msra.mxu0 0.0
  %770 = vmatprep.subr.mxu0 0.0
  %771 = vmatpush1.msra.mxu0 0.0
  %772 = vmatprep.subr.mxu0 0.0
  %773 = vmatpush1.msra.mxu0 0.0
  %774 = vmatprep.subr.mxu0 0.0
  %775 = vmatpush1.msra.mxu0 0.0
  %776 = vmatprep.subr.mxu0 0.0
  %777 = vmatpush1.msra.mxu0 0.0
  %778 = vmatprep.subr.mxu0 0.0
  %779 = vmatpush1.msra.mxu0 0.0
  %780 = vmatprep.subr.mxu0 0.0
  %781 = vmatpush1.msra.mxu0 0.0
  %782 = vmatprep.subr.mxu0 0.0
  %783 = vmatpush1.msra.mxu0 0.0
  %784 = vmatprep.subr.mxu0 0.0
  %785 = vmatpush1.msra.mxu0 0.0
  %786 = vmatprep.subr.mxu0 0.0
  %787 = vmatpush1.msra.mxu0 0.0
  %788 = vmatprep.subr.mxu0 0.0
  %789 = vmatpush1.msra.mxu0 0.0
  %790 = vmatprep.subr.mxu0 0.0
  %791 = vmatpush1.msra.mxu0 0.0
  %792 = vmatprep.subr.mxu0 0.0
  %793 = vmatpush1.msra.mxu0 0.0
  %794 = vmatprep.subr.mxu0 0.0
  %795 = vmatpush1.msra.mxu0 0.0
  %796 = vmatprep.subr.mxu0 0.0
  %797 = vmatpush1.msra.mxu0 0.0
  %798 = vmatprep.subr.mxu0 0.0
  %799 = vmatpush1.msra.mxu0 0.0
  %800 = vmatprep.subr.mxu0 0.0
  %801 = vmatpush1.msra.mxu0 0.0
  %802 = vmatprep.subr.mxu0 0.0
  %803 = vmatpush1.msra.mxu0 0.0
  %804 = vmatprep.subr.mxu0 0.0
  %805 = vmatpush1.msra.mxu0 0.0
  %806 = vmatprep.subr.mxu0 0.0
  %807 = vmatpush1.msra.mxu0 0.0
  %808 = vmatprep.subr.mxu0 0.0
  %809 = vmatpush1.msra.mxu0 0.0
  %810 = vmatprep.subr.mxu0 0.0
  %811 = vmatpush1.msra.mxu0 0.0
  %812 = vmatprep.subr.mxu0 0.0
  %813 = vmatpush1.msra.mxu0 0.0
  %814 = vmatprep.subr.mxu0 0.0
  %815 = vmatpush1.msra.mxu0 0.0
  %816 = vmatprep.subr.mxu0 0.0
  %817 = vmatpush1.msra.mxu0 0.0
  %818 = vmatprep.subr.mxu0 0.0
  %819 = vmatpush1.msra.mxu0 0.0
  %820 = vmatprep.subr.mxu0 0.0
  %821 = vmatpush1.msra.mxu0 0.0
  %822 = vmatprep.subr.mxu0 0.0
  %823 = vmatpush1.msra.mxu0 0.0
  %824 = vmatprep.mubr.f32.mxu0 0.0
  %825 = vmatmul.mubr.f32.gmra.mrb[0].mxu0 %v758
  %v826 = vpop.f32.mrb[0].mxu0
  %v827 = vadd.f32 0.0, %v826
  %v828 = vpop.f32.mrb[0].mxu0
  %829 = vdwg.mxu0
  %v830 = vadd.f32 %v757, %v827
  %v831 = vxor.u32 %v755, 2147483648
  %v832 = vmul.f32 %v831, 1.442695
  %v833 = vpow.pop %v832
  %v834 = vadd.f32 %v833, 1.0
  %v835 = vrcp.pop %v834
  %v836 = vmul.f32 1.0, %v835
  %v837 = vtanh.pop %v755
  %v838 = vmul.f32 %v836, %v638
  %840 = vrot.lane.b32.xlu0 %v837, 64
  %v841 = vpop.permute.xlu0 %840
  %v843 = vmul.f32 %v836, %v841
  %845 = vrot.lane.b32.xlu0 %v843, 32
  %v846 = vpop.permute.xlu0 %845
  %v848 = vadd.f32 %v838, %v846
  %v849 = vtanh.pop %v848
  %851 = vrot.lane.b32.xlu0 %v849, 64
  %v852 = vpop.permute.xlu0 %851
  %v854 = vmul.f32 %v836, %v852
  %v855 = vxor.u32 %v830, 2147483648
  %v856 = vmul.f32 %v855, 1.442695
  %v857 = vpow.pop %v856
  %v858 = vadd.f32 %v857, 1.0
  %v859 = vrcp.pop %v858
  %v860 = vmul.f32 1.0, %v859
  %v861 = vtanh.pop %v830
  %v862 = vmul.f32 %v860, %v662
  %864 = vrot.lane.b32.xlu0 %v861, 64
  %v865 = vpop.permute.xlu0 %864
  %v867 = vmul.f32 %v860, %v865
  %869 = vrot.lane.b32.xlu0 %v867, 32
  %v870 = vpop.permute.xlu0 %869
  %v872 = vadd.f32 %v862, %v870
  %v873 = vtanh.pop %v872
  %875 = vrot.lane.b32.xlu0 %v873, 64
  %v876 = vpop.permute.xlu0 %875
  %v878 = vmul.f32 %v860, %v876
  %880 = vrot.lane.b32.xlu0 %v854, 32
  %v881 = vpop.permute.xlu0 %880
  %s883 = scalar_lea.vmem %s10, 16
  %884 = vst.msk [vmem:[%s883] sm:$0xff] %vm57, %v881
  %886 = vrot.lane.b32.xlu0 %v878, 32
  %v887 = vpop.permute.xlu0 %886
  %s889 = scalar_lea.vmem %s11, 40
  %890 = vst.msk [vmem:[%s889] sm:$0xff] %vm57, %v887
  %s891 = scalar_lea.vmem [#allocation2], 24
  %v892 = vld [vmem:[%s891] sm:$0xff]
  %v893 = vsel %vm57, %v881, 0
  %895 = vmatprep.subr.mxu0 0.0
  %896 = vmatpush1.msra.mxu0 %v241
  %897 = vmatprep.subr.mxu0 0.0
  %898 = vmatpush1.msra.mxu0 %v242
  %899 = vmatprep.subr.mxu0 0.0
  %900 = vmatpush1.msra.mxu0 %v243
  %901 = vmatprep.subr.mxu0 0.0
  %902 = vmatpush1.msra.mxu0 %v244
  %903 = vmatprep.subr.mxu0 0.0
  %904 = vmatpush1.msra.mxu0 0.0
  %905 = vmatprep.subr.mxu0 0.0
  %906 = vmatpush1.msra.mxu0 0.0
  %907 = vmatprep.subr.mxu0 0.0
  %908 = vmatpush1.msra.mxu0 0.0
  %909 = vmatprep.subr.mxu0 0.0
  %910 = vmatpush1.msra.mxu0 0.0
  %911 = vmatprep.subr.mxu0 0.0
  %912 = vmatpush1.msra.mxu0 0.0
  %913 = vmatprep.subr.mxu0 0.0
  %914 = vmatpush1.msra.mxu0 0.0
  %915 = vmatprep.subr.mxu0 0.0
  %916 = vmatpush1.msra.mxu0 0.0
  %917 = vmatprep.subr.mxu0 0.0
  %918 = vmatpush1.msra.mxu0 0.0
  %919 = vmatprep.subr.mxu0 0.0
  %920 = vmatpush1.msra.mxu0 0.0
  %921 = vmatprep.subr.mxu0 0.0
  %922 = vmatpush1.msra.mxu0 0.0
  %923 = vmatprep.subr.mxu0 0.0
  %924 = vmatpush1.msra.mxu0 0.0
  %925 = vmatprep.subr.mxu0 0.0
  %926 = vmatpush1.msra.mxu0 0.0
  %927 = vmatprep.subr.mxu0 0.0
  %928 = vmatpush1.msra.mxu0 0.0
  %929 = vmatprep.subr.mxu0 0.0
  %930 = vmatpush1.msra.mxu0 0.0
  %931 = vmatprep.subr.mxu0 0.0
  %932 = vmatpush1.msra.mxu0 0.0
  %933 = vmatprep.subr.mxu0 0.0
  %934 = vmatpush1.msra.mxu0 0.0
  %935 = vmatprep.subr.mxu0 0.0
  %936 = vmatpush1.msra.mxu0 0.0
  %937 = vmatprep.subr.mxu0 0.0
  %938 = vmatpush1.msra.mxu0 0.0
  %939 = vmatprep.subr.mxu0 0.0
  %940 = vmatpush1.msra.mxu0 0.0
  %941 = vmatprep.subr.mxu0 0.0
  %942 = vmatpush1.msra.mxu0 0.0
  %943 = vmatprep.subr.mxu0 0.0
  %944 = vmatpush1.msra.mxu0 0.0
  %945 = vmatprep.subr.mxu0 0.0
  %946 = vmatpush1.msra.mxu0 0.0
  %947 = vmatprep.subr.mxu0 0.0
  %948 = vmatpush1.msra.mxu0 0.0
  %949 = vmatprep.subr.mxu0 0.0
  %950 = vmatpush1.msra.mxu0 0.0
  %951 = vmatprep.subr.mxu0 0.0
  %952 = vmatpush1.msra.mxu0 0.0
  %953 = vmatprep.subr.mxu0 0.0
  %954 = vmatpush1.msra.mxu0 0.0
  %955 = vmatprep.subr.mxu0 0.0
  %956 = vmatpush1.msra.mxu0 0.0
  %957 = vmatprep.subr.mxu0 0.0
  %958 = vmatpush1.msra.mxu0 0.0
  %959 = vmatprep.mubr.f32.mxu0 0.0
  %960 = vmatmul.mubr.f32.gmra.mrb[0].mxu0 %v893
  %v961 = vpop.f32.mrb[0].mxu0
  %v962 = vadd.f32 0.0, %v961
  %v963 = vpop.f32.mrb[0].mxu0
  %964 = vdwg.mxu0
  %v965 = vadd.f32 %v892, %v962
  %s966 = scalar_lea.vmem [#allocation3], 32
  %v967 = vld [vmem:[%s966] sm:$0xff]
  %v968 = vsel %vm57, %v887, 0
  %970 = vmatprep.subr.mxu0 0.0
  %971 = vmatpush1.msra.mxu0 %v245
  %972 = vmatprep.subr.mxu0 0.0
  %973 = vmatpush1.msra.mxu0 %v246
  %974 = vmatprep.subr.mxu0 0.0
  %975 = vmatpush1.msra.mxu0 %v247
  %976 = vmatprep.subr.mxu0 0.0
  %977 = vmatpush1.msra.mxu0 %v248
  %978 = vmatprep.subr.mxu0 0.0
  %979 = vmatpush1.msra.mxu0 0.0
  %980 = vmatprep.subr.mxu0 0.0
  %981 = vmatpush1.msra.mxu0 0.0
  %982 = vmatprep.subr.mxu0 0.0
  %983 = vmatpush1.msra.mxu0 0.0
  %984 = vmatprep.subr.mxu0 0.0
  %985 = vmatpush1.msra.mxu0 0.0
  %986 = vmatprep.subr.mxu0 0.0
  %987 = vmatpush1.msra.mxu0 0.0
  %988 = vmatprep.subr.mxu0 0.0
  %989 = vmatpush1.msra.mxu0 0.0
  %990 = vmatprep.subr.mxu0 0.0
  %991 = vmatpush1.msra.mxu0 0.0
  %992 = vmatprep.subr.mxu0 0.0
  %993 = vmatpush1.msra.mxu0 0.0
  %994 = vmatprep.subr.mxu0 0.0
  %995 = vmatpush1.msra.mxu0 0.0
  %996 = vmatprep.subr.mxu0 0.0
  %997 = vmatpush1.msra.mxu0 0.0
  %998 = vmatprep.subr.mxu0 0.0
  %999 = vmatpush1.msra.mxu0 0.0
  %1000 = vmatprep.subr.mxu0 0.0
  %1001 = vmatpush1.msra.mxu0 0.0
  %1002 = vmatprep.subr.mxu0 0.0
  %1003 = vmatpush1.msra.mxu0 0.0
  %1004 = vmatprep.subr.mxu0 0.0
  %1005 = vmatpush1.msra.mxu0 0.0
  %1006 = vmatprep.subr.mxu0 0.0
  %1007 = vmatpush1.msra.mxu0 0.0
  %1008 = vmatprep.subr.mxu0 0.0
  %1009 = vmatpush1.msra.mxu0 0.0
  %1010 = vmatprep.subr.mxu0 0.0
  %1011 = vmatpush1.msra.mxu0 0.0
  %1012 = vmatprep.subr.mxu0 0.0
  %1013 = vmatpush1.msra.mxu0 0.0
  %1014 = vmatprep.subr.mxu0 0.0
  %1015 = vmatpush1.msra.mxu0 0.0
  %1016 = vmatprep.subr.mxu0 0.0
  %1017 = vmatpush1.msra.mxu0 0.0
  %1018 = vmatprep.subr.mxu0 0.0
  %1019 = vmatpush1.msra.mxu0 0.0
  %1020 = vmatprep.subr.mxu0 0.0
  %1021 = vmatpush1.msra.mxu0 0.0
  %1022 = vmatprep.subr.mxu0 0.0
  %1023 = vmatpush1.msra.mxu0 0.0
  %1024 = vmatprep.subr.mxu0 0.0
  %1025 = vmatpush1.msra.mxu0 0.0
  %1026 = vmatprep.subr.mxu0 0.0
  %1027 = vmatpush1.msra.mxu0 0.0
  %1028 = vmatprep.subr.mxu0 0.0
  %1029 = vmatpush1.msra.mxu0 0.0
  %1030 = vmatprep.subr.mxu0 0.0
  %1031 = vmatpush1.msra.mxu0 0.0
  %1032 = vmatprep.subr.mxu0 0.0
  %1033 = vmatpush1.msra.mxu0 0.0
  %1034 = vmatprep.mubr.f32.mxu0 0.0
  %1035 = vmatmul.mubr.f32.gmra.mrb[0].mxu0 %v968
  %v1036 = vpop.f32.mrb[0].mxu0
  %v1037 = vadd.f32 0.0, %v1036
  %v1038 = vpop.f32.mrb[0].mxu0
  %1039 = vdwg.mxu0
  %v1040 = vadd.f32 %v967, %v1037
  %v1041 = vxor.u32 %v965, 2147483648
  %v1042 = vmul.f32 %v1041, 1.442695
  %v1043 = vpow.pop %v1042
  %v1044 = vadd.f32 %v1043, 1.0
  %v1045 = vrcp.pop %v1044
  %v1046 = vmul.f32 1.0, %v1045
  %v1047 = vtanh.pop %v965
  %v1048 = vmul.f32 %v1046, %v848
  %1050 = vrot.lane.b32.xlu0 %v1047, 64
  %v1051 = vpop.permute.xlu0 %1050
  %v1053 = vmul.f32 %v1046, %v1051
  %1055 = vrot.lane.b32.xlu0 %v1053, 32
  %v1056 = vpop.permute.xlu0 %1055
  %v1058 = vadd.f32 %v1048, %v1056
  %v1059 = vtanh.pop %v1058
  %1061 = vrot.lane.b32.xlu0 %v1059, 64
  %v1062 = vpop.permute.xlu0 %1061
  %v1064 = vmul.f32 %v1046, %v1062
  %v1065 = vxor.u32 %v1040, 2147483648
  %v1066 = vmul.f32 %v1065, 1.442695
  %v1067 = vpow.pop %v1066
  %v1068 = vadd.f32 %v1067, 1.0
  %v1069 = vrcp.pop %v1068
  %v1070 = vmul.f32 1.0, %v1069
  %v1071 = vtanh.pop %v1040
  %v1072 = vmul.f32 %v1070, %v872
  %1074 = vrot.lane.b32.xlu0 %v1071, 64
  %v1075 = vpop.permute.xlu0 %1074
  %v1077 = vmul.f32 %v1070, %v1075
  %1079 = vrot.lane.b32.xlu0 %v1077, 32
  %v1080 = vpop.permute.xlu0 %1079
  %v1082 = vadd.f32 %v1072, %v1080
  %v1083 = vtanh.pop %v1082
  %1085 = vrot.lane.b32.xlu0 %v1083, 64
  %v1086 = vpop.permute.xlu0 %1085
  %v1088 = vmul.f32 %v1070, %v1086
  %1090 = vrot.lane.b32.xlu0 %v1064, 32
  %v1091 = vpop.permute.xlu0 %1090
  %s1093 = scalar_lea.vmem %s10, 24
  %1094 = vst.msk [vmem:[%s1093] sm:$0xff] %vm57, %v1091
  %1096 = vrot.lane.b32.xlu0 %v1088, 32
  %v1097 = vpop.permute.xlu0 %1096
  %s1099 = scalar_lea.vmem %s11, 32
  %1100 = vst.msk [vmem:[%s1099] sm:$0xff] %vm57, %v1097
  %s1101 = scalar_lea.vmem [#allocation2], 32
  %v1102 = vld [vmem:[%s1101] sm:$0xff]
  %v1103 = vsel %vm57, %v1091, 0
  %1105 = vmatprep.subr.mxu0 0.0
  %1106 = vmatpush1.msra.mxu0 %v241
  %1107 = vmatprep.subr.mxu0 0.0
  %1108 = vmatpush1.msra.mxu0 %v242
  %1109 = vmatprep.subr.mxu0 0.0
  %1110 = vmatpush1.msra.mxu0 %v243
  %1111 = vmatprep.subr.mxu0 0.0
  %1112 = vmatpush1.msra.mxu0 %v244
  %1113 = vmatprep.subr.mxu0 0.0
  %1114 = vmatpush1.msra.mxu0 0.0
  %1115 = vmatprep.subr.mxu0 0.0
  %1116 = vmatpush1.msra.mxu0 0.0
  %1117 = vmatprep.subr.mxu0 0.0
  %1118 = vmatpush1.msra.mxu0 0.0
  %1119 = vmatprep.subr.mxu0 0.0
  %1120 = vmatpush1.msra.mxu0 0.0
  %1121 = vmatprep.subr.mxu0 0.0
  %1122 = vmatpush1.msra.mxu0 0.0
  %1123 = vmatprep.subr.mxu0 0.0
  %1124 = vmatpush1.msra.mxu0 0.0
  %1125 = vmatprep.subr.mxu0 0.0
  %1126 = vmatpush1.msra.mxu0 0.0
  %1127 = vmatprep.subr.mxu0 0.0
  %1128 = vmatpush1.msra.mxu0 0.0
  %1129 = vmatprep.subr.mxu0 0.0
  %1130 = vmatpush1.msra.mxu0 0.0
  %1131 = vmatprep.subr.mxu0 0.0
  %1132 = vmatpush1.msra.mxu0 0.0
  %1133 = vmatprep.subr.mxu0 0.0
  %1134 = vmatpush1.msra.mxu0 0.0
  %1135 = vmatprep.subr.mxu0 0.0
  %1136 = vmatpush1.msra.mxu0 0.0
  %1137 = vmatprep.subr.mxu0 0.0
  %1138 = vmatpush1.msra.mxu0 0.0
  %1139 = vmatprep.subr.mxu0 0.0
  %1140 = vmatpush1.msra.mxu0 0.0
  %1141 = vmatprep.subr.mxu0 0.0
  %1142 = vmatpush1.msra.mxu0 0.0
  %1143 = vmatprep.subr.mxu0 0.0
  %1144 = vmatpush1.msra.mxu0 0.0
  %1145 = vmatprep.subr.mxu0 0.0
  %1146 = vmatpush1.msra.mxu0 0.0
  %1147 = vmatprep.subr.mxu0 0.0
  %1148 = vmatpush1.msra.mxu0 0.0
  %1149 = vmatprep.subr.mxu0 0.0
  %1150 = vmatpush1.msra.mxu0 0.0
  %1151 = vmatprep.subr.mxu0 0.0
  %1152 = vmatpush1.msra.mxu0 0.0
  %1153 = vmatprep.subr.mxu0 0.0
  %1154 = vmatpush1.msra.mxu0 0.0
  %1155 = vmatprep.subr.mxu0 0.0
  %1156 = vmatpush1.msra.mxu0 0.0
  %1157 = vmatprep.subr.mxu0 0.0
  %1158 = vmatpush1.msra.mxu0 0.0
  %1159 = vmatprep.subr.mxu0 0.0
  %1160 = vmatpush1.msra.mxu0 0.0
  %1161 = vmatprep.subr.mxu0 0.0
  %1162 = vmatpush1.msra.mxu0 0.0
  %1163 = vmatprep.subr.mxu0 0.0
  %1164 = vmatpush1.msra.mxu0 0.0
  %1165 = vmatprep.subr.mxu0 0.0
  %1166 = vmatpush1.msra.mxu0 0.0
  %1167 = vmatprep.subr.mxu0 0.0
  %1168 = vmatpush1.msra.mxu0 0.0
  %1169 = vmatprep.mubr.f32.mxu0 0.0
  %1170 = vmatmul.mubr.f32.gmra.mrb[0].mxu0 %v1103
  %v1171 = vpop.f32.mrb[0].mxu0
  %v1172 = vadd.f32 0.0, %v1171
  %v1173 = vpop.f32.mrb[0].mxu0
  %1174 = vdwg.mxu0
  %v1175 = vadd.f32 %v1102, %v1172
  %s1176 = scalar_lea.vmem [#allocation3], 24
  %v1177 = vld [vmem:[%s1176] sm:$0xff]
  %v1178 = vsel %vm57, %v1097, 0
  %1180 = vmatprep.subr.mxu0 0.0
  %1181 = vmatpush1.msra.mxu0 %v245
  %1182 = vmatprep.subr.mxu0 0.0
  %1183 = vmatpush1.msra.mxu0 %v246
  %1184 = vmatprep.subr.mxu0 0.0
  %1185 = vmatpush1.msra.mxu0 %v247
  %1186 = vmatprep.subr.mxu0 0.0
  %1187 = vmatpush1.msra.mxu0 %v248
  %1188 = vmatprep.subr.mxu0 0.0
  %1189 = vmatpush1.msra.mxu0 0.0
  %1190 = vmatprep.subr.mxu0 0.0
  %1191 = vmatpush1.msra.mxu0 0.0
  %1192 = vmatprep.subr.mxu0 0.0
  %1193 = vmatpush1.msra.mxu0 0.0
  %1194 = vmatprep.subr.mxu0 0.0
  %1195 = vmatpush1.msra.mxu0 0.0
  %1196 = vmatprep.subr.mxu0 0.0
  %1197 = vmatpush1.msra.mxu0 0.0
  %1198 = vmatprep.subr.mxu0 0.0
  %1199 = vmatpush1.msra.mxu0 0.0
  %1200 = vmatprep.subr.mxu0 0.0
  %1201 = vmatpush1.msra.mxu0 0.0
  %1202 = vmatprep.subr.mxu0 0.0
  %1203 = vmatpush1.msra.mxu0 0.0
  %1204 = vmatprep.subr.mxu0 0.0
  %1205 = vmatpush1.msra.mxu0 0.0
  %1206 = vmatprep.subr.mxu0 0.0
  %1207 = vmatpush1.msra.mxu0 0.0
  %1208 = vmatprep.subr.mxu0 0.0
  %1209 = vmatpush1.msra.mxu0 0.0
  %1210 = vmatprep.subr.mxu0 0.0
  %1211 = vmatpush1.msra.mxu0 0.0
  %1212 = vmatprep.subr.mxu0 0.0
  %1213 = vmatpush1.msra.mxu0 0.0
  %1214 = vmatprep.subr.mxu0 0.0
  %1215 = vmatpush1.msra.mxu0 0.0
  %1216 = vmatprep.subr.mxu0 0.0
  %1217 = vmatpush1.msra.mxu0 0.0
  %1218 = vmatprep.subr.mxu0 0.0
  %1219 = vmatpush1.msra.mxu0 0.0
  %1220 = vmatprep.subr.mxu0 0.0
  %1221 = vmatpush1.msra.mxu0 0.0
  %1222 = vmatprep.subr.mxu0 0.0
  %1223 = vmatpush1.msra.mxu0 0.0
  %1224 = vmatprep.subr.mxu0 0.0
  %1225 = vmatpush1.msra.mxu0 0.0
  %1226 = vmatprep.subr.mxu0 0.0
  %1227 = vmatpush1.msra.mxu0 0.0
  %1228 = vmatprep.subr.mxu0 0.0
  %1229 = vmatpush1.msra.mxu0 0.0
  %1230 = vmatprep.subr.mxu0 0.0
  %1231 = vmatpush1.msra.mxu0 0.0
  %1232 = vmatprep.subr.mxu0 0.0
  %1233 = vmatpush1.msra.mxu0 0.0
  %1234 = vmatprep.subr.mxu0 0.0
  %1235 = vmatpush1.msra.mxu0 0.0
  %1236 = vmatprep.subr.mxu0 0.0
  %1237 = vmatpush1.msra.mxu0 0.0
  %1238 = vmatprep.subr.mxu0 0.0
  %1239 = vmatpush1.msra.mxu0 0.0
  %1240 = vmatprep.subr.mxu0 0.0
  %1241 = vmatpush1.msra.mxu0 0.0
  %1242 = vmatprep.subr.mxu0 0.0
  %1243 = vmatpush1.msra.mxu0 0.0
  %1244 = vmatprep.mubr.f32.mxu0 0.0
  %1245 = vmatmul.mubr.f32.gmra.mrb[0].mxu0 %v1178
  %v1246 = vpop.f32.mrb[0].mxu0
  %v1247 = vadd.f32 0.0, %v1246
  %v1248 = vpop.f32.mrb[0].mxu0
  %1249 = vdwg.mxu0
  %v1250 = vadd.f32 %v1177, %v1247
  %v1251 = vxor.u32 %v1175, 2147483648
  %v1252 = vmul.f32 %v1251, 1.442695
  %v1253 = vpow.pop %v1252
  %v1254 = vadd.f32 %v1253, 1.0
  %v1255 = vrcp.pop %v1254
  %v1256 = vmul.f32 1.0, %v1255
  %v1257 = vtanh.pop %v1175
  %v1258 = vmul.f32 %v1256, %v1058
  %1260 = vrot.lane.b32.xlu0 %v1257, 64
  %v1261 = vpop.permute.xlu0 %1260
  %v1263 = vmul.f32 %v1256, %v1261
  %1265 = vrot.lane.b32.xlu0 %v1263, 32
  %v1266 = vpop.permute.xlu0 %1265
  %v1268 = vadd.f32 %v1258, %v1266
  %v1269 = vtanh.pop %v1268
  %1271 = vrot.lane.b32.xlu0 %v1269, 64
  %v1272 = vpop.permute.xlu0 %1271
  %v1274 = vmul.f32 %v1256, %v1272
  %v1275 = vxor.u32 %v1250, 2147483648
  %v1276 = vmul.f32 %v1275, 1.442695
  %v1277 = vpow.pop %v1276
  %v1278 = vadd.f32 %v1277, 1.0
  %v1279 = vrcp.pop %v1278
  %v1280 = vmul.f32 1.0, %v1279
  %v1281 = vtanh.pop %v1250
  %v1282 = vmul.f32 %v1280, %v1082
  %1284 = vrot.lane.b32.xlu0 %v1281, 64
  %v1285 = vpop.permute.xlu0 %1284
  %v1287 = vmul.f32 %v1280, %v1285
  %1289 = vrot.lane.b32.xlu0 %v1287, 32
  %v1290 = vpop.permute.xlu0 %1289
  %v1292 = vadd.f32 %v1282, %v1290
  %v1293 = vtanh.pop %v1292
  %1295 = vrot.lane.b32.xlu0 %v1293, 64
  %v1296 = vpop.permute.xlu0 %1295
  %v1298 = vmul.f32 %v1280, %v1296
  %1300 = vrot.lane.b32.xlu0 %v1274, 32
  %v1301 = vpop.permute.xlu0 %1300
  %s1303 = scalar_lea.vmem %s10, 32
  %1304 = vst.msk [vmem:[%s1303] sm:$0xff] %vm57, %v1301
  %1306 = vrot.lane.b32.xlu0 %v1298, 32
  %v1307 = vpop.permute.xlu0 %1306
  %s1309 = scalar_lea.vmem %s11, 24
  %1310 = vst.msk [vmem:[%s1309] sm:$0xff] %vm57, %v1307
  %s1311 = scalar_lea.vmem [#allocation2], 40
  %v1312 = vld [vmem:[%s1311] sm:$0xff]
  %v1313 = vsel %vm57, %v1301, 0
  %1315 = vmatprep.subr.mxu0 0.0
  %1316 = vmatpush1.msra.mxu0 %v241
  %1317 = vmatprep.subr.mxu0 0.0
  %1318 = vmatpush1.msra.mxu0 %v242
  %1319 = vmatprep.subr.mxu0 0.0
  %1320 = vmatpush1.msra.mxu0 %v243
  %1321 = vmatprep.subr.mxu0 0.0
  %1322 = vmatpush1.msra.mxu0 %v244
  %1323 = vmatprep.subr.mxu0 0.0
  %1324 = vmatpush1.msra.mxu0 0.0
  %1325 = vmatprep.subr.mxu0 0.0
  %1326 = vmatpush1.msra.mxu0 0.0
  %1327 = vmatprep.subr.mxu0 0.0
  %1328 = vmatpush1.msra.mxu0 0.0
  %1329 = vmatprep.subr.mxu0 0.0
  %1330 = vmatpush1.msra.mxu0 0.0
  %1331 = vmatprep.subr.mxu0 0.0
  %1332 = vmatpush1.msra.mxu0 0.0
  %1333 = vmatprep.subr.mxu0 0.0
  %1334 = vmatpush1.msra.mxu0 0.0
  %1335 = vmatprep.subr.mxu0 0.0
  %1336 = vmatpush1.msra.mxu0 0.0
  %1337 = vmatprep.subr.mxu0 0.0
  %1338 = vmatpush1.msra.mxu0 0.0
  %1339 = vmatprep.subr.mxu0 0.0
  %1340 = vmatpush1.msra.mxu0 0.0
  %1341 = vmatprep.subr.mxu0 0.0
  %1342 = vmatpush1.msra.mxu0 0.0
  %1343 = vmatprep.subr.mxu0 0.0
  %1344 = vmatpush1.msra.mxu0 0.0
  %1345 = vmatprep.subr.mxu0 0.0
  %1346 = vmatpush1.msra.mxu0 0.0
  %1347 = vmatprep.subr.mxu0 0.0
  %1348 = vmatpush1.msra.mxu0 0.0
  %1349 = vmatprep.subr.mxu0 0.0
  %1350 = vmatpush1.msra.mxu0 0.0
  %1351 = vmatprep.subr.mxu0 0.0
  %1352 = vmatpush1.msra.mxu0 0.0
  %1353 = vmatprep.subr.mxu0 0.0
  %1354 = vmatpush1.msra.mxu0 0.0
  %1355 = vmatprep.subr.mxu0 0.0
  %1356 = vmatpush1.msra.mxu0 0.0
  %1357 = vmatprep.subr.mxu0 0.0
  %1358 = vmatpush1.msra.mxu0 0.0
  %1359 = vmatprep.subr.mxu0 0.0
  %1360 = vmatpush1.msra.mxu0 0.0
  %1361 = vmatprep.subr.mxu0 0.0
  %1362 = vmatpush1.msra.mxu0 0.0
  %1363 = vmatprep.subr.mxu0 0.0
  %1364 = vmatpush1.msra.mxu0 0.0
  %1365 = vmatprep.subr.mxu0 0.0
  %1366 = vmatpush1.msra.mxu0 0.0
  %1367 = vmatprep.subr.mxu0 0.0
  %1368 = vmatpush1.msra.mxu0 0.0
  %1369 = vmatprep.subr.mxu0 0.0
  %1370 = vmatpush1.msra.mxu0 0.0
  %1371 = vmatprep.subr.mxu0 0.0
  %1372 = vmatpush1.msra.mxu0 0.0
  %1373 = vmatprep.subr.mxu0 0.0
  %1374 = vmatpush1.msra.mxu0 0.0
  %1375 = vmatprep.subr.mxu0 0.0
  %1376 = vmatpush1.msra.mxu0 0.0
  %1377 = vmatprep.subr.mxu0 0.0
  %1378 = vmatpush1.msra.mxu0 0.0
  %1379 = vmatprep.mubr.f32.mxu0 0.0
  %1380 = vmatmul.mubr.f32.gmra.mrb[0].mxu0 %v1313
  %v1381 = vpop.f32.mrb[0].mxu0
  %v1382 = vadd.f32 0.0, %v1381
  %v1383 = vpop.f32.mrb[0].mxu0
  %1384 = vdwg.mxu0
  %v1385 = vadd.f32 %v1312, %v1382
  %s1386 = scalar_lea.vmem [#allocation3], 16
  %v1387 = vld [vmem:[%s1386] sm:$0xff]
  %v1388 = vsel %vm57, %v1307, 0
  %1390 = vmatprep.subr.mxu0 0.0
  %1391 = vmatpush1.msra.mxu0 %v245
  %1392 = vmatprep.subr.mxu0 0.0
  %1393 = vmatpush1.msra.mxu0 %v246
  %1394 = vmatprep.subr.mxu0 0.0
  %1395 = vmatpush1.msra.mxu0 %v247
  %1396 = vmatprep.subr.mxu0 0.0
  %1397 = vmatpush1.msra.mxu0 %v248
  %1398 = vmatprep.subr.mxu0 0.0
  %1399 = vmatpush1.msra.mxu0 0.0
  %1400 = vmatprep.subr.mxu0 0.0
  %1401 = vmatpush1.msra.mxu0 0.0
  %1402 = vmatprep.subr.mxu0 0.0
  %1403 = vmatpush1.msra.mxu0 0.0
  %1404 = vmatprep.subr.mxu0 0.0
  %1405 = vmatpush1.msra.mxu0 0.0
  %1406 = vmatprep.subr.mxu0 0.0
  %1407 = vmatpush1.msra.mxu0 0.0
  %1408 = vmatprep.subr.mxu0 0.0
  %1409 = vmatpush1.msra.mxu0 0.0
  %1410 = vmatprep.subr.mxu0 0.0
  %1411 = vmatpush1.msra.mxu0 0.0
  %1412 = vmatprep.subr.mxu0 0.0
  %1413 = vmatpush1.msra.mxu0 0.0
  %1414 = vmatprep.subr.mxu0 0.0
  %1415 = vmatpush1.msra.mxu0 0.0
  %1416 = vmatprep.subr.mxu0 0.0
  %1417 = vmatpush1.msra.mxu0 0.0
  %1418 = vmatprep.subr.mxu0 0.0
  %1419 = vmatpush1.msra.mxu0 0.0
  %1420 = vmatprep.subr.mxu0 0.0
  %1421 = vmatpush1.msra.mxu0 0.0
  %1422 = vmatprep.subr.mxu0 0.0
  %1423 = vmatpush1.msra.mxu0 0.0
  %1424 = vmatprep.subr.mxu0 0.0
  %1425 = vmatpush1.msra.mxu0 0.0
  %1426 = vmatprep.subr.mxu0 0.0
  %1427 = vmatpush1.msra.mxu0 0.0
  %1428 = vmatprep.subr.mxu0 0.0
  %1429 = vmatpush1.msra.mxu0 0.0
  %1430 = vmatprep.subr.mxu0 0.0
  %1431 = vmatpush1.msra.mxu0 0.0
  %1432 = vmatprep.subr.mxu0 0.0
  %1433 = vmatpush1.msra.mxu0 0.0
  %1434 = vmatprep.subr.mxu0 0.0
  %1435 = vmatpush1.msra.mxu0 0.0
  %1436 = vmatprep.subr.mxu0 0.0
  %1437 = vmatpush1.msra.mxu0 0.0
  %1438 = vmatprep.subr.mxu0 0.0
  %1439 = vmatpush1.msra.mxu0 0.0
  %1440 = vmatprep.subr.mxu0 0.0
  %1441 = vmatpush1.msra.mxu0 0.0
  %1442 = vmatprep.subr.mxu0 0.0
  %1443 = vmatpush1.msra.mxu0 0.0
  %1444 = vmatprep.subr.mxu0 0.0
  %1445 = vmatpush1.msra.mxu0 0.0
  %1446 = vmatprep.subr.mxu0 0.0
  %1447 = vmatpush1.msra.mxu0 0.0
  %1448 = vmatprep.subr.mxu0 0.0
  %1449 = vmatpush1.msra.mxu0 0.0
  %1450 = vmatprep.subr.mxu0 0.0
  %1451 = vmatpush1.msra.mxu0 0.0
  %1452 = vmatprep.subr.mxu0 0.0
  %1453 = vmatpush1.msra.mxu0 0.0
  %1454 = vmatprep.mubr.f32.mxu0 0.0
  %1455 = vmatmul.mubr.f32.gmra.mrb[0].mxu0 %v1388
  %v1456 = vpop.f32.mrb[0].mxu0
  %v1457 = vadd.f32 0.0, %v1456
  %v1458 = vpop.f32.mrb[0].mxu0
  %1459 = vdwg.mxu0
  %v1460 = vadd.f32 %v1387, %v1457
  %v1461 = vxor.u32 %v1385, 2147483648
  %v1462 = vmul.f32 %v1461, 1.442695
  %v1463 = vpow.pop %v1462
  %v1464 = vadd.f32 %v1463, 1.0
  %v1465 = vrcp.pop %v1464
  %v1466 = vmul.f32 1.0, %v1465
  %v1467 = vtanh.pop %v1385
  %v1468 = vmul.f32 %v1466, %v1268
  %1470 = vrot.lane.b32.xlu0 %v1467, 64
  %v1471 = vpop.permute.xlu0 %1470
  %v1473 = vmul.f32 %v1466, %v1471
  %1475 = vrot.lane.b32.xlu0 %v1473, 32
  %v1476 = vpop.permute.xlu0 %1475
  %v1478 = vadd.f32 %v1468, %v1476
  %v1479 = vtanh.pop %v1478
  %1481 = vrot.lane.b32.xlu0 %v1479, 64
  %v1482 = vpop.permute.xlu0 %1481
  %v1484 = vmul.f32 %v1466, %v1482
  %v1485 = vxor.u32 %v1460, 2147483648
  %v1486 = vmul.f32 %v1485, 1.442695
  %v1487 = vpow.pop %v1486
  %v1488 = vadd.f32 %v1487, 1.0
  %v1489 = vrcp.pop %v1488
  %v1490 = vmul.f32 1.0, %v1489
  %v1491 = vtanh.pop %v1460
  %v1492 = vmul.f32 %v1490, %v1292
  %1494 = vrot.lane.b32.xlu0 %v1491, 64
  %v1495 = vpop.permute.xlu0 %1494
  %v1497 = vmul.f32 %v1490, %v1495
  %1499 = vrot.lane.b32.xlu0 %v1497, 32
  %v1500 = vpop.permute.xlu0 %1499
  %v1502 = vadd.f32 %v1492, %v1500
  %v1503 = vtanh.pop %v1502
  %1505 = vrot.lane.b32.xlu0 %v1503, 64
  %v1506 = vpop.permute.xlu0 %1505
  %v1508 = vmul.f32 %v1490, %v1506
  %1510 = vrot.lane.b32.xlu0 %v1484, 32
  %v1511 = vpop.permute.xlu0 %1510
  %s1513 = scalar_lea.vmem %s10, 40
  %1514 = vst.msk [vmem:[%s1513] sm:$0xff] %vm57, %v1511
  %1516 = vrot.lane.b32.xlu0 %v1508, 32
  %v1517 = vpop.permute.xlu0 %1516
  %s1519 = scalar_lea.vmem %s11, 16
  %1520 = vst.msk [vmem:[%s1519] sm:$0xff] %vm57, %v1517
  %s1521 = scalar_lea.vmem [#allocation2], 48
  %v1522 = vld [vmem:[%s1521] sm:$0xff]
  %v1523 = vsel %vm57, %v1511, 0
  %1525 = vmatprep.subr.mxu0 0.0
  %1526 = vmatpush1.msra.mxu0 %v241
  %1527 = vmatprep.subr.mxu0 0.0
  %1528 = vmatpush1.msra.mxu0 %v242
  %1529 = vmatprep.subr.mxu0 0.0
  %1530 = vmatpush1.msra.mxu0 %v243
  %1531 = vmatprep.subr.mxu0 0.0
  %1532 = vmatpush1.msra.mxu0 %v244
  %1533 = vmatprep.subr.mxu0 0.0
  %1534 = vmatpush1.msra.mxu0 0.0
  %1535 = vmatprep.subr.mxu0 0.0
  %1536 = vmatpush1.msra.mxu0 0.0
  %1537 = vmatprep.subr.mxu0 0.0
  %1538 = vmatpush1.msra.mxu0 0.0
  %1539 = vmatprep.subr.mxu0 0.0
  %1540 = vmatpush1.msra.mxu0 0.0
  %1541 = vmatprep.subr.mxu0 0.0
  %1542 = vmatpush1.msra.mxu0 0.0
  %1543 = vmatprep.subr.mxu0 0.0
  %1544 = vmatpush1.msra.mxu0 0.0
  %1545 = vmatprep.subr.mxu0 0.0
  %1546 = vmatpush1.msra.mxu0 0.0
  %1547 = vmatprep.subr.mxu0 0.0
  %1548 = vmatpush1.msra.mxu0 0.0
  %1549 = vmatprep.subr.mxu0 0.0
  %1550 = vmatpush1.msra.mxu0 0.0
  %1551 = vmatprep.subr.mxu0 0.0
  %1552 = vmatpush1.msra.mxu0 0.0
  %1553 = vmatprep.subr.mxu0 0.0
  %1554 = vmatpush1.msra.mxu0 0.0
  %1555 = vmatprep.subr.mxu0 0.0
  %1556 = vmatpush1.msra.mxu0 0.0
  %1557 = vmatprep.subr.mxu0 0.0
  %1558 = vmatpush1.msra.mxu0 0.0
  %1559 = vmatprep.subr.mxu0 0.0
  %1560 = vmatpush1.msra.mxu0 0.0
  %1561 = vmatprep.subr.mxu0 0.0
  %1562 = vmatpush1.msra.mxu0 0.0
  %1563 = vmatprep.subr.mxu0 0.0
  %1564 = vmatpush1.msra.mxu0 0.0
  %1565 = vmatprep.subr.mxu0 0.0
  %1566 = vmatpush1.msra.mxu0 0.0
  %1567 = vmatprep.subr.mxu0 0.0
  %1568 = vmatpush1.msra.mxu0 0.0
  %1569 = vmatprep.subr.mxu0 0.0
  %1570 = vmatpush1.msra.mxu0 0.0
  %1571 = vmatprep.subr.mxu0 0.0
  %1572 = vmatpush1.msra.mxu0 0.0
  %1573 = vmatprep.subr.mxu0 0.0
  %1574 = vmatpush1.msra.mxu0 0.0
  %1575 = vmatprep.subr.mxu0 0.0
  %1576 = vmatpush1.msra.mxu0 0.0
  %1577 = vmatprep.subr.mxu0 0.0
  %1578 = vmatpush1.msra.mxu0 0.0
  %1579 = vmatprep.subr.mxu0 0.0
  %1580 = vmatpush1.msra.mxu0 0.0
  %1581 = vmatprep.subr.mxu0 0.0
  %1582 = vmatpush1.msra.mxu0 0.0
  %1583 = vmatprep.subr.mxu0 0.0
  %1584 = vmatpush1.msra.mxu0 0.0
  %1585 = vmatprep.subr.mxu0 0.0
  %1586 = vmatpush1.msra.mxu0 0.0
  %1587 = vmatprep.subr.mxu0 0.0
  %1588 = vmatpush1.msra.mxu0 0.0
  %1589 = vmatprep.mubr.f32.mxu0 0.0
  %1590 = vmatmul.mubr.f32.gmra.mrb[0].mxu0 %v1523
  %v1591 = vpop.f32.mrb[0].mxu0
  %v1592 = vadd.f32 0.0, %v1591
  %v1593 = vpop.f32.mrb[0].mxu0
  %1594 = vdwg.mxu0
  %v1595 = vadd.f32 %v1522, %v1592
  %s1596 = scalar_lea.vmem [#allocation3], 8
  %v1597 = vld [vmem:[%s1596] sm:$0xff]
  %v1598 = vsel %vm57, %v1517, 0
  %1600 = vmatprep.subr.mxu0 0.0
  %1601 = vmatpush1.msra.mxu0 %v245
  %1602 = vmatprep.subr.mxu0 0.0
  %1603 = vmatpush1.msra.mxu0 %v246
  %1604 = vmatprep.subr.mxu0 0.0
  %1605 = vmatpush1.msra.mxu0 %v247
  %1606 = vmatprep.subr.mxu0 0.0
  %1607 = vmatpush1.msra.mxu0 %v248
  %1608 = vmatprep.subr.mxu0 0.0
  %1609 = vmatpush1.msra.mxu0 0.0
  %1610 = vmatprep.subr.mxu0 0.0
  %1611 = vmatpush1.msra.mxu0 0.0
  %1612 = vmatprep.subr.mxu0 0.0
  %1613 = vmatpush1.msra.mxu0 0.0
  %1614 = vmatprep.subr.mxu0 0.0
  %1615 = vmatpush1.msra.mxu0 0.0
  %1616 = vmatprep.subr.mxu0 0.0
  %1617 = vmatpush1.msra.mxu0 0.0
  %1618 = vmatprep.subr.mxu0 0.0
  %1619 = vmatpush1.msra.mxu0 0.0
  %1620 = vmatprep.subr.mxu0 0.0
  %1621 = vmatpush1.msra.mxu0 0.0
  %1622 = vmatprep.subr.mxu0 0.0
  %1623 = vmatpush1.msra.mxu0 0.0
  %1624 = vmatprep.subr.mxu0 0.0
  %1625 = vmatpush1.msra.mxu0 0.0
  %1626 = vmatprep.subr.mxu0 0.0
  %1627 = vmatpush1.msra.mxu0 0.0
  %1628 = vmatprep.subr.mxu0 0.0
  %1629 = vmatpush1.msra.mxu0 0.0
  %1630 = vmatprep.subr.mxu0 0.0
  %1631 = vmatpush1.msra.mxu0 0.0
  %1632 = vmatprep.subr.mxu0 0.0
  %1633 = vmatpush1.msra.mxu0 0.0
  %1634 = vmatprep.subr.mxu0 0.0
  %1635 = vmatpush1.msra.mxu0 0.0
  %1636 = vmatprep.subr.mxu0 0.0
  %1637 = vmatpush1.msra.mxu0 0.0
  %1638 = vmatprep.subr.mxu0 0.0
  %1639 = vmatpush1.msra.mxu0 0.0
  %1640 = vmatprep.subr.mxu0 0.0
  %1641 = vmatpush1.msra.mxu0 0.0
  %1642 = vmatprep.subr.mxu0 0.0
  %1643 = vmatpush1.msra.mxu0 0.0
  %1644 = vmatprep.subr.mxu0 0.0
  %1645 = vmatpush1.msra.mxu0 0.0
  %1646 = vmatprep.subr.mxu0 0.0
  %1647 = vmatpush1.msra.mxu0 0.0
  %1648 = vmatprep.subr.mxu0 0.0
  %1649 = vmatpush1.msra.mxu0 0.0
  %1650 = vmatprep.subr.mxu0 0.0
  %1651 = vmatpush1.msra.mxu0 0.0
  %1652 = vmatprep.subr.mxu0 0.0
  %1653 = vmatpush1.msra.mxu0 0.0
  %1654 = vmatprep.subr.mxu0 0.0
  %1655 = vmatpush1.msra.mxu0 0.0
  %1656 = vmatprep.subr.mxu0 0.0
  %1657 = vmatpush1.msra.mxu0 0.0
  %1658 = vmatprep.subr.mxu0 0.0
  %1659 = vmatpush1.msra.mxu0 0.0
  %1660 = vmatprep.subr.mxu0 0.0
  %1661 = vmatpush1.msra.mxu0 0.0
  %1662 = vmatprep.subr.mxu0 0.0
  %1663 = vmatpush1.msra.mxu0 0.0
  %1664 = vmatprep.mubr.f32.mxu0 0.0
  %1665 = vmatmul.mubr.f32.gmra.mrb[0].mxu0 %v1598
  %v1666 = vpop.f32.mrb[0].mxu0
  %v1667 = vadd.f32 0.0, %v1666
  %v1668 = vpop.f32.mrb[0].mxu0
  %1669 = vdwg.mxu0
  %v1670 = vadd.f32 %v1597, %v1667
  %v1671 = vxor.u32 %v1595, 2147483648
  %v1672 = vmul.f32 %v1671, 1.442695
  %v1673 = vpow.pop %v1672
  %v1674 = vadd.f32 %v1673, 1.0
  %v1675 = vrcp.pop %v1674
  %v1676 = vmul.f32 1.0, %v1675
  %v1677 = vtanh.pop %v1595
  %v1678 = vmul.f32 %v1676, %v1478
  %1680 = vrot.lane.b32.xlu0 %v1677, 64
  %v1681 = vpop.permute.xlu0 %1680
  %v1683 = vmul.f32 %v1676, %v1681
  %1685 = vrot.lane.b32.xlu0 %v1683, 32
  %v1686 = vpop.permute.xlu0 %1685
  %v1688 = vadd.f32 %v1678, %v1686
  %v1689 = vtanh.pop %v1688
  %1691 = vrot.lane.b32.xlu0 %v1689, 64
  %v1692 = vpop.permute.xlu0 %1691
  %v1694 = vmul.f32 %v1676, %v1692
  %v1695 = vxor.u32 %v1670, 2147483648
  %v1696 = vmul.f32 %v1695, 1.442695
  %v1697 = vpow.pop %v1696
  %v1698 = vadd.f32 %v1697, 1.0
  %v1699 = vrcp.pop %v1698
  %v1700 = vmul.f32 1.0, %v1699
  %v1701 = vtanh.pop %v1670
  %v1702 = vmul.f32 %v1700, %v1502
  %1704 = vrot.lane.b32.xlu0 %v1701, 64
  %v1705 = vpop.permute.xlu0 %1704
  %v1707 = vmul.f32 %v1700, %v1705
  %1709 = vrot.lane.b32.xlu0 %v1707, 32
  %v1710 = vpop.permute.xlu0 %1709
  %v1712 = vadd.f32 %v1702, %v1710
  %v1713 = vtanh.pop %v1712
  %1715 = vrot.lane.b32.xlu0 %v1713, 64
  %v1716 = vpop.permute.xlu0 %1715
  %v1718 = vmul.f32 %v1700, %v1716
  %1720 = vrot.lane.b32.xlu0 %v1694, 32
  %v1721 = vpop.permute.xlu0 %1720
  %s1723 = scalar_lea.vmem %s10, 48
  %1724 = vst.msk [vmem:[%s1723] sm:$0xff] %vm57, %v1721
  %1726 = vrot.lane.b32.xlu0 %v1718, 32
  %v1727 = vpop.permute.xlu0 %1726
  %s1729 = scalar_lea.vmem %s11, 8
  %1730 = vst.msk [vmem:[%s1729] sm:$0xff] %vm57, %v1727
  %s1731 = scalar_lea.vmem [#allocation2], 56
  %v1732 = vld [vmem:[%s1731] sm:$0xff]
  %v1733 = vsel %vm57, %v1721, 0
  %1735 = vmatprep.subr.mxu0 0.0
  %1736 = vmatpush1.msra.mxu0 %v241
  %1737 = vmatprep.subr.mxu0 0.0
  %1738 = vmatpush1.msra.mxu0 %v242
  %1739 = vmatprep.subr.mxu0 0.0
  %1740 = vmatpush1.msra.mxu0 %v243
  %1741 = vmatprep.subr.mxu0 0.0
  %1742 = vmatpush1.msra.mxu0 %v244
  %1743 = vmatprep.subr.mxu0 0.0
  %1744 = vmatpush1.msra.mxu0 0.0
  %1745 = vmatprep.subr.mxu0 0.0
  %1746 = vmatpush1.msra.mxu0 0.0
  %1747 = vmatprep.subr.mxu0 0.0
  %1748 = vmatpush1.msra.mxu0 0.0
  %1749 = vmatprep.subr.mxu0 0.0
  %1750 = vmatpush1.msra.mxu0 0.0
  %1751 = vmatprep.subr.mxu0 0.0
  %1752 = vmatpush1.msra.mxu0 0.0
  %1753 = vmatprep.subr.mxu0 0.0
  %1754 = vmatpush1.msra.mxu0 0.0
  %1755 = vmatprep.subr.mxu0 0.0
  %1756 = vmatpush1.msra.mxu0 0.0
  %1757 = vmatprep.subr.mxu0 0.0
  %1758 = vmatpush1.msra.mxu0 0.0
  %1759 = vmatprep.subr.mxu0 0.0
  %1760 = vmatpush1.msra.mxu0 0.0
  %1761 = vmatprep.subr.mxu0 0.0
  %1762 = vmatpush1.msra.mxu0 0.0
  %1763 = vmatprep.subr.mxu0 0.0
  %1764 = vmatpush1.msra.mxu0 0.0
  %1765 = vmatprep.subr.mxu0 0.0
  %1766 = vmatpush1.msra.mxu0 0.0
  %1767 = vmatprep.subr.mxu0 0.0
  %1768 = vmatpush1.msra.mxu0 0.0
  %1769 = vmatprep.subr.mxu0 0.0
  %1770 = vmatpush1.msra.mxu0 0.0
  %1771 = vmatprep.subr.mxu0 0.0
  %1772 = vmatpush1.msra.mxu0 0.0
  %1773 = vmatprep.subr.mxu0 0.0
  %1774 = vmatpush1.msra.mxu0 0.0
  %1775 = vmatprep.subr.mxu0 0.0
  %1776 = vmatpush1.msra.mxu0 0.0
  %1777 = vmatprep.subr.mxu0 0.0
  %1778 = vmatpush1.msra.mxu0 0.0
  %1779 = vmatprep.subr.mxu0 0.0
  %1780 = vmatpush1.msra.mxu0 0.0
  %1781 = vmatprep.subr.mxu0 0.0
  %1782 = vmatpush1.msra.mxu0 0.0
  %1783 = vmatprep.subr.mxu0 0.0
  %1784 = vmatpush1.msra.mxu0 0.0
  %1785 = vmatprep.subr.mxu0 0.0
  %1786 = vmatpush1.msra.mxu0 0.0
  %1787 = vmatprep.subr.mxu0 0.0
  %1788 = vmatpush1.msra.mxu0 0.0
  %1789 = vmatprep.subr.mxu0 0.0
  %1790 = vmatpush1.msra.mxu0 0.0
  %1791 = vmatprep.subr.mxu0 0.0
  %1792 = vmatpush1.msra.mxu0 0.0
  %1793 = vmatprep.subr.mxu0 0.0
  %1794 = vmatpush1.msra.mxu0 0.0
  %1795 = vmatprep.subr.mxu0 0.0
  %1796 = vmatpush1.msra.mxu0 0.0
  %1797 = vmatprep.subr.mxu0 0.0
  %1798 = vmatpush1.msra.mxu0 0.0
  %1799 = vmatprep.mubr.f32.mxu0 0.0
  %1800 = vmatmul.mubr.f32.gmra.mrb[0].mxu0 %v1733
  %v1801 = vpop.f32.mrb[0].mxu0
  %v1802 = vadd.f32 0.0, %v1801
  %v1803 = vpop.f32.mrb[0].mxu0
  %1804 = vdwg.mxu0
  %v1805 = vadd.f32 %v1732, %v1802
  %v1806 = vld [vmem:[#allocation3] sm:$0xff]
  %v1807 = vsel %vm57, %v1727, 0
  %1809 = vmatprep.subr.mxu0 0.0
  %1810 = vmatpush1.msra.mxu0 %v245
  %1811 = vmatprep.subr.mxu0 0.0
  %1812 = vmatpush1.msra.mxu0 %v246
  %1813 = vmatprep.subr.mxu0 0.0
  %1814 = vmatpush1.msra.mxu0 %v247
  %1815 = vmatprep.subr.mxu0 0.0
  %1816 = vmatpush1.msra.mxu0 %v248
  %1817 = vmatprep.subr.mxu0 0.0
  %1818 = vmatpush1.msra.mxu0 0.0
  %1819 = vmatprep.subr.mxu0 0.0
  %1820 = vmatpush1.msra.mxu0 0.0
  %1821 = vmatprep.subr.mxu0 0.0
  %1822 = vmatpush1.msra.mxu0 0.0
  %1823 = vmatprep.subr.mxu0 0.0
  %1824 = vmatpush1.msra.mxu0 0.0
  %1825 = vmatprep.subr.mxu0 0.0
  %1826 = vmatpush1.msra.mxu0 0.0
  %1827 = vmatprep.subr.mxu0 0.0
  %1828 = vmatpush1.msra.mxu0 0.0
  %1829 = vmatprep.subr.mxu0 0.0
  %1830 = vmatpush1.msra.mxu0 0.0
  %1831 = vmatprep.subr.mxu0 0.0
  %1832 = vmatpush1.msra.mxu0 0.0
  %1833 = vmatprep.subr.mxu0 0.0
  %1834 = vmatpush1.msra.mxu0 0.0
  %1835 = vmatprep.subr.mxu0 0.0
  %1836 = vmatpush1.msra.mxu0 0.0
  %1837 = vmatprep.subr.mxu0 0.0
  %1838 = vmatpush1.msra.mxu0 0.0
  %1839 = vmatprep.subr.mxu0 0.0
  %1840 = vmatpush1.msra.mxu0 0.0
  %1841 = vmatprep.subr.mxu0 0.0
  %1842 = vmatpush1.msra.mxu0 0.0
  %1843 = vmatprep.subr.mxu0 0.0
  %1844 = vmatpush1.msra.mxu0 0.0
  %1845 = vmatprep.subr.mxu0 0.0
  %1846 = vmatpush1.msra.mxu0 0.0
  %1847 = vmatprep.subr.mxu0 0.0
  %1848 = vmatpush1.msra.mxu0 0.0
  %1849 = vmatprep.subr.mxu0 0.0
  %1850 = vmatpush1.msra.mxu0 0.0
  %1851 = vmatprep.subr.mxu0 0.0
  %1852 = vmatpush1.msra.mxu0 0.0
  %1853 = vmatprep.subr.mxu0 0.0
  %1854 = vmatpush1.msra.mxu0 0.0
  %1855 = vmatprep.subr.mxu0 0.0
  %1856 = vmatpush1.msra.mxu0 0.0
  %1857 = vmatprep.subr.mxu0 0.0
  %1858 = vmatpush1.msra.mxu0 0.0
  %1859 = vmatprep.subr.mxu0 0.0
  %1860 = vmatpush1.msra.mxu0 0.0
  %1861 = vmatprep.subr.mxu0 0.0
  %1862 = vmatpush1.msra.mxu0 0.0
  %1863 = vmatprep.subr.mxu0 0.0
  %1864 = vmatpush1.msra.mxu0 0.0
  %1865 = vmatprep.subr.mxu0 0.0
  %1866 = vmatpush1.msra.mxu0 0.0
  %1867 = vmatprep.subr.mxu0 0.0
  %1868 = vmatpush1.msra.mxu0 0.0
  %1869 = vmatprep.subr.mxu0 0.0
  %1870 = vmatpush1.msra.mxu0 0.0
  %1871 = vmatprep.subr.mxu0 0.0
  %1872 = vmatpush1.msra.mxu0 0.0
  %1873 = vmatprep.mubr.f32.mxu0 0.0
  %1874 = vmatmul.mubr.f32.gmra.mrb[0].mxu0 %v1807
  %v1875 = vpop.f32.mrb[0].mxu0
  %v1876 = vadd.f32 0.0, %v1875
  %v1877 = vpop.f32.mrb[0].mxu0
  %1878 = vdwg.mxu0
  %v1879 = vadd.f32 %v1806, %v1876
  %v1880 = vxor.u32 %v1805, 2147483648
  %v1881 = vmul.f32 %v1880, 1.442695
  %v1882 = vpow.pop %v1881
  %v1883 = vadd.f32 %v1882, 1.0
  %v1884 = vrcp.pop %v1883
  %v1885 = vmul.f32 1.0, %v1884
  %v1886 = vtanh.pop %v1805
  %v1887 = vmul.f32 %v1885, %v1688
  %1889 = vrot.lane.b32.xlu0 %v1886, 64
  %v1890 = vpop.permute.xlu0 %1889
  %v1892 = vmul.f32 %v1885, %v1890
  %1894 = vrot.lane.b32.xlu0 %v1892, 32
  %v1895 = vpop.permute.xlu0 %1894
  %v1897 = vadd.f32 %v1887, %v1895
  %v1898 = vtanh.pop %v1897
  %1900 = vrot.lane.b32.xlu0 %v1898, 64
  %v1901 = vpop.permute.xlu0 %1900
  %v1903 = vmul.f32 %v1885, %v1901
  %v1904 = vxor.u32 %v1879, 2147483648
  %v1905 = vmul.f32 %v1904, 1.442695
  %v1906 = vpow.pop %v1905
  %v1907 = vadd.f32 %v1906, 1.0
  %v1908 = vrcp.pop %v1907
  %v1909 = vmul.f32 1.0, %v1908
  %v1910 = vtanh.pop %v1879
  %v1911 = vmul.f32 %v1909, %v1712
  %1913 = vrot.lane.b32.xlu0 %v1910, 64
  %v1914 = vpop.permute.xlu0 %1913
  %v1916 = vmul.f32 %v1909, %v1914
  %1918 = vrot.lane.b32.xlu0 %v1916, 32
  %v1919 = vpop.permute.xlu0 %1918
  %v1921 = vadd.f32 %v1911, %v1919
  %v1922 = vtanh.pop %v1921
  %1924 = vrot.lane.b32.xlu0 %v1922, 64
  %v1925 = vpop.permute.xlu0 %1924
  %v1927 = vmul.f32 %v1909, %v1925
  %1929 = vrot.lane.b32.xlu0 %v1903, 32
  %v1930 = vpop.permute.xlu0 %1929
  %s1932 = scalar_lea.vmem %s10, 56
  %1933 = vst.msk [vmem:[%s1932] sm:$0xff] %vm57, %v1930
  %1935 = vrot.lane.b32.xlu0 %v1927, 32
  %v1936 = vpop.permute.xlu0 %1935
  %1938 = vst.msk [vmem:[%s11] sm:$0xff] %vm57, %v1936
  %1939 = vst.msk [vmem:[%s12] sm:$0xff] %vm57, %v1930
  %1940 = vst.msk [vmem:[%s13] sm:$0xff] %vm57, %v1936
  %1942 = vrot.lane.b32.xlu0 %v1897, 96
  %v1943 = vpop.permute.xlu0 %1942
  %1945 = vst.msk [vmem:[%s14] sm:$0xff] %vm57, %v1943
  %1947 = vrot.lane.b32.xlu0 %v1921, 96
  %v1948 = vpop.permute.xlu0 %1947
  %1950 = vst.msk [vmem:[%s15] sm:$0xff] %vm57, %v1948
  // Predicated region
  $region42: #{encoder_forward.2} parent=0 // pred_check
    _
  $region43: #{encoder_forward.2} parent=0 // pred_check_branch
    %1952 = sbr.rel (0) target = $region45
  $region44: #{encoder_forward.2} parent=0 // pred_region
    _
  $region45: #{encoder_forward.2} parent=0 // pred_fallthru
    _
  // Predicated region
  $region46: #{encoder_forward.2} parent=0 // pred_check
    _
  $region47: #{encoder_forward.2} parent=0 // pred_check_branch
    %1954 = sbr.rel (0) target = $region49
  $region48: #{encoder_forward.2} parent=0 // pred_region
    _
  $region49: #{encoder_forward.2} parent=0 // pred_fallthru
    _
  // Predicated region
  $region50: #{encoder_forward.2} parent=0 // pred_check
    _
  $region51: #{encoder_forward.2} parent=0 // pred_check_branch
    %1956 = sbr.rel (0) target = $region53
  $region52: #{encoder_forward.2} parent=0 // pred_region
    _
  $region53: #{encoder_forward.2} parent=0 // pred_fallthru
    _
  // Predicated region
  $region54: #{encoder_forward.2} parent=0 // pred_check
    _
  $region55: #{encoder_forward.2} parent=0 // pred_check_branch
    %1958 = sbr.rel (0) target = $region57
  $region56: #{encoder_forward.2} parent=0 // pred_region
    _
  $region57: #{encoder_forward.2} parent=0 // pred_fallthru
    _
  // Predicated region
  $region58: #{encoder_forward.2} parent=0 // pred_check
    _
  $region59: #{encoder_forward.2} parent=0 // pred_check_branch
    %1960 = sbr.rel (0) target = $region61
  $region60: #{encoder_forward.2} parent=0 // pred_region
    _
  $region61: #{encoder_forward.2} parent=0 // pred_fallthru
    _
  // Predicated region
  $region62: #{encoder_forward.2} parent=0 // pred_check
    _
  $region63: #{encoder_forward.2} parent=0 // pred_check_branch
    %1962 = sbr.rel (0) target = $region65
  $region64: #{encoder_forward.2} parent=0 // pred_region
    _
  $region65: #{encoder_forward.2} parent=0 // pred_fallthru
    _
  // Predicated region
  $region66: #{encoder_forward.2} parent=0 // pred_check
    _
  $region67: #{encoder_forward.2} parent=0 // pred_check_branch
    %1964 = sbr.rel (0) target = $region69
  $region68: #{encoder_forward.2} parent=0 // pred_region
    _
  $region69: #{encoder_forward.2} parent=0 // pred_fallthru
    _
  // Predicated region
  $region70: #{encoder_forward.2} parent=0 // pred_check
    _
  $region71: #{encoder_forward.2} parent=0 // pred_check_branch
    %1966 = sbr.rel (0) target = $region73
  $region72: #{encoder_forward.2} parent=0 // pred_region
    _
  $region73: #{encoder_forward.2} parent=0 // pred_fallthru
    _
  // Predicated region
  $region74: #{encoder_forward.2} parent=0 // pred_check
    _
  $region75: #{encoder_forward.2} parent=0 // pred_check_branch
    %1968 = sbr.rel (0) target = $region77
  $region76: #{encoder_forward.2} parent=0 // pred_region
    _
  $region77: #{encoder_forward.2} parent=0 // pred_fallthru
    _
  // Predicated region
  $region78: #{encoder_forward.2} parent=0 // pred_check
    _
  $region79: #{encoder_forward.2} parent=0 // pred_check_branch
    %1970 = sbr.rel (0) target = $region81
  $region80: #{encoder_forward.2} parent=0 // pred_region
    _
  $region81: #{encoder_forward.2} parent=0 // pred_fallthru
    _
  // Predicated region
  $region82: #{encoder_forward.2} parent=0 // pred_check
    _
  $region83: #{encoder_forward.2} parent=0 // pred_check_branch
    %1972 = sbr.rel (0) target = $region85
  $region84: #{encoder_forward.2} parent=0 // pred_region
    _
  $region85: #{encoder_forward.2} parent=0 // pred_fallthru
    _
  // Predicated region
  $region86: #{encoder_forward.2} parent=0 // pred_check
    _
  $region87: #{encoder_forward.2} parent=0 // pred_check_branch
    %1974 = sbr.rel (0) target = $region89
  $region88: #{encoder_forward.2} parent=0 // pred_region
    _
  $region89: #{encoder_forward.2} parent=0 // pred_fallthru
    _

// kernel: encoder_forward.3
$region0: #{encoder_forward.3}
  #allocation0 [shape = 'u32[]', space=smem, size = 0x4, offset = 0x4, fixed_abs, tag = 'smem constant byte address 0x4 - core index']
  #allocation1 [shape = 'u32[144,128]{1,0:T(1,128)}', space=vmem, size = 0x12000, scoped, tag = 'internal scratch']
  #allocation2 [shape = 'f32[64,128]{1,0:T(8,128)}', space=vmem, size = 0x8000, scoped, tag = 'scratch operand']
  #allocation3 [shape = 'f32[64,128]{1,0:T(8,128)}', space=vmem, size = 0x8000, scoped, tag = 'scratch operand']
  %s0 = inlined_call_operand.vmem [shape: f32[64,64], index: 0, kind: input, shape index: {}]
  %s1 = inlined_call_operand.vmem [shape: f32[64,256], index: 1, kind: input, shape index: {}]
  %s2 = inlined_call_operand.vmem [shape: f32[32,128], index: 2, kind: input, shape index: {}]
  %s3 = inlined_call_operand.vmem [shape: f32[32,128], index: 3, kind: input, shape index: {}]
  %s4 = inlined_call_operand.vmem [shape: f32[1,128], index: 4, kind: input, shape index: {}]
  %s5 = inlined_call_operand.vmem [shape: f32[1,128], index: 5, kind: input, shape index: {}]
  %s6 = inlined_call_operand.vmem [shape: f32[8,32], index: 6, kind: input, shape index: {}]
  %s7 = inlined_call_operand.vmem [shape: f32[8,32], index: 7, kind: input, shape index: {}]
  %s8 = inlined_call_operand.vmem [shape: f32[8,32], index: 8, kind: input, shape index: {}]
  %s9 = inlined_call_operand.vmem [shape: f32[8,32], index: 9, kind: input, shape index: {}]
  %s10 = inlined_call_operand.vmem [shape: f32[8,8,32], index: 10, kind: output, shape index: {0}]
  %s11 = inlined_call_operand.vmem [shape: f32[8,8,32], index: 11, kind: output, shape index: {1}]
  %s12 = inlined_call_operand.vmem [shape: f32[8,32], index: 12, kind: output, shape index: {2}]
  %s13 = inlined_call_operand.vmem [shape: f32[8,32], index: 13, kind: output, shape index: {3}]
  %s14 = inlined_call_operand.vmem [shape: f32[8,32], index: 14, kind: output, shape index: {4}]
  %s15 = inlined_call_operand.vmem [shape: f32[8,32], index: 15, kind: output, shape index: {5}]
  %16 = xla_tuple %s10, %s11, %s12, %s13, %s14, %s15
  %s17 = sld [smem:[#allocation0]]
  $region90: #{encoder_forward.3} parent=0
    _
  %s19 = ssub.s32 1, %s17
  %s20 = scalar_select 0, %s19, %s17
  // Predicated region
  $region2: #{encoder_forward.3} parent=0 // pred_check
    _
  $region3: #{encoder_forward.3} parent=0 // pred_check_branch
    %22 = sbr.rel (0) target = $region5
  $region4: #{encoder_forward.3} parent=0 // pred_region
    _
  $region5: #{encoder_forward.3} parent=0 // pred_fallthru
    _
  // Predicated region
  $region6: #{encoder_forward.3} parent=0 // pred_check
    _
  $region7: #{encoder_forward.3} parent=0 // pred_check_branch
    %24 = sbr.rel (0) target = $region9
  $region8: #{encoder_forward.3} parent=0 // pred_region
    _
  $region9: #{encoder_forward.3} parent=0 // pred_fallthru
    _
  // Predicated region
  $region10: #{encoder_forward.3} parent=0 // pred_check
    _
  $region11: #{encoder_forward.3} parent=0 // pred_check_branch
    %26 = sbr.rel (0) target = $region13
  $region12: #{encoder_forward.3} parent=0 // pred_region
    _
  $region13: #{encoder_forward.3} parent=0 // pred_fallthru
    _
  // Predicated region
  $region14: #{encoder_forward.3} parent=0 // pred_check
    _
  $region15: #{encoder_forward.3} parent=0 // pred_check_branch
    %28 = sbr.rel (0) target = $region17
  $region16: #{encoder_forward.3} parent=0 // pred_region
    _
  $region17: #{encoder_forward.3} parent=0 // pred_fallthru
    _
  // Predicated region
  $region18: #{encoder_forward.3} parent=0 // pred_check
    _
  $region19: #{encoder_forward.3} parent=0 // pred_check_branch
    %30 = sbr.rel (0) target = $region21
  $region20: #{encoder_forward.3} parent=0 // pred_region
    _
  $region21: #{encoder_forward.3} parent=0 // pred_fallthru
    _
  // Predicated region
  $region22: #{encoder_forward.3} parent=0 // pred_check
    _
  $region23: #{encoder_forward.3} parent=0 // pred_check_branch
    %32 = sbr.rel (0) target = $region25
  $region24: #{encoder_forward.3} parent=0 // pred_region
    _
  $region25: #{encoder_forward.3} parent=0 // pred_fallthru
    _
  // Predicated region
  $region26: #{encoder_forward.3} parent=0 // pred_check
    _
  $region27: #{encoder_forward.3} parent=0 // pred_check_branch
    %34 = sbr.rel (0) target = $region29
  $region28: #{encoder_forward.3} parent=0 // pred_region
    _
  $region29: #{encoder_forward.3} parent=0 // pred_fallthru
    _
  // Predicated region
  $region30: #{encoder_forward.3} parent=0 // pred_check
    _
  $region31: #{encoder_forward.3} parent=0 // pred_check_branch
    %36 = sbr.rel (0) target = $region33
  $region32: #{encoder_forward.3} parent=0 // pred_region
    _
  $region33: #{encoder_forward.3} parent=0 // pred_fallthru
    _
  // Predicated region
  $region34: #{encoder_forward.3} parent=0 // pred_check
    _
  $region35: #{encoder_forward.3} parent=0 // pred_check_branch
    %38 = sbr.rel (0) target = $region37
  $region36: #{encoder_forward.3} parent=0 // pred_region
    _
  $region37: #{encoder_forward.3} parent=0 // pred_fallthru
    _
  // Predicated region
  $region38: #{encoder_forward.3} parent=0 // pred_check
    _
  $region39: #{encoder_forward.3} parent=0 // pred_check_branch
    %40 = sbr.rel (0) target = $region41
  $region40: #{encoder_forward.3} parent=0 // pred_region
    _
  $region41: #{encoder_forward.3} parent=0 // pred_fallthru
    _
  %v41 = vld [vmem:[%s0] sm:$0xff]
  %v42 = vld [vmem:[%s0 + $0x8] sm:$0xff]
  %v43 = vld [vmem:[%s0 + $0x10] sm:$0xff]
  %v44 = vld [vmem:[%s0 + $0x18] sm:$0xff]
  %v45 = vld [vmem:[%s0 + $0x20] sm:$0xff]
  %v46 = vld [vmem:[%s0 + $0x28] sm:$0xff]
  %v47 = vld [vmem:[%s0 + $0x30] sm:$0xff]
  %v48 = vld [vmem:[%s0 + $0x38] sm:$0xff]
  %v49 = vld [vmem:[%s1] sm:$0xff]
  %v50 = vld [vmem:[%s1 + $0x8] sm:$0xff]
  %v51 = vld [vmem:[%s1 + $0x10] sm:$0xff]
  %v52 = vld [vmem:[%s1 + $0x18] sm:$0xff]
  %v53 = vld [vmem:[%s1 + $0x20] sm:$0xff]
  %v54 = vld [vmem:[%s1 + $0x28] sm:$0xff]
  %v55 = vld [vmem:[%s1 + $0x30] sm:$0xff]
  %v56 = vld [vmem:[%s1 + $0x38] sm:$0xff]
  %v57 = vld [vmem:[%s1 + $0x40] sm:$0xff]
  %v58 = vld [vmem:[%s1 + $0x48] sm:$0xff]
  %v59 = vld [vmem:[%s1 + $0x50] sm:$0xff]
  %v60 = vld [vmem:[%s1 + $0x58] sm:$0xff]
  %v61 = vld [vmem:[%s1 + $0x60] sm:$0xff]
  %v62 = vld [vmem:[%s1 + $0x68] sm:$0xff]
  %v63 = vld [vmem:[%s1 + $0x70] sm:$0xff]
  %v64 = vld [vmem:[%s1 + $0x78] sm:$0xff]
  %vm65 = vcmask 523264
  %v67 = vsel %vm65, %v41, 0
  %v70 = vsel %vm65, %v42, 0
  %v73 = vsel %vm65, %v43, 0
  %v76 = vsel %vm65, %v44, 0
  %v79 = vsel %vm65, %v45, 0
  %v82 = vsel %vm65, %v46, 0
  %v85 = vsel %vm65, %v47, 0
  %v88 = vsel %vm65, %v48, 0
  %90 = vmatprep.subr.mxu0 %v50
  %91 = vmatpush1.msra.mxu0 %v49
  %92 = vmatprep.subr.mxu0 %v52
  %93 = vmatpush1.msra.mxu0 %v51
  %94 = vmatprep.subr.mxu0 %v54
  %95 = vmatpush1.msra.mxu0 %v53
  %96 = vmatprep.subr.mxu0 %v56
  %97 = vmatpush1.msra.mxu0 %v55
  %98 = vmatprep.subr.mxu0 %v58
  %99 = vmatpush1.msra.mxu0 %v57
  %100 = vmatprep.subr.mxu0 %v60
  %101 = vmatpush1.msra.mxu0 %v59
  %102 = vmatprep.subr.mxu0 %v62
  %103 = vmatpush1.msra.mxu0 %v61
  %104 = vmatprep.subr.mxu0 %v64
  %105 = vmatpush1.msra.mxu0 %v63
  %106 = vmatprep.subr.mxu0 0.0
  %107 = vmatpush1.msra.mxu0 0.0
  %108 = vmatprep.subr.mxu0 0.0
  %109 = vmatpush1.msra.mxu0 0.0
  %110 = vmatprep.subr.mxu0 0.0
  %111 = vmatpush1.msra.mxu0 0.0
  %112 = vmatprep.subr.mxu0 0.0
  %113 = vmatpush1.msra.mxu0 0.0
  %114 = vmatprep.subr.mxu0 0.0
  %115 = vmatpush1.msra.mxu0 0.0
  %116 = vmatprep.subr.mxu0 0.0
  %117 = vmatpush1.msra.mxu0 0.0
  %118 = vmatprep.subr.mxu0 0.0
  %119 = vmatpush1.msra.mxu0 0.0
  %120 = vmatprep.subr.mxu0 0.0
  %121 = vmatpush1.msra.mxu0 0.0
  %122 = vmatprep.subr.mxu0 0.0
  %123 = vmatpush1.msra.mxu0 0.0
  %124 = vmatprep.subr.mxu0 0.0
  %125 = vmatpush1.msra.mxu0 0.0
  %126 = vmatprep.subr.mxu0 0.0
  %127 = vmatpush1.msra.mxu0 0.0
  %128 = vmatprep.subr.mxu0 0.0
  %129 = vmatpush1.msra.mxu0 0.0
  %130 = vmatprep.subr.mxu0 0.0
  %131 = vmatpush1.msra.mxu0 0.0
  %132 = vmatprep.subr.mxu0 0.0
  %133 = vmatpush1.msra.mxu0 0.0
  %134 = vmatprep.subr.mxu0 0.0
  %135 = vmatpush1.msra.mxu0 0.0
  %136 = vmatprep.subr.mxu0 0.0
  %137 = vmatpush1.msra.mxu0 0.0
  %138 = vmatprep.subr.mxu0 0.0
  %139 = vmatpush1.msra.mxu0 0.0
  %140 = vmatprep.subr.mxu0 0.0
  %141 = vmatpush1.msra.mxu0 0.0
  %142 = vmatprep.subr.mxu0 0.0
  %143 = vmatpush1.msra.mxu0 0.0
  %144 = vmatprep.subr.mxu0 0.0
  %145 = vmatpush1.msra.mxu0 0.0
  %146 = vmatprep.subr.mxu0 0.0
  %147 = vmatpush1.msra.mxu0 0.0
  %148 = vmatprep.subr.mxu0 0.0
  %149 = vmatpush1.msra.mxu0 0.0
  %150 = vmatprep.subr.mxu0 0.0
  %151 = vmatpush1.msra.mxu0 0.0
  %152 = vmatprep.subr.mxu0 0.0
  %153 = vmatpush1.msra.mxu0 0.0
  %154 = vmatprep.mubr.f32.mxu0 0.0
  %155 = vmatmul.mubr.f32.gmra.mrb[0].mxu0 %v67
  %v156 = vpop.f32.mrb[0].mxu0
  %v157 = vadd.f32 0.0, %v156
  %v158 = vpop.f32.mrb[0].mxu0
  %v159 = vadd.f32 0.0, %v158
  %160 = vmatprep.mubr.f32.mxu0 0.0
  %161 = vmatmul.mubr.f32.gmra.mrb[0].mxu0 %v70
  %v162 = vpop.f32.mrb[0].mxu0
  %v163 = vadd.f32 0.0, %v162
  %v164 = vpop.f32.mrb[0].mxu0
  %v165 = vadd.f32 0.0, %v164
  %166 = vmatprep.mubr.f32.mxu0 0.0
  %167 = vmatmul.mubr.f32.gmra.mrb[0].mxu0 %v73
  %v168 = vpop.f32.mrb[0].mxu0
  %v169 = vadd.f32 0.0, %v168
  %v170 = vpop.f32.mrb[0].mxu0
  %v171 = vadd.f32 0.0, %v170
  %172 = vmatprep.mubr.f32.mxu0 0.0
  %173 = vmatmul.mubr.f32.gmra.mrb[0].mxu0 %v76
  %v174 = vpop.f32.mrb[0].mxu0
  %v175 = vadd.f32 0.0, %v174
  %v176 = vpop.f32.mrb[0].mxu0
  %v177 = vadd.f32 0.0, %v176
  %178 = vmatprep.mubr.f32.mxu0 0.0
  %179 = vmatmul.mubr.f32.gmra.mrb[0].mxu0 %v79
  %v180 = vpop.f32.mrb[0].mxu0
  %v181 = vadd.f32 0.0, %v180
  %v182 = vpop.f32.mrb[0].mxu0
  %v183 = vadd.f32 0.0, %v182
  %184 = vmatprep.mubr.f32.mxu0 0.0
  %185 = vmatmul.mubr.f32.gmra.mrb[0].mxu0 %v82
  %v186 = vpop.f32.mrb[0].mxu0
  %v187 = vadd.f32 0.0, %v186
  %v188 = vpop.f32.mrb[0].mxu0
  %v189 = vadd.f32 0.0, %v188
  %190 = vmatprep.mubr.f32.mxu0 0.0
  %191 = vmatmul.mubr.f32.gmra.mrb[0].mxu0 %v85
  %v192 = vpop.f32.mrb[0].mxu0
  %v193 = vadd.f32 0.0, %v192
  %v194 = vpop.f32.mrb[0].mxu0
  %v195 = vadd.f32 0.0, %v194
  %196 = vmatprep.mubr.f32.mxu0 0.0
  %197 = vmatmul.mubr.f32.gmra.mrb[0].mxu0 %v88
  %v198 = vpop.f32.mrb[0].mxu0
  %v199 = vadd.f32 0.0, %v198
  %v200 = vpop.f32.mrb[0].mxu0
  %v201 = vadd.f32 0.0, %v200
  %202 = vdwg.mxu0
  %v203 = vld [vmem:[%s4] sm:$0x1]
  %v205 = vlaneseq
  %v206 = vshrl.u32 %v205, 7
  %v207 = vsub.s32 0, %v206
  %v208 = vrot.slane %v203, %v207
  %v210 = vadd.f32 %v157, %v208
  %v211 = vadd.f32 %v163, %v208
  %v212 = vadd.f32 %v169, %v208
  %v213 = vadd.f32 %v175, %v208
  %v214 = vadd.f32 %v181, %v208
  %v215 = vadd.f32 %v187, %v208
  %v216 = vadd.f32 %v193, %v208
  %v217 = vadd.f32 %v199, %v208
  %218 = vst [vmem:[#allocation2] sm:$0xff] %v210
  %219 = vst [vmem:[#allocation2 + $0x8] sm:$0xff] %v211
  %220 = vst [vmem:[#allocation2 + $0x10] sm:$0xff] %v212
  %221 = vst [vmem:[#allocation2 + $0x18] sm:$0xff] %v213
  %222 = vst [vmem:[#allocation2 + $0x20] sm:$0xff] %v214
  %223 = vst [vmem:[#allocation2 + $0x28] sm:$0xff] %v215
  %224 = vst [vmem:[#allocation2 + $0x30] sm:$0xff] %v216
  %225 = vst [vmem:[#allocation2 + $0x38] sm:$0xff] %v217
  %v226 = vld [vmem:[%s5] sm:$0x1]
  %v228 = vlaneseq
  %v229 = vshrl.u32 %v228, 7
  %v230 = vsub.s32 0, %v229
  %v231 = vrot.slane %v226, %v230
  %v233 = vadd.f32 %v159, %v231
  %v234 = vadd.f32 %v165, %v231
  %v235 = vadd.f32 %v171, %v231
  %v236 = vadd.f32 %v177, %v231
  %v237 = vadd.f32 %v183, %v231
  %v238 = vadd.f32 %v189, %v231
  %v239 = vadd.f32 %v195, %v231
  %v240 = vadd.f32 %v201, %v231
  %241 = vst [vmem:[#allocation3] sm:$0xff] %v233
  %242 = vst [vmem:[#allocation3 + $0x8] sm:$0xff] %v234
  %243 = vst [vmem:[#allocation3 + $0x10] sm:$0xff] %v235
  %244 = vst [vmem:[#allocation3 + $0x18] sm:$0xff] %v236
  %245 = vst [vmem:[#allocation3 + $0x20] sm:$0xff] %v237
  %246 = vst [vmem:[#allocation3 + $0x28] sm:$0xff] %v238
  %247 = vst [vmem:[#allocation3 + $0x30] sm:$0xff] %v239
  %248 = vst [vmem:[#allocation3 + $0x38] sm:$0xff] %v240
  %v249 = vld [vmem:[%s2] sm:$0xff]
  %v250 = vld [vmem:[%s2 + $0x8] sm:$0xff]
  %v251 = vld [vmem:[%s2 + $0x10] sm:$0xff]
  %v252 = vld [vmem:[%s2 + $0x18] sm:$0xff]
  %v253 = vld [vmem:[%s3] sm:$0xff]
  %v254 = vld [vmem:[%s3 + $0x8] sm:$0xff]
  %v255 = vld [vmem:[%s3 + $0x10] sm:$0xff]
  %v256 = vld [vmem:[%s3 + $0x18] sm:$0xff]
  %v257 = vld [vmem:[%s6] sm:$0xff]
  %v258 = vld [vmem:[%s8] sm:$0xff]
  %v259 = vld [vmem:[%s7] sm:$0xff]
  %v260 = vld [vmem:[%s9] sm:$0xff]
  %v261 = vld [vmem:[#allocation2] sm:$0xff]
  %vm262 = vcmask 261120
  %v264 = vsel %vm262, %v257, 0
  %266 = vmatprep.subr.mxu0 0.0
  %267 = vmatpush1.msra.mxu0 %v249
  %268 = vmatprep.subr.mxu0 0.0
  %269 = vmatpush1.msra.mxu0 %v250
  %270 = vmatprep.subr.mxu0 0.0
  %271 = vmatpush1.msra.mxu0 %v251
  %272 = vmatprep.subr.mxu0 0.0
  %273 = vmatpush1.msra.mxu0 %v252
  %274 = vmatprep.subr.mxu0 0.0
  %275 = vmatpush1.msra.mxu0 0.0
  %276 = vmatprep.subr.mxu0 0.0
  %277 = vmatpush1.msra.mxu0 0.0
  %278 = vmatprep.subr.mxu0 0.0
  %279 = vmatpush1.msra.mxu0 0.0
  %280 = vmatprep.subr.mxu0 0.0
  %281 = vmatpush1.msra.mxu0 0.0
  %282 = vmatprep.subr.mxu0 0.0
  %283 = vmatpush1.msra.mxu0 0.0
  %284 = vmatprep.subr.mxu0 0.0
  %285 = vmatpush1.msra.mxu0 0.0
  %286 = vmatprep.subr.mxu0 0.0
  %287 = vmatpush1.msra.mxu0 0.0
  %288 = vmatprep.subr.mxu0 0.0
  %289 = vmatpush1.msra.mxu0 0.0
  %290 = vmatprep.subr.mxu0 0.0
  %291 = vmatpush1.msra.mxu0 0.0
  %292 = vmatprep.subr.mxu0 0.0
  %293 = vmatpush1.msra.mxu0 0.0
  %294 = vmatprep.subr.mxu0 0.0
  %295 = vmatpush1.msra.mxu0 0.0
  %296 = vmatprep.subr.mxu0 0.0
  %297 = vmatpush1.msra.mxu0 0.0
  %298 = vmatprep.subr.mxu0 0.0
  %299 = vmatpush1.msra.mxu0 0.0
  %300 = vmatprep.subr.mxu0 0.0
  %301 = vmatpush1.msra.mxu0 0.0
  %302 = vmatprep.subr.mxu0 0.0
  %303 = vmatpush1.msra.mxu0 0.0
  %304 = vmatprep.subr.mxu0 0.0
  %305 = vmatpush1.msra.mxu0 0.0
  %306 = vmatprep.subr.mxu0 0.0
  %307 = vmatpush1.msra.mxu0 0.0
  %308 = vmatprep.subr.mxu0 0.0
  %309 = vmatpush1.msra.mxu0 0.0
  %310 = vmatprep.subr.mxu0 0.0
  %311 = vmatpush1.msra.mxu0 0.0
  %312 = vmatprep.subr.mxu0 0.0
  %313 = vmatpush1.msra.mxu0 0.0
  %314 = vmatprep.subr.mxu0 0.0
  %315 = vmatpush1.msra.mxu0 0.0
  %316 = vmatprep.subr.mxu0 0.0
  %317 = vmatpush1.msra.mxu0 0.0
  %318 = vmatprep.subr.mxu0 0.0
  %319 = vmatpush1.msra.mxu0 0.0
  %320 = vmatprep.subr.mxu0 0.0
  %321 = vmatpush1.msra.mxu0 0.0
  %322 = vmatprep.subr.mxu0 0.0
  %323 = vmatpush1.msra.mxu0 0.0
  %324 = vmatprep.subr.mxu0 0.0
  %325 = vmatpush1.msra.mxu0 0.0
  %326 = vmatprep.subr.mxu0 0.0
  %327 = vmatpush1.msra.mxu0 0.0
  %328 = vmatprep.subr.mxu0 0.0
  %329 = vmatpush1.msra.mxu0 0.0
  %330 = vmatprep.mubr.f32.mxu0 0.0
  %331 = vmatmul.mubr.f32.gmra.mrb[0].mxu0 %v264
  %v332 = vpop.f32.mrb[0].mxu0
  %v333 = vadd.f32 0.0, %v332
  %v334 = vpop.f32.mrb[0].mxu0
  %335 = vdwg.mxu0
  %v336 = vadd.f32 %v261, %v333
  %s337 = scalar_lea.vmem [#allocation3], 56
  %v338 = vld [vmem:[%s337] sm:$0xff]
  %v340 = vsel %vm262, %v259, 0
  %342 = vmatprep.subr.mxu0 0.0
  %343 = vmatpush1.msra.mxu0 %v253
  %344 = vmatprep.subr.mxu0 0.0
  %345 = vmatpush1.msra.mxu0 %v254
  %346 = vmatprep.subr.mxu0 0.0
  %347 = vmatpush1.msra.mxu0 %v255
  %348 = vmatprep.subr.mxu0 0.0
  %349 = vmatpush1.msra.mxu0 %v256
  %350 = vmatprep.subr.mxu0 0.0
  %351 = vmatpush1.msra.mxu0 0.0
  %352 = vmatprep.subr.mxu0 0.0
  %353 = vmatpush1.msra.mxu0 0.0
  %354 = vmatprep.subr.mxu0 0.0
  %355 = vmatpush1.msra.mxu0 0.0
  %356 = vmatprep.subr.mxu0 0.0
  %357 = vmatpush1.msra.mxu0 0.0
  %358 = vmatprep.subr.mxu0 0.0
  %359 = vmatpush1.msra.mxu0 0.0
  %360 = vmatprep.subr.mxu0 0.0
  %361 = vmatpush1.msra.mxu0 0.0
  %362 = vmatprep.subr.mxu0 0.0
  %363 = vmatpush1.msra.mxu0 0.0
  %364 = vmatprep.subr.mxu0 0.0
  %365 = vmatpush1.msra.mxu0 0.0
  %366 = vmatprep.subr.mxu0 0.0
  %367 = vmatpush1.msra.mxu0 0.0
  %368 = vmatprep.subr.mxu0 0.0
  %369 = vmatpush1.msra.mxu0 0.0
  %370 = vmatprep.subr.mxu0 0.0
  %371 = vmatpush1.msra.mxu0 0.0
  %372 = vmatprep.subr.mxu0 0.0
  %373 = vmatpush1.msra.mxu0 0.0
  %374 = vmatprep.subr.mxu0 0.0
  %375 = vmatpush1.msra.mxu0 0.0
  %376 = vmatprep.subr.mxu0 0.0
  %377 = vmatpush1.msra.mxu0 0.0
  %378 = vmatprep.subr.mxu0 0.0
  %379 = vmatpush1.msra.mxu0 0.0
  %380 = vmatprep.subr.mxu0 0.0
  %381 = vmatpush1.msra.mxu0 0.0
  %382 = vmatprep.subr.mxu0 0.0
  %383 = vmatpush1.msra.mxu0 0.0
  %384 = vmatprep.subr.mxu0 0.0
  %385 = vmatpush1.msra.mxu0 0.0
  %386 = vmatprep.subr.mxu0 0.0
  %387 = vmatpush1.msra.mxu0 0.0
  %388 = vmatprep.subr.mxu0 0.0
  %389 = vmatpush1.msra.mxu0 0.0
  %390 = vmatprep.subr.mxu0 0.0
  %391 = vmatpush1.msra.mxu0 0.0
  %392 = vmatprep.subr.mxu0 0.0
  %393 = vmatpush1.msra.mxu0 0.0
  %394 = vmatprep.subr.mxu0 0.0
  %395 = vmatpush1.msra.mxu0 0.0
  %396 = vmatprep.subr.mxu0 0.0
  %397 = vmatpush1.msra.mxu0 0.0
  %398 = vmatprep.subr.mxu0 0.0
  %399 = vmatpush1.msra.mxu0 0.0
  %400 = vmatprep.subr.mxu0 0.0
  %401 = vmatpush1.msra.mxu0 0.0
  %402 = vmatprep.subr.mxu0 0.0
  %403 = vmatpush1.msra.mxu0 0.0
  %404 = vmatprep.subr.mxu0 0.0
  %405 = vmatpush1.msra.mxu0 0.0
  %406 = vmatprep.mubr.f32.mxu0 0.0
  %407 = vmatmul.mubr.f32.gmra.mrb[0].mxu0 %v340
  %v408 = vpop.f32.mrb[0].mxu0
  %v409 = vadd.f32 0.0, %v408
  %v410 = vpop.f32.mrb[0].mxu0
  %411 = vdwg.mxu0
  %v412 = vadd.f32 %v338, %v409
  %v413 = vxor.u32 %v336, 2147483648
  %v414 = vmul.f32 %v413, 1.442695
  %v415 = vpow.pop %v414
  %v416 = vadd.f32 %v415, 1.0
  %v417 = vrcp.pop %v416
  %v418 = vmul.f32 1.0, %v417
  %v419 = vtanh.pop %v336
  %421 = vrot.lane.b32.xlu0 %v258, 32
  %v422 = vpop.permute.xlu0 %421
  %v424 = vmul.f32 %v418, %v422
  %426 = vrot.lane.b32.xlu0 %v419, 64
  %v427 = vpop.permute.xlu0 %426
  %v429 = vmul.f32 %v418, %v427
  %431 = vrot.lane.b32.xlu0 %v429, 32
  %v432 = vpop.permute.xlu0 %431
  %v434 = vadd.f32 %v424, %v432
  %v435 = vtanh.pop %v434
  %437 = vrot.lane.b32.xlu0 %v435, 64
  %v438 = vpop.permute.xlu0 %437
  %v440 = vmul.f32 %v418, %v438
  %v441 = vxor.u32 %v412, 2147483648
  %v442 = vmul.f32 %v441, 1.442695
  %v443 = vpow.pop %v442
  %v444 = vadd.f32 %v443, 1.0
  %v445 = vrcp.pop %v444
  %v446 = vmul.f32 1.0, %v445
  %v447 = vtanh.pop %v412
  %449 = vrot.lane.b32.xlu0 %v260, 32
  %v450 = vpop.permute.xlu0 %449
  %v452 = vmul.f32 %v446, %v450
  %454 = vrot.lane.b32.xlu0 %v447, 64
  %v455 = vpop.permute.xlu0 %454
  %v457 = vmul.f32 %v446, %v455
  %459 = vrot.lane.b32.xlu0 %v457, 32
  %v460 = vpop.permute.xlu0 %459
  %v462 = vadd.f32 %v452, %v460
  %v463 = vtanh.pop %v462
  %465 = vrot.lane.b32.xlu0 %v463, 64
  %v466 = vpop.permute.xlu0 %465
  %v468 = vmul.f32 %v446, %v466
  %470 = vrot.lane.b32.xlu0 %v440, 32
  %v471 = vpop.permute.xlu0 %470
  %473 = vst.msk [vmem:[%s10] sm:$0xff] %vm262, %v471
  %475 = vrot.lane.b32.xlu0 %v468, 32
  %v476 = vpop.permute.xlu0 %475
  %s478 = scalar_lea.vmem %s11, 56
  %479 = vst.msk [vmem:[%s478] sm:$0xff] %vm262, %v476
  %s480 = scalar_lea.vmem [#allocation2], 8
  %v481 = vld [vmem:[%s480] sm:$0xff]
  %v482 = vsel %vm262, %v471, 0
  %484 = vmatprep.subr.mxu0 0.0
  %485 = vmatpush1.msra.mxu0 %v249
  %486 = vmatprep.subr.mxu0 0.0
  %487 = vmatpush1.msra.mxu0 %v250
  %488 = vmatprep.subr.mxu0 0.0
  %489 = vmatpush1.msra.mxu0 %v251
  %490 = vmatprep.subr.mxu0 0.0
  %491 = vmatpush1.msra.mxu0 %v252
  %492 = vmatprep.subr.mxu0 0.0
  %493 = vmatpush1.msra.mxu0 0.0
  %494 = vmatprep.subr.mxu0 0.0
  %495 = vmatpush1.msra.mxu0 0.0
  %496 = vmatprep.subr.mxu0 0.0
  %497 = vmatpush1.msra.mxu0 0.0
  %498 = vmatprep.subr.mxu0 0.0
  %499 = vmatpush1.msra.mxu0 0.0
  %500 = vmatprep.subr.mxu0 0.0
  %501 = vmatpush1.msra.mxu0 0.0
  %502 = vmatprep.subr.mxu0 0.0
  %503 = vmatpush1.msra.mxu0 0.0
  %504 = vmatprep.subr.mxu0 0.0
  %505 = vmatpush1.msra.mxu0 0.0
  %506 = vmatprep.subr.mxu0 0.0
  %507 = vmatpush1.msra.mxu0 0.0
  %508 = vmatprep.subr.mxu0 0.0
  %509 = vmatpush1.msra.mxu0 0.0
  %510 = vmatprep.subr.mxu0 0.0
  %511 = vmatpush1.msra.mxu0 0.0
  %512 = vmatprep.subr.mxu0 0.0
  %513 = vmatpush1.msra.mxu0 0.0
  %514 = vmatprep.subr.mxu0 0.0
  %515 = vmatpush1.msra.mxu0 0.0
  %516 = vmatprep.subr.mxu0 0.0
  %517 = vmatpush1.msra.mxu0 0.0
  %518 = vmatprep.subr.mxu0 0.0
  %519 = vmatpush1.msra.mxu0 0.0
  %520 = vmatprep.subr.mxu0 0.0
  %521 = vmatpush1.msra.mxu0 0.0
  %522 = vmatprep.subr.mxu0 0.0
  %523 = vmatpush1.msra.mxu0 0.0
  %524 = vmatprep.subr.mxu0 0.0
  %525 = vmatpush1.msra.mxu0 0.0
  %526 = vmatprep.subr.mxu0 0.0
  %527 = vmatpush1.msra.mxu0 0.0
  %528 = vmatprep.subr.mxu0 0.0
  %529 = vmatpush1.msra.mxu0 0.0
  %530 = vmatprep.subr.mxu0 0.0
  %531 = vmatpush1.msra.mxu0 0.0
  %532 = vmatprep.subr.mxu0 0.0
  %533 = vmatpush1.msra.mxu0 0.0
  %534 = vmatprep.subr.mxu0 0.0
  %535 = vmatpush1.msra.mxu0 0.0
  %536 = vmatprep.subr.mxu0 0.0
  %537 = vmatpush1.msra.mxu0 0.0
  %538 = vmatprep.subr.mxu0 0.0
  %539 = vmatpush1.msra.mxu0 0.0
  %540 = vmatprep.subr.mxu0 0.0
  %541 = vmatpush1.msra.mxu0 0.0
  %542 = vmatprep.subr.mxu0 0.0
  %543 = vmatpush1.msra.mxu0 0.0
  %544 = vmatprep.subr.mxu0 0.0
  %545 = vmatpush1.msra.mxu0 0.0
  %546 = vmatprep.subr.mxu0 0.0
  %547 = vmatpush1.msra.mxu0 0.0
  %548 = vmatprep.mubr.f32.mxu0 0.0
  %549 = vmatmul.mubr.f32.gmra.mrb[0].mxu0 %v482
  %v550 = vpop.f32.mrb[0].mxu0
  %v551 = vadd.f32 0.0, %v550
  %v552 = vpop.f32.mrb[0].mxu0
  %553 = vdwg.mxu0
  %v554 = vadd.f32 %v481, %v551
  %s555 = scalar_lea.vmem [#allocation3], 48
  %v556 = vld [vmem:[%s555] sm:$0xff]
  %v557 = vsel %vm262, %v476, 0
  %559 = vmatprep.subr.mxu0 0.0
  %560 = vmatpush1.msra.mxu0 %v253
  %561 = vmatprep.subr.mxu0 0.0
  %562 = vmatpush1.msra.mxu0 %v254
  %563 = vmatprep.subr.mxu0 0.0
  %564 = vmatpush1.msra.mxu0 %v255
  %565 = vmatprep.subr.mxu0 0.0
  %566 = vmatpush1.msra.mxu0 %v256
  %567 = vmatprep.subr.mxu0 0.0
  %568 = vmatpush1.msra.mxu0 0.0
  %569 = vmatprep.subr.mxu0 0.0
  %570 = vmatpush1.msra.mxu0 0.0
  %571 = vmatprep.subr.mxu0 0.0
  %572 = vmatpush1.msra.mxu0 0.0
  %573 = vmatprep.subr.mxu0 0.0
  %574 = vmatpush1.msra.mxu0 0.0
  %575 = vmatprep.subr.mxu0 0.0
  %576 = vmatpush1.msra.mxu0 0.0
  %577 = vmatprep.subr.mxu0 0.0
  %578 = vmatpush1.msra.mxu0 0.0
  %579 = vmatprep.subr.mxu0 0.0
  %580 = vmatpush1.msra.mxu0 0.0
  %581 = vmatprep.subr.mxu0 0.0
  %582 = vmatpush1.msra.mxu0 0.0
  %583 = vmatprep.subr.mxu0 0.0
  %584 = vmatpush1.msra.mxu0 0.0
  %585 = vmatprep.subr.mxu0 0.0
  %586 = vmatpush1.msra.mxu0 0.0
  %587 = vmatprep.subr.mxu0 0.0
  %588 = vmatpush1.msra.mxu0 0.0
  %589 = vmatprep.subr.mxu0 0.0
  %590 = vmatpush1.msra.mxu0 0.0
  %591 = vmatprep.subr.mxu0 0.0
  %592 = vmatpush1.msra.mxu0 0.0
  %593 = vmatprep.subr.mxu0 0.0
  %594 = vmatpush1.msra.mxu0 0.0
  %595 = vmatprep.subr.mxu0 0.0
  %596 = vmatpush1.msra.mxu0 0.0
  %597 = vmatprep.subr.mxu0 0.0
  %598 = vmatpush1.msra.mxu0 0.0
  %599 = vmatprep.subr.mxu0 0.0
  %600 = vmatpush1.msra.mxu0 0.0
  %601 = vmatprep.subr.mxu0 0.0
  %602 = vmatpush1.msra.mxu0 0.0
  %603 = vmatprep.subr.mxu0 0.0
  %604 = vmatpush1.msra.mxu0 0.0
  %605 = vmatprep.subr.mxu0 0.0
  %606 = vmatpush1.msra.mxu0 0.0
  %607 = vmatprep.subr.mxu0 0.0
  %608 = vmatpush1.msra.mxu0 0.0
  %609 = vmatprep.subr.mxu0 0.0
  %610 = vmatpush1.msra.mxu0 0.0
  %611 = vmatprep.subr.mxu0 0.0
  %612 = vmatpush1.msra.mxu0 0.0
  %613 = vmatprep.subr.mxu0 0.0
  %614 = vmatpush1.msra.mxu0 0.0
  %615 = vmatprep.subr.mxu0 0.0
  %616 = vmatpush1.msra.mxu0 0.0
  %617 = vmatprep.subr.mxu0 0.0
  %618 = vmatpush1.msra.mxu0 0.0
  %619 = vmatprep.subr.mxu0 0.0
  %620 = vmatpush1.msra.mxu0 0.0
  %621 = vmatprep.subr.mxu0 0.0
  %622 = vmatpush1.msra.mxu0 0.0
  %623 = vmatprep.mubr.f32.mxu0 0.0
  %624 = vmatmul.mubr.f32.gmra.mrb[0].mxu0 %v557
  %v625 = vpop.f32.mrb[0].mxu0
  %v626 = vadd.f32 0.0, %v625
  %v627 = vpop.f32.mrb[0].mxu0
  %628 = vdwg.mxu0
  %v629 = vadd.f32 %v556, %v626
  %v630 = vxor.u32 %v554, 2147483648
  %v631 = vmul.f32 %v630, 1.442695
  %v632 = vpow.pop %v631
  %v633 = vadd.f32 %v632, 1.0
  %v634 = vrcp.pop %v633
  %v635 = vmul.f32 1.0, %v634
  %v636 = vtanh.pop %v554
  %v637 = vmul.f32 %v635, %v434
  %639 = vrot.lane.b32.xlu0 %v636, 64
  %v640 = vpop.permute.xlu0 %639
  %v642 = vmul.f32 %v635, %v640
  %644 = vrot.lane.b32.xlu0 %v642, 32
  %v645 = vpop.permute.xlu0 %644
  %v647 = vadd.f32 %v637, %v645
  %v648 = vtanh.pop %v647
  %650 = vrot.lane.b32.xlu0 %v648, 64
  %v651 = vpop.permute.xlu0 %650
  %v653 = vmul.f32 %v635, %v651
  %v654 = vxor.u32 %v629, 2147483648
  %v655 = vmul.f32 %v654, 1.442695
  %v656 = vpow.pop %v655
  %v657 = vadd.f32 %v656, 1.0
  %v658 = vrcp.pop %v657
  %v659 = vmul.f32 1.0, %v658
  %v660 = vtanh.pop %v629
  %v661 = vmul.f32 %v659, %v462
  %663 = vrot.lane.b32.xlu0 %v660, 64
  %v664 = vpop.permute.xlu0 %663
  %v666 = vmul.f32 %v659, %v664
  %668 = vrot.lane.b32.xlu0 %v666, 32
  %v669 = vpop.permute.xlu0 %668
  %v671 = vadd.f32 %v661, %v669
  %v672 = vtanh.pop %v671
  %674 = vrot.lane.b32.xlu0 %v672, 64
  %v675 = vpop.permute.xlu0 %674
  %v677 = vmul.f32 %v659, %v675
  %679 = vrot.lane.b32.xlu0 %v653, 32
  %v680 = vpop.permute.xlu0 %679
  %s682 = scalar_lea.vmem %s10, 8
  %683 = vst.msk [vmem:[%s682] sm:$0xff] %vm262, %v680
  %685 = vrot.lane.b32.xlu0 %v677, 32
  %v686 = vpop.permute.xlu0 %685
  %s688 = scalar_lea.vmem %s11, 48
  %689 = vst.msk [vmem:[%s688] sm:$0xff] %vm262, %v686
  %s690 = scalar_lea.vmem [#allocation2], 16
  %v691 = vld [vmem:[%s690] sm:$0xff]
  %v692 = vsel %vm262, %v680, 0
  %694 = vmatprep.subr.mxu0 0.0
  %695 = vmatpush1.msra.mxu0 %v249
  %696 = vmatprep.subr.mxu0 0.0
  %697 = vmatpush1.msra.mxu0 %v250
  %698 = vmatprep.subr.mxu0 0.0
  %699 = vmatpush1.msra.mxu0 %v251
  %700 = vmatprep.subr.mxu0 0.0
  %701 = vmatpush1.msra.mxu0 %v252
  %702 = vmatprep.subr.mxu0 0.0
  %703 = vmatpush1.msra.mxu0 0.0
  %704 = vmatprep.subr.mxu0 0.0
  %705 = vmatpush1.msra.mxu0 0.0
  %706 = vmatprep.subr.mxu0 0.0
  %707 = vmatpush1.msra.mxu0 0.0
  %708 = vmatprep.subr.mxu0 0.0
  %709 = vmatpush1.msra.mxu0 0.0
  %710 = vmatprep.subr.mxu0 0.0
  %711 = vmatpush1.msra.mxu0 0.0
  %712 = vmatprep.subr.mxu0 0.0
  %713 = vmatpush1.msra.mxu0 0.0
  %714 = vmatprep.subr.mxu0 0.0
  %715 = vmatpush1.msra.mxu0 0.0
  %716 = vmatprep.subr.mxu0 0.0
  %717 = vmatpush1.msra.mxu0 0.0
  %718 = vmatprep.subr.mxu0 0.0
  %719 = vmatpush1.msra.mxu0 0.0
  %720 = vmatprep.subr.mxu0 0.0
  %721 = vmatpush1.msra.mxu0 0.0
  %722 = vmatprep.subr.mxu0 0.0
  %723 = vmatpush1.msra.mxu0 0.0
  %724 = vmatprep.subr.mxu0 0.0
  %725 = vmatpush1.msra.mxu0 0.0
  %726 = vmatprep.subr.mxu0 0.0
  %727 = vmatpush1.msra.mxu0 0.0
  %728 = vmatprep.subr.mxu0 0.0
  %729 = vmatpush1.msra.mxu0 0.0
  %730 = vmatprep.subr.mxu0 0.0
  %731 = vmatpush1.msra.mxu0 0.0
  %732 = vmatprep.subr.mxu0 0.0
  %733 = vmatpush1.msra.mxu0 0.0
  %734 = vmatprep.subr.mxu0 0.0
  %735 = vmatpush1.msra.mxu0 0.0
  %736 = vmatprep.subr.mxu0 0.0
  %737 = vmatpush1.msra.mxu0 0.0
  %738 = vmatprep.subr.mxu0 0.0
  %739 = vmatpush1.msra.mxu0 0.0
  %740 = vmatprep.subr.mxu0 0.0
  %741 = vmatpush1.msra.mxu0 0.0
  %742 = vmatprep.subr.mxu0 0.0
  %743 = vmatpush1.msra.mxu0 0.0
  %744 = vmatprep.subr.mxu0 0.0
  %745 = vmatpush1.msra.mxu0 0.0
  %746 = vmatprep.subr.mxu0 0.0
  %747 = vmatpush1.msra.mxu0 0.0
  %748 = vmatprep.subr.mxu0 0.0
  %749 = vmatpush1.msra.mxu0 0.0
  %750 = vmatprep.subr.mxu0 0.0
  %751 = vmatpush1.msra.mxu0 0.0
  %752 = vmatprep.subr.mxu0 0.0
  %753 = vmatpush1.msra.mxu0 0.0
  %754 = vmatprep.subr.mxu0 0.0
  %755 = vmatpush1.msra.mxu0 0.0
  %756 = vmatprep.subr.mxu0 0.0
  %757 = vmatpush1.msra.mxu0 0.0
  %758 = vmatprep.mubr.f32.mxu0 0.0
  %759 = vmatmul.mubr.f32.gmra.mrb[0].mxu0 %v692
  %v760 = vpop.f32.mrb[0].mxu0
  %v761 = vadd.f32 0.0, %v760
  %v762 = vpop.f32.mrb[0].mxu0
  %763 = vdwg.mxu0
  %v764 = vadd.f32 %v691, %v761
  %s765 = scalar_lea.vmem [#allocation3], 40
  %v766 = vld [vmem:[%s765] sm:$0xff]
  %v767 = vsel %vm262, %v686, 0
  %769 = vmatprep.subr.mxu0 0.0
  %770 = vmatpush1.msra.mxu0 %v253
  %771 = vmatprep.subr.mxu0 0.0
  %772 = vmatpush1.msra.mxu0 %v254
  %773 = vmatprep.subr.mxu0 0.0
  %774 = vmatpush1.msra.mxu0 %v255
  %775 = vmatprep.subr.mxu0 0.0
  %776 = vmatpush1.msra.mxu0 %v256
  %777 = vmatprep.subr.mxu0 0.0
  %778 = vmatpush1.msra.mxu0 0.0
  %779 = vmatprep.subr.mxu0 0.0
  %780 = vmatpush1.msra.mxu0 0.0
  %781 = vmatprep.subr.mxu0 0.0
  %782 = vmatpush1.msra.mxu0 0.0
  %783 = vmatprep.subr.mxu0 0.0
  %784 = vmatpush1.msra.mxu0 0.0
  %785 = vmatprep.subr.mxu0 0.0
  %786 = vmatpush1.msra.mxu0 0.0
  %787 = vmatprep.subr.mxu0 0.0
  %788 = vmatpush1.msra.mxu0 0.0
  %789 = vmatprep.subr.mxu0 0.0
  %790 = vmatpush1.msra.mxu0 0.0
  %791 = vmatprep.subr.mxu0 0.0
  %792 = vmatpush1.msra.mxu0 0.0
  %793 = vmatprep.subr.mxu0 0.0
  %794 = vmatpush1.msra.mxu0 0.0
  %795 = vmatprep.subr.mxu0 0.0
  %796 = vmatpush1.msra.mxu0 0.0
  %797 = vmatprep.subr.mxu0 0.0
  %798 = vmatpush1.msra.mxu0 0.0
  %799 = vmatprep.subr.mxu0 0.0
  %800 = vmatpush1.msra.mxu0 0.0
  %801 = vmatprep.subr.mxu0 0.0
  %802 = vmatpush1.msra.mxu0 0.0
  %803 = vmatprep.subr.mxu0 0.0
  %804 = vmatpush1.msra.mxu0 0.0
  %805 = vmatprep.subr.mxu0 0.0
  %806 = vmatpush1.msra.mxu0 0.0
  %807 = vmatprep.subr.mxu0 0.0
  %808 = vmatpush1.msra.mxu0 0.0
  %809 = vmatprep.subr.mxu0 0.0
  %810 = vmatpush1.msra.mxu0 0.0
  %811 = vmatprep.subr.mxu0 0.0
  %812 = vmatpush1.msra.mxu0 0.0
  %813 = vmatprep.subr.mxu0 0.0
  %814 = vmatpush1.msra.mxu0 0.0
  %815 = vmatprep.subr.mxu0 0.0
  %816 = vmatpush1.msra.mxu0 0.0
  %817 = vmatprep.subr.mxu0 0.0
  %818 = vmatpush1.msra.mxu0 0.0
  %819 = vmatprep.subr.mxu0 0.0
  %820 = vmatpush1.msra.mxu0 0.0
  %821 = vmatprep.subr.mxu0 0.0
  %822 = vmatpush1.msra.mxu0 0.0
  %823 = vmatprep.subr.mxu0 0.0
  %824 = vmatpush1.msra.mxu0 0.0
  %825 = vmatprep.subr.mxu0 0.0
  %826 = vmatpush1.msra.mxu0 0.0
  %827 = vmatprep.subr.mxu0 0.0
  %828 = vmatpush1.msra.mxu0 0.0
  %829 = vmatprep.subr.mxu0 0.0
  %830 = vmatpush1.msra.mxu0 0.0
  %831 = vmatprep.subr.mxu0 0.0
  %832 = vmatpush1.msra.mxu0 0.0
  %833 = vmatprep.mubr.f32.mxu0 0.0
  %834 = vmatmul.mubr.f32.gmra.mrb[0].mxu0 %v767
  %v835 = vpop.f32.mrb[0].mxu0
  %v836 = vadd.f32 0.0, %v835
  %v837 = vpop.f32.mrb[0].mxu0
  %838 = vdwg.mxu0
  %v839 = vadd.f32 %v766, %v836
  %v840 = vxor.u32 %v764, 2147483648
  %v841 = vmul.f32 %v840, 1.442695
  %v842 = vpow.pop %v841
  %v843 = vadd.f32 %v842, 1.0
  %v844 = vrcp.pop %v843
  %v845 = vmul.f32 1.0, %v844
  %v846 = vtanh.pop %v764
  %v847 = vmul.f32 %v845, %v647
  %849 = vrot.lane.b32.xlu0 %v846, 64
  %v850 = vpop.permute.xlu0 %849
  %v852 = vmul.f32 %v845, %v850
  %854 = vrot.lane.b32.xlu0 %v852, 32
  %v855 = vpop.permute.xlu0 %854
  %v857 = vadd.f32 %v847, %v855
  %v858 = vtanh.pop %v857
  %860 = vrot.lane.b32.xlu0 %v858, 64
  %v861 = vpop.permute.xlu0 %860
  %v863 = vmul.f32 %v845, %v861
  %v864 = vxor.u32 %v839, 2147483648
  %v865 = vmul.f32 %v864, 1.442695
  %v866 = vpow.pop %v865
  %v867 = vadd.f32 %v866, 1.0
  %v868 = vrcp.pop %v867
  %v869 = vmul.f32 1.0, %v868
  %v870 = vtanh.pop %v839
  %v871 = vmul.f32 %v869, %v671
  %873 = vrot.lane.b32.xlu0 %v870, 64
  %v874 = vpop.permute.xlu0 %873
  %v876 = vmul.f32 %v869, %v874
  %878 = vrot.lane.b32.xlu0 %v876, 32
  %v879 = vpop.permute.xlu0 %878
  %v881 = vadd.f32 %v871, %v879
  %v882 = vtanh.pop %v881
  %884 = vrot.lane.b32.xlu0 %v882, 64
  %v885 = vpop.permute.xlu0 %884
  %v887 = vmul.f32 %v869, %v885
  %889 = vrot.lane.b32.xlu0 %v863, 32
  %v890 = vpop.permute.xlu0 %889
  %s892 = scalar_lea.vmem %s10, 16
  %893 = vst.msk [vmem:[%s892] sm:$0xff] %vm262, %v890
  %895 = vrot.lane.b32.xlu0 %v887, 32
  %v896 = vpop.permute.xlu0 %895
  %s898 = scalar_lea.vmem %s11, 40
  %899 = vst.msk [vmem:[%s898] sm:$0xff] %vm262, %v896
  %s900 = scalar_lea.vmem [#allocation2], 24
  %v901 = vld [vmem:[%s900] sm:$0xff]
  %v902 = vsel %vm262, %v890, 0
  %904 = vmatprep.subr.mxu0 0.0
  %905 = vmatpush1.msra.mxu0 %v249
  %906 = vmatprep.subr.mxu0 0.0
  %907 = vmatpush1.msra.mxu0 %v250
  %908 = vmatprep.subr.mxu0 0.0
  %909 = vmatpush1.msra.mxu0 %v251
  %910 = vmatprep.subr.mxu0 0.0
  %911 = vmatpush1.msra.mxu0 %v252
  %912 = vmatprep.subr.mxu0 0.0
  %913 = vmatpush1.msra.mxu0 0.0
  %914 = vmatprep.subr.mxu0 0.0
  %915 = vmatpush1.msra.mxu0 0.0
  %916 = vmatprep.subr.mxu0 0.0
  %917 = vmatpush1.msra.mxu0 0.0
  %918 = vmatprep.subr.mxu0 0.0
  %919 = vmatpush1.msra.mxu0 0.0
  %920 = vmatprep.subr.mxu0 0.0
  %921 = vmatpush1.msra.mxu0 0.0
  %922 = vmatprep.subr.mxu0 0.0
  %923 = vmatpush1.msra.mxu0 0.0
  %924 = vmatprep.subr.mxu0 0.0
  %925 = vmatpush1.msra.mxu0 0.0
  %926 = vmatprep.subr.mxu0 0.0
  %927 = vmatpush1.msra.mxu0 0.0
  %928 = vmatprep.subr.mxu0 0.0
  %929 = vmatpush1.msra.mxu0 0.0
  %930 = vmatprep.subr.mxu0 0.0
  %931 = vmatpush1.msra.mxu0 0.0
  %932 = vmatprep.subr.mxu0 0.0
  %933 = vmatpush1.msra.mxu0 0.0
  %934 = vmatprep.subr.mxu0 0.0
  %935 = vmatpush1.msra.mxu0 0.0
  %936 = vmatprep.subr.mxu0 0.0
  %937 = vmatpush1.msra.mxu0 0.0
  %938 = vmatprep.subr.mxu0 0.0
  %939 = vmatpush1.msra.mxu0 0.0
  %940 = vmatprep.subr.mxu0 0.0
  %941 = vmatpush1.msra.mxu0 0.0
  %942 = vmatprep.subr.mxu0 0.0
  %943 = vmatpush1.msra.mxu0 0.0
  %944 = vmatprep.subr.mxu0 0.0
  %945 = vmatpush1.msra.mxu0 0.0
  %946 = vmatprep.subr.mxu0 0.0
  %947 = vmatpush1.msra.mxu0 0.0
  %948 = vmatprep.subr.mxu0 0.0
  %949 = vmatpush1.msra.mxu0 0.0
  %950 = vmatprep.subr.mxu0 0.0
  %951 = vmatpush1.msra.mxu0 0.0
  %952 = vmatprep.subr.mxu0 0.0
  %953 = vmatpush1.msra.mxu0 0.0
  %954 = vmatprep.subr.mxu0 0.0
  %955 = vmatpush1.msra.mxu0 0.0
  %956 = vmatprep.subr.mxu0 0.0
  %957 = vmatpush1.msra.mxu0 0.0
  %958 = vmatprep.subr.mxu0 0.0
  %959 = vmatpush1.msra.mxu0 0.0
  %960 = vmatprep.subr.mxu0 0.0
  %961 = vmatpush1.msra.mxu0 0.0
  %962 = vmatprep.subr.mxu0 0.0
  %963 = vmatpush1.msra.mxu0 0.0
  %964 = vmatprep.subr.mxu0 0.0
  %965 = vmatpush1.msra.mxu0 0.0
  %966 = vmatprep.subr.mxu0 0.0
  %967 = vmatpush1.msra.mxu0 0.0
  %968 = vmatprep.mubr.f32.mxu0 0.0
  %969 = vmatmul.mubr.f32.gmra.mrb[0].mxu0 %v902
  %v970 = vpop.f32.mrb[0].mxu0
  %v971 = vadd.f32 0.0, %v970
  %v972 = vpop.f32.mrb[0].mxu0
  %973 = vdwg.mxu0
  %v974 = vadd.f32 %v901, %v971
  %s975 = scalar_lea.vmem [#allocation3], 32
  %v976 = vld [vmem:[%s975] sm:$0xff]
  %v977 = vsel %vm262, %v896, 0
  %979 = vmatprep.subr.mxu0 0.0
  %980 = vmatpush1.msra.mxu0 %v253
  %981 = vmatprep.subr.mxu0 0.0
  %982 = vmatpush1.msra.mxu0 %v254
  %983 = vmatprep.subr.mxu0 0.0
  %984 = vmatpush1.msra.mxu0 %v255
  %985 = vmatprep.subr.mxu0 0.0
  %986 = vmatpush1.msra.mxu0 %v256
  %987 = vmatprep.subr.mxu0 0.0
  %988 = vmatpush1.msra.mxu0 0.0
  %989 = vmatprep.subr.mxu0 0.0
  %990 = vmatpush1.msra.mxu0 0.0
  %991 = vmatprep.subr.mxu0 0.0
  %992 = vmatpush1.msra.mxu0 0.0
  %993 = vmatprep.subr.mxu0 0.0
  %994 = vmatpush1.msra.mxu0 0.0
  %995 = vmatprep.subr.mxu0 0.0
  %996 = vmatpush1.msra.mxu0 0.0
  %997 = vmatprep.subr.mxu0 0.0
  %998 = vmatpush1.msra.mxu0 0.0
  %999 = vmatprep.subr.mxu0 0.0
  %1000 = vmatpush1.msra.mxu0 0.0
  %1001 = vmatprep.subr.mxu0 0.0
  %1002 = vmatpush1.msra.mxu0 0.0
  %1003 = vmatprep.subr.mxu0 0.0
  %1004 = vmatpush1.msra.mxu0 0.0
  %1005 = vmatprep.subr.mxu0 0.0
  %1006 = vmatpush1.msra.mxu0 0.0
  %1007 = vmatprep.subr.mxu0 0.0
  %1008 = vmatpush1.msra.mxu0 0.0
  %1009 = vmatprep.subr.mxu0 0.0
  %1010 = vmatpush1.msra.mxu0 0.0
  %1011 = vmatprep.subr.mxu0 0.0
  %1012 = vmatpush1.msra.mxu0 0.0
  %1013 = vmatprep.subr.mxu0 0.0
  %1014 = vmatpush1.msra.mxu0 0.0
  %1015 = vmatprep.subr.mxu0 0.0
  %1016 = vmatpush1.msra.mxu0 0.0
  %1017 = vmatprep.subr.mxu0 0.0
  %1018 = vmatpush1.msra.mxu0 0.0
  %1019 = vmatprep.subr.mxu0 0.0
  %1020 = vmatpush1.msra.mxu0 0.0
  %1021 = vmatprep.subr.mxu0 0.0
  %1022 = vmatpush1.msra.mxu0 0.0
  %1023 = vmatprep.subr.mxu0 0.0
  %1024 = vmatpush1.msra.mxu0 0.0
  %1025 = vmatprep.subr.mxu0 0.0
  %1026 = vmatpush1.msra.mxu0 0.0
  %1027 = vmatprep.subr.mxu0 0.0
  %1028 = vmatpush1.msra.mxu0 0.0
  %1029 = vmatprep.subr.mxu0 0.0
  %1030 = vmatpush1.msra.mxu0 0.0
  %1031 = vmatprep.subr.mxu0 0.0
  %1032 = vmatpush1.msra.mxu0 0.0
  %1033 = vmatprep.subr.mxu0 0.0
  %1034 = vmatpush1.msra.mxu0 0.0
  %1035 = vmatprep.subr.mxu0 0.0
  %1036 = vmatpush1.msra.mxu0 0.0
  %1037 = vmatprep.subr.mxu0 0.0
  %1038 = vmatpush1.msra.mxu0 0.0
  %1039 = vmatprep.subr.mxu0 0.0
  %1040 = vmatpush1.msra.mxu0 0.0
  %1041 = vmatprep.subr.mxu0 0.0
  %1042 = vmatpush1.msra.mxu0 0.0
  %1043 = vmatprep.mubr.f32.mxu0 0.0
  %1044 = vmatmul.mubr.f32.gmra.mrb[0].mxu0 %v977
  %v1045 = vpop.f32.mrb[0].mxu0
  %v1046 = vadd.f32 0.0, %v1045
  %v1047 = vpop.f32.mrb[0].mxu0
  %1048 = vdwg.mxu0
  %v1049 = vadd.f32 %v976, %v1046
  %v1050 = vxor.u32 %v974, 2147483648
  %v1051 = vmul.f32 %v1050, 1.442695
  %v1052 = vpow.pop %v1051
  %v1053 = vadd.f32 %v1052, 1.0
  %v1054 = vrcp.pop %v1053
  %v1055 = vmul.f32 1.0, %v1054
  %v1056 = vtanh.pop %v974
  %v1057 = vmul.f32 %v1055, %v857
  %1059 = vrot.lane.b32.xlu0 %v1056, 64
  %v1060 = vpop.permute.xlu0 %1059
  %v1062 = vmul.f32 %v1055, %v1060
  %1064 = vrot.lane.b32.xlu0 %v1062, 32
  %v1065 = vpop.permute.xlu0 %1064
  %v1067 = vadd.f32 %v1057, %v1065
  %v1068 = vtanh.pop %v1067
  %1070 = vrot.lane.b32.xlu0 %v1068, 64
  %v1071 = vpop.permute.xlu0 %1070
  %v1073 = vmul.f32 %v1055, %v1071
  %v1074 = vxor.u32 %v1049, 2147483648
  %v1075 = vmul.f32 %v1074, 1.442695
  %v1076 = vpow.pop %v1075
  %v1077 = vadd.f32 %v1076, 1.0
  %v1078 = vrcp.pop %v1077
  %v1079 = vmul.f32 1.0, %v1078
  %v1080 = vtanh.pop %v1049
  %v1081 = vmul.f32 %v1079, %v881
  %1083 = vrot.lane.b32.xlu0 %v1080, 64
  %v1084 = vpop.permute.xlu0 %1083
  %v1086 = vmul.f32 %v1079, %v1084
  %1088 = vrot.lane.b32.xlu0 %v1086, 32
  %v1089 = vpop.permute.xlu0 %1088
  %v1091 = vadd.f32 %v1081, %v1089
  %v1092 = vtanh.pop %v1091
  %1094 = vrot.lane.b32.xlu0 %v1092, 64
  %v1095 = vpop.permute.xlu0 %1094
  %v1097 = vmul.f32 %v1079, %v1095
  %1099 = vrot.lane.b32.xlu0 %v1073, 32
  %v1100 = vpop.permute.xlu0 %1099
  %s1102 = scalar_lea.vmem %s10, 24
  %1103 = vst.msk [vmem:[%s1102] sm:$0xff] %vm262, %v1100
  %1105 = vrot.lane.b32.xlu0 %v1097, 32
  %v1106 = vpop.permute.xlu0 %1105
  %s1108 = scalar_lea.vmem %s11, 32
  %1109 = vst.msk [vmem:[%s1108] sm:$0xff] %vm262, %v1106
  %s1110 = scalar_lea.vmem [#allocation2], 32
  %v1111 = vld [vmem:[%s1110] sm:$0xff]
  %v1112 = vsel %vm262, %v1100, 0
  %1114 = vmatprep.subr.mxu0 0.0
  %1115 = vmatpush1.msra.mxu0 %v249
  %1116 = vmatprep.subr.mxu0 0.0
  %1117 = vmatpush1.msra.mxu0 %v250
  %1118 = vmatprep.subr.mxu0 0.0
  %1119 = vmatpush1.msra.mxu0 %v251
  %1120 = vmatprep.subr.mxu0 0.0
  %1121 = vmatpush1.msra.mxu0 %v252
  %1122 = vmatprep.subr.mxu0 0.0
  %1123 = vmatpush1.msra.mxu0 0.0
  %1124 = vmatprep.subr.mxu0 0.0
  %1125 = vmatpush1.msra.mxu0 0.0
  %1126 = vmatprep.subr.mxu0 0.0
  %1127 = vmatpush1.msra.mxu0 0.0
  %1128 = vmatprep.subr.mxu0 0.0
  %1129 = vmatpush1.msra.mxu0 0.0
  %1130 = vmatprep.subr.mxu0 0.0
  %1131 = vmatpush1.msra.mxu0 0.0
  %1132 = vmatprep.subr.mxu0 0.0
  %1133 = vmatpush1.msra.mxu0 0.0
  %1134 = vmatprep.subr.mxu0 0.0
  %1135 = vmatpush1.msra.mxu0 0.0
  %1136 = vmatprep.subr.mxu0 0.0
  %1137 = vmatpush1.msra.mxu0 0.0
  %1138 = vmatprep.subr.mxu0 0.0
  %1139 = vmatpush1.msra.mxu0 0.0
  %1140 = vmatprep.subr.mxu0 0.0
  %1141 = vmatpush1.msra.mxu0 0.0
  %1142 = vmatprep.subr.mxu0 0.0
  %1143 = vmatpush1.msra.mxu0 0.0
  %1144 = vmatprep.subr.mxu0 0.0
  %1145 = vmatpush1.msra.mxu0 0.0
  %1146 = vmatprep.subr.mxu0 0.0
  %1147 = vmatpush1.msra.mxu0 0.0
  %1148 = vmatprep.subr.mxu0 0.0
  %1149 = vmatpush1.msra.mxu0 0.0
  %1150 = vmatprep.subr.mxu0 0.0
  %1151 = vmatpush1.msra.mxu0 0.0
  %1152 = vmatprep.subr.mxu0 0.0
  %1153 = vmatpush1.msra.mxu0 0.0
  %1154 = vmatprep.subr.mxu0 0.0
  %1155 = vmatpush1.msra.mxu0 0.0
  %1156 = vmatprep.subr.mxu0 0.0
  %1157 = vmatpush1.msra.mxu0 0.0
  %1158 = vmatprep.subr.mxu0 0.0
  %1159 = vmatpush1.msra.mxu0 0.0
  %1160 = vmatprep.subr.mxu0 0.0
  %1161 = vmatpush1.msra.mxu0 0.0
  %1162 = vmatprep.subr.mxu0 0.0
  %1163 = vmatpush1.msra.mxu0 0.0
  %1164 = vmatprep.subr.mxu0 0.0
  %1165 = vmatpush1.msra.mxu0 0.0
  %1166 = vmatprep.subr.mxu0 0.0
  %1167 = vmatpush1.msra.mxu0 0.0
  %1168 = vmatprep.subr.mxu0 0.0
  %1169 = vmatpush1.msra.mxu0 0.0
  %1170 = vmatprep.subr.mxu0 0.0
  %1171 = vmatpush1.msra.mxu0 0.0
  %1172 = vmatprep.subr.mxu0 0.0
  %1173 = vmatpush1.msra.mxu0 0.0
  %1174 = vmatprep.subr.mxu0 0.0
  %1175 = vmatpush1.msra.mxu0 0.0
  %1176 = vmatprep.subr.mxu0 0.0
  %1177 = vmatpush1.msra.mxu0 0.0
  %1178 = vmatprep.mubr.f32.mxu0 0.0
  %1179 = vmatmul.mubr.f32.gmra.mrb[0].mxu0 %v1112
  %v1180 = vpop.f32.mrb[0].mxu0
  %v1181 = vadd.f32 0.0, %v1180
  %v1182 = vpop.f32.mrb[0].mxu0
  %1183 = vdwg.mxu0
  %v1184 = vadd.f32 %v1111, %v1181
  %s1185 = scalar_lea.vmem [#allocation3], 24
  %v1186 = vld [vmem:[%s1185] sm:$0xff]
  %v1187 = vsel %vm262, %v1106, 0
  %1189 = vmatprep.subr.mxu0 0.0
  %1190 = vmatpush1.msra.mxu0 %v253
  %1191 = vmatprep.subr.mxu0 0.0
  %1192 = vmatpush1.msra.mxu0 %v254
  %1193 = vmatprep.subr.mxu0 0.0
  %1194 = vmatpush1.msra.mxu0 %v255
  %1195 = vmatprep.subr.mxu0 0.0
  %1196 = vmatpush1.msra.mxu0 %v256
  %1197 = vmatprep.subr.mxu0 0.0
  %1198 = vmatpush1.msra.mxu0 0.0
  %1199 = vmatprep.subr.mxu0 0.0
  %1200 = vmatpush1.msra.mxu0 0.0
  %1201 = vmatprep.subr.mxu0 0.0
  %1202 = vmatpush1.msra.mxu0 0.0
  %1203 = vmatprep.subr.mxu0 0.0
  %1204 = vmatpush1.msra.mxu0 0.0
  %1205 = vmatprep.subr.mxu0 0.0
  %1206 = vmatpush1.msra.mxu0 0.0
  %1207 = vmatprep.subr.mxu0 0.0
  %1208 = vmatpush1.msra.mxu0 0.0
  %1209 = vmatprep.subr.mxu0 0.0
  %1210 = vmatpush1.msra.mxu0 0.0
  %1211 = vmatprep.subr.mxu0 0.0
  %1212 = vmatpush1.msra.mxu0 0.0
  %1213 = vmatprep.subr.mxu0 0.0
  %1214 = vmatpush1.msra.mxu0 0.0
  %1215 = vmatprep.subr.mxu0 0.0
  %1216 = vmatpush1.msra.mxu0 0.0
  %1217 = vmatprep.subr.mxu0 0.0
  %1218 = vmatpush1.msra.mxu0 0.0
  %1219 = vmatprep.subr.mxu0 0.0
  %1220 = vmatpush1.msra.mxu0 0.0
  %1221 = vmatprep.subr.mxu0 0.0
  %1222 = vmatpush1.msra.mxu0 0.0
  %1223 = vmatprep.subr.mxu0 0.0
  %1224 = vmatpush1.msra.mxu0 0.0
  %1225 = vmatprep.subr.mxu0 0.0
  %1226 = vmatpush1.msra.mxu0 0.0
  %1227 = vmatprep.subr.mxu0 0.0
  %1228 = vmatpush1.msra.mxu0 0.0
  %1229 = vmatprep.subr.mxu0 0.0
  %1230 = vmatpush1.msra.mxu0 0.0
  %1231 = vmatprep.subr.mxu0 0.0
  %1232 = vmatpush1.msra.mxu0 0.0
  %1233 = vmatprep.subr.mxu0 0.0
  %1234 = vmatpush1.msra.mxu0 0.0
  %1235 = vmatprep.subr.mxu0 0.0
  %1236 = vmatpush1.msra.mxu0 0.0
  %1237 = vmatprep.subr.mxu0 0.0
  %1238 = vmatpush1.msra.mxu0 0.0
  %1239 = vmatprep.subr.mxu0 0.0
  %1240 = vmatpush1.msra.mxu0 0.0
  %1241 = vmatprep.subr.mxu0 0.0
  %1242 = vmatpush1.msra.mxu0 0.0
  %1243 = vmatprep.subr.mxu0 0.0
  %1244 = vmatpush1.msra.mxu0 0.0
  %1245 = vmatprep.subr.mxu0 0.0
  %1246 = vmatpush1.msra.mxu0 0.0
  %1247 = vmatprep.subr.mxu0 0.0
  %1248 = vmatpush1.msra.mxu0 0.0
  %1249 = vmatprep.subr.mxu0 0.0
  %1250 = vmatpush1.msra.mxu0 0.0
  %1251 = vmatprep.subr.mxu0 0.0
  %1252 = vmatpush1.msra.mxu0 0.0
  %1253 = vmatprep.mubr.f32.mxu0 0.0
  %1254 = vmatmul.mubr.f32.gmra.mrb[0].mxu0 %v1187
  %v1255 = vpop.f32.mrb[0].mxu0
  %v1256 = vadd.f32 0.0, %v1255
  %v1257 = vpop.f32.mrb[0].mxu0
  %1258 = vdwg.mxu0
  %v1259 = vadd.f32 %v1186, %v1256
  %v1260 = vxor.u32 %v1184, 2147483648
  %v1261 = vmul.f32 %v1260, 1.442695
  %v1262 = vpow.pop %v1261
  %v1263 = vadd.f32 %v1262, 1.0
  %v1264 = vrcp.pop %v1263
  %v1265 = vmul.f32 1.0, %v1264
  %v1266 = vtanh.pop %v1184
  %v1267 = vmul.f32 %v1265, %v1067
  %1269 = vrot.lane.b32.xlu0 %v1266, 64
  %v1270 = vpop.permute.xlu0 %1269
  %v1272 = vmul.f32 %v1265, %v1270
  %1274 = vrot.lane.b32.xlu0 %v1272, 32
  %v1275 = vpop.permute.xlu0 %1274
  %v1277 = vadd.f32 %v1267, %v1275
  %v1278 = vtanh.pop %v1277
  %1280 = vrot.lane.b32.xlu0 %v1278, 64
  %v1281 = vpop.permute.xlu0 %1280
  %v1283 = vmul.f32 %v1265, %v1281
  %v1284 = vxor.u32 %v1259, 2147483648
  %v1285 = vmul.f32 %v1284, 1.442695
  %v1286 = vpow.pop %v1285
  %v1287 = vadd.f32 %v1286, 1.0
  %v1288 = vrcp.pop %v1287
  %v1289 = vmul.f32 1.0, %v1288
  %v1290 = vtanh.pop %v1259
  %v1291 = vmul.f32 %v1289, %v1091
  %1293 = vrot.lane.b32.xlu0 %v1290, 64
  %v1294 = vpop.permute.xlu0 %1293
  %v1296 = vmul.f32 %v1289, %v1294
  %1298 = vrot.lane.b32.xlu0 %v1296, 32
  %v1299 = vpop.permute.xlu0 %1298
  %v1301 = vadd.f32 %v1291, %v1299
  %v1302 = vtanh.pop %v1301
  %1304 = vrot.lane.b32.xlu0 %v1302, 64
  %v1305 = vpop.permute.xlu0 %1304
  %v1307 = vmul.f32 %v1289, %v1305
  %1309 = vrot.lane.b32.xlu0 %v1283, 32
  %v1310 = vpop.permute.xlu0 %1309
  %s1312 = scalar_lea.vmem %s10, 32
  %1313 = vst.msk [vmem:[%s1312] sm:$0xff] %vm262, %v1310
  %1315 = vrot.lane.b32.xlu0 %v1307, 32
  %v1316 = vpop.permute.xlu0 %1315
  %s1318 = scalar_lea.vmem %s11, 24
  %1319 = vst.msk [vmem:[%s1318] sm:$0xff] %vm262, %v1316
  %s1320 = scalar_lea.vmem [#allocation2], 40
  %v1321 = vld [vmem:[%s1320] sm:$0xff]
  %v1322 = vsel %vm262, %v1310, 0
  %1324 = vmatprep.subr.mxu0 0.0
  %1325 = vmatpush1.msra.mxu0 %v249
  %1326 = vmatprep.subr.mxu0 0.0
  %1327 = vmatpush1.msra.mxu0 %v250
  %1328 = vmatprep.subr.mxu0 0.0
  %1329 = vmatpush1.msra.mxu0 %v251
  %1330 = vmatprep.subr.mxu0 0.0
  %1331 = vmatpush1.msra.mxu0 %v252
  %1332 = vmatprep.subr.mxu0 0.0
  %1333 = vmatpush1.msra.mxu0 0.0
  %1334 = vmatprep.subr.mxu0 0.0
  %1335 = vmatpush1.msra.mxu0 0.0
  %1336 = vmatprep.subr.mxu0 0.0
  %1337 = vmatpush1.msra.mxu0 0.0
  %1338 = vmatprep.subr.mxu0 0.0
  %1339 = vmatpush1.msra.mxu0 0.0
  %1340 = vmatprep.subr.mxu0 0.0
  %1341 = vmatpush1.msra.mxu0 0.0
  %1342 = vmatprep.subr.mxu0 0.0
  %1343 = vmatpush1.msra.mxu0 0.0
  %1344 = vmatprep.subr.mxu0 0.0
  %1345 = vmatpush1.msra.mxu0 0.0
  %1346 = vmatprep.subr.mxu0 0.0
  %1347 = vmatpush1.msra.mxu0 0.0
  %1348 = vmatprep.subr.mxu0 0.0
  %1349 = vmatpush1.msra.mxu0 0.0
  %1350 = vmatprep.subr.mxu0 0.0
  %1351 = vmatpush1.msra.mxu0 0.0
  %1352 = vmatprep.subr.mxu0 0.0
  %1353 = vmatpush1.msra.mxu0 0.0
  %1354 = vmatprep.subr.mxu0 0.0
  %1355 = vmatpush1.msra.mxu0 0.0
  %1356 = vmatprep.subr.mxu0 0.0
  %1357 = vmatpush1.msra.mxu0 0.0
  %1358 = vmatprep.subr.mxu0 0.0
  %1359 = vmatpush1.msra.mxu0 0.0
  %1360 = vmatprep.subr.mxu0 0.0
  %1361 = vmatpush1.msra.mxu0 0.0
  %1362 = vmatprep.subr.mxu0 0.0
  %1363 = vmatpush1.msra.mxu0 0.0
  %1364 = vmatprep.subr.mxu0 0.0
  %1365 = vmatpush1.msra.mxu0 0.0
  %1366 = vmatprep.subr.mxu0 0.0
  %1367 = vmatpush1.msra.mxu0 0.0
  %1368 = vmatprep.subr.mxu0 0.0
  %1369 = vmatpush1.msra.mxu0 0.0
  %1370 = vmatprep.subr.mxu0 0.0
  %1371 = vmatpush1.msra.mxu0 0.0
  %1372 = vmatprep.subr.mxu0 0.0
  %1373 = vmatpush1.msra.mxu0 0.0
  %1374 = vmatprep.subr.mxu0 0.0
  %1375 = vmatpush1.msra.mxu0 0.0
  %1376 = vmatprep.subr.mxu0 0.0
  %1377 = vmatpush1.msra.mxu0 0.0
  %1378 = vmatprep.subr.mxu0 0.0
  %1379 = vmatpush1.msra.mxu0 0.0
  %1380 = vmatprep.subr.mxu0 0.0
  %1381 = vmatpush1.msra.mxu0 0.0
  %1382 = vmatprep.subr.mxu0 0.0
  %1383 = vmatpush1.msra.mxu0 0.0
  %1384 = vmatprep.subr.mxu0 0.0
  %1385 = vmatpush1.msra.mxu0 0.0
  %1386 = vmatprep.subr.mxu0 0.0
  %1387 = vmatpush1.msra.mxu0 0.0
  %1388 = vmatprep.mubr.f32.mxu0 0.0
  %1389 = vmatmul.mubr.f32.gmra.mrb[0].mxu0 %v1322
  %v1390 = vpop.f32.mrb[0].mxu0
  %v1391 = vadd.f32 0.0, %v1390
  %v1392 = vpop.f32.mrb[0].mxu0
  %1393 = vdwg.mxu0
  %v1394 = vadd.f32 %v1321, %v1391
  %s1395 = scalar_lea.vmem [#allocation3], 16
  %v1396 = vld [vmem:[%s1395] sm:$0xff]
  %v1397 = vsel %vm262, %v1316, 0
  %1399 = vmatprep.subr.mxu0 0.0
  %1400 = vmatpush1.msra.mxu0 %v253
  %1401 = vmatprep.subr.mxu0 0.0
  %1402 = vmatpush1.msra.mxu0 %v254
  %1403 = vmatprep.subr.mxu0 0.0
  %1404 = vmatpush1.msra.mxu0 %v255
  %1405 = vmatprep.subr.mxu0 0.0
  %1406 = vmatpush1.msra.mxu0 %v256
  %1407 = vmatprep.subr.mxu0 0.0
  %1408 = vmatpush1.msra.mxu0 0.0
  %1409 = vmatprep.subr.mxu0 0.0
  %1410 = vmatpush1.msra.mxu0 0.0
  %1411 = vmatprep.subr.mxu0 0.0
  %1412 = vmatpush1.msra.mxu0 0.0
  %1413 = vmatprep.subr.mxu0 0.0
  %1414 = vmatpush1.msra.mxu0 0.0
  %1415 = vmatprep.subr.mxu0 0.0
  %1416 = vmatpush1.msra.mxu0 0.0
  %1417 = vmatprep.subr.mxu0 0.0
  %1418 = vmatpush1.msra.mxu0 0.0
  %1419 = vmatprep.subr.mxu0 0.0
  %1420 = vmatpush1.msra.mxu0 0.0
  %1421 = vmatprep.subr.mxu0 0.0
  %1422 = vmatpush1.msra.mxu0 0.0
  %1423 = vmatprep.subr.mxu0 0.0
  %1424 = vmatpush1.msra.mxu0 0.0
  %1425 = vmatprep.subr.mxu0 0.0
  %1426 = vmatpush1.msra.mxu0 0.0
  %1427 = vmatprep.subr.mxu0 0.0
  %1428 = vmatpush1.msra.mxu0 0.0
  %1429 = vmatprep.subr.mxu0 0.0
  %1430 = vmatpush1.msra.mxu0 0.0
  %1431 = vmatprep.subr.mxu0 0.0
  %1432 = vmatpush1.msra.mxu0 0.0
  %1433 = vmatprep.subr.mxu0 0.0
  %1434 = vmatpush1.msra.mxu0 0.0
  %1435 = vmatprep.subr.mxu0 0.0
  %1436 = vmatpush1.msra.mxu0 0.0
  %1437 = vmatprep.subr.mxu0 0.0
  %1438 = vmatpush1.msra.mxu0 0.0
  %1439 = vmatprep.subr.mxu0 0.0
  %1440 = vmatpush1.msra.mxu0 0.0
  %1441 = vmatprep.subr.mxu0 0.0
  %1442 = vmatpush1.msra.mxu0 0.0
  %1443 = vmatprep.subr.mxu0 0.0
  %1444 = vmatpush1.msra.mxu0 0.0
  %1445 = vmatprep.subr.mxu0 0.0
  %1446 = vmatpush1.msra.mxu0 0.0
  %1447 = vmatprep.subr.mxu0 0.0
  %1448 = vmatpush1.msra.mxu0 0.0
  %1449 = vmatprep.subr.mxu0 0.0
  %1450 = vmatpush1.msra.mxu0 0.0
  %1451 = vmatprep.subr.mxu0 0.0
  %1452 = vmatpush1.msra.mxu0 0.0
  %1453 = vmatprep.subr.mxu0 0.0
  %1454 = vmatpush1.msra.mxu0 0.0
  %1455 = vmatprep.subr.mxu0 0.0
  %1456 = vmatpush1.msra.mxu0 0.0
  %1457 = vmatprep.subr.mxu0 0.0
  %1458 = vmatpush1.msra.mxu0 0.0
  %1459 = vmatprep.subr.mxu0 0.0
  %1460 = vmatpush1.msra.mxu0 0.0
  %1461 = vmatprep.subr.mxu0 0.0
  %1462 = vmatpush1.msra.mxu0 0.0
  %1463 = vmatprep.mubr.f32.mxu0 0.0
  %1464 = vmatmul.mubr.f32.gmra.mrb[0].mxu0 %v1397
  %v1465 = vpop.f32.mrb[0].mxu0
  %v1466 = vadd.f32 0.0, %v1465
  %v1467 = vpop.f32.mrb[0].mxu0
  %1468 = vdwg.mxu0
  %v1469 = vadd.f32 %v1396, %v1466
  %v1470 = vxor.u32 %v1394, 2147483648
  %v1471 = vmul.f32 %v1470, 1.442695
  %v1472 = vpow.pop %v1471
  %v1473 = vadd.f32 %v1472, 1.0
  %v1474 = vrcp.pop %v1473
  %v1475 = vmul.f32 1.0, %v1474
  %v1476 = vtanh.pop %v1394
  %v1477 = vmul.f32 %v1475, %v1277
  %1479 = vrot.lane.b32.xlu0 %v1476, 64
  %v1480 = vpop.permute.xlu0 %1479
  %v1482 = vmul.f32 %v1475, %v1480
  %1484 = vrot.lane.b32.xlu0 %v1482, 32
  %v1485 = vpop.permute.xlu0 %1484
  %v1487 = vadd.f32 %v1477, %v1485
  %v1488 = vtanh.pop %v1487
  %1490 = vrot.lane.b32.xlu0 %v1488, 64
  %v1491 = vpop.permute.xlu0 %1490
  %v1493 = vmul.f32 %v1475, %v1491
  %v1494 = vxor.u32 %v1469, 2147483648
  %v1495 = vmul.f32 %v1494, 1.442695
  %v1496 = vpow.pop %v1495
  %v1497 = vadd.f32 %v1496, 1.0
  %v1498 = vrcp.pop %v1497
  %v1499 = vmul.f32 1.0, %v1498
  %v1500 = vtanh.pop %v1469
  %v1501 = vmul.f32 %v1499, %v1301
  %1503 = vrot.lane.b32.xlu0 %v1500, 64
  %v1504 = vpop.permute.xlu0 %1503
  %v1506 = vmul.f32 %v1499, %v1504
  %1508 = vrot.lane.b32.xlu0 %v1506, 32
  %v1509 = vpop.permute.xlu0 %1508
  %v1511 = vadd.f32 %v1501, %v1509
  %v1512 = vtanh.pop %v1511
  %1514 = vrot.lane.b32.xlu0 %v1512, 64
  %v1515 = vpop.permute.xlu0 %1514
  %v1517 = vmul.f32 %v1499, %v1515
  %1519 = vrot.lane.b32.xlu0 %v1493, 32
  %v1520 = vpop.permute.xlu0 %1519
  %s1522 = scalar_lea.vmem %s10, 40
  %1523 = vst.msk [vmem:[%s1522] sm:$0xff] %vm262, %v1520
  %1525 = vrot.lane.b32.xlu0 %v1517, 32
  %v1526 = vpop.permute.xlu0 %1525
  %s1528 = scalar_lea.vmem %s11, 16
  %1529 = vst.msk [vmem:[%s1528] sm:$0xff] %vm262, %v1526
  %s1530 = scalar_lea.vmem [#allocation2], 48
  %v1531 = vld [vmem:[%s1530] sm:$0xff]
  %v1532 = vsel %vm262, %v1520, 0
  %1534 = vmatprep.subr.mxu0 0.0
  %1535 = vmatpush1.msra.mxu0 %v249
  %1536 = vmatprep.subr.mxu0 0.0
  %1537 = vmatpush1.msra.mxu0 %v250
  %1538 = vmatprep.subr.mxu0 0.0
  %1539 = vmatpush1.msra.mxu0 %v251
  %1540 = vmatprep.subr.mxu0 0.0
  %1541 = vmatpush1.msra.mxu0 %v252
  %1542 = vmatprep.subr.mxu0 0.0
  %1543 = vmatpush1.msra.mxu0 0.0
  %1544 = vmatprep.subr.mxu0 0.0
  %1545 = vmatpush1.msra.mxu0 0.0
  %1546 = vmatprep.subr.mxu0 0.0
  %1547 = vmatpush1.msra.mxu0 0.0
  %1548 = vmatprep.subr.mxu0 0.0
  %1549 = vmatpush1.msra.mxu0 0.0
  %1550 = vmatprep.subr.mxu0 0.0
  %1551 = vmatpush1.msra.mxu0 0.0
  %1552 = vmatprep.subr.mxu0 0.0
  %1553 = vmatpush1.msra.mxu0 0.0
  %1554 = vmatprep.subr.mxu0 0.0
  %1555 = vmatpush1.msra.mxu0 0.0
  %1556 = vmatprep.subr.mxu0 0.0
  %1557 = vmatpush1.msra.mxu0 0.0
  %1558 = vmatprep.subr.mxu0 0.0
  %1559 = vmatpush1.msra.mxu0 0.0
  %1560 = vmatprep.subr.mxu0 0.0
  %1561 = vmatpush1.msra.mxu0 0.0
  %1562 = vmatprep.subr.mxu0 0.0
  %1563 = vmatpush1.msra.mxu0 0.0
  %1564 = vmatprep.subr.mxu0 0.0
  %1565 = vmatpush1.msra.mxu0 0.0
  %1566 = vmatprep.subr.mxu0 0.0
  %1567 = vmatpush1.msra.mxu0 0.0
  %1568 = vmatprep.subr.mxu0 0.0
  %1569 = vmatpush1.msra.mxu0 0.0
  %1570 = vmatprep.subr.mxu0 0.0
  %1571 = vmatpush1.msra.mxu0 0.0
  %1572 = vmatprep.subr.mxu0 0.0
  %1573 = vmatpush1.msra.mxu0 0.0
  %1574 = vmatprep.subr.mxu0 0.0
  %1575 = vmatpush1.msra.mxu0 0.0
  %1576 = vmatprep.subr.mxu0 0.0
  %1577 = vmatpush1.msra.mxu0 0.0
  %1578 = vmatprep.subr.mxu0 0.0
  %1579 = vmatpush1.msra.mxu0 0.0
  %1580 = vmatprep.subr.mxu0 0.0
  %1581 = vmatpush1.msra.mxu0 0.0
  %1582 = vmatprep.subr.mxu0 0.0
  %1583 = vmatpush1.msra.mxu0 0.0
  %1584 = vmatprep.subr.mxu0 0.0
  %1585 = vmatpush1.msra.mxu0 0.0
  %1586 = vmatprep.subr.mxu0 0.0
  %1587 = vmatpush1.msra.mxu0 0.0
  %1588 = vmatprep.subr.mxu0 0.0
  %1589 = vmatpush1.msra.mxu0 0.0
  %1590 = vmatprep.subr.mxu0 0.0
  %1591 = vmatpush1.msra.mxu0 0.0
  %1592 = vmatprep.subr.mxu0 0.0
  %1593 = vmatpush1.msra.mxu0 0.0
  %1594 = vmatprep.subr.mxu0 0.0
  %1595 = vmatpush1.msra.mxu0 0.0
  %1596 = vmatprep.subr.mxu0 0.0
  %1597 = vmatpush1.msra.mxu0 0.0
  %1598 = vmatprep.mubr.f32.mxu0 0.0
  %1599 = vmatmul.mubr.f32.gmra.mrb[0].mxu0 %v1532
  %v1600 = vpop.f32.mrb[0].mxu0
  %v1601 = vadd.f32 0.0, %v1600
  %v1602 = vpop.f32.mrb[0].mxu0
  %1603 = vdwg.mxu0
  %v1604 = vadd.f32 %v1531, %v1601
  %s1605 = scalar_lea.vmem [#allocation3], 8
  %v1606 = vld [vmem:[%s1605] sm:$0xff]
  %v1607 = vsel %vm262, %v1526, 0
  %1609 = vmatprep.subr.mxu0 0.0
  %1610 = vmatpush1.msra.mxu0 %v253
  %1611 = vmatprep.subr.mxu0 0.0
  %1612 = vmatpush1.msra.mxu0 %v254
  %1613 = vmatprep.subr.mxu0 0.0
  %1614 = vmatpush1.msra.mxu0 %v255
  %1615 = vmatprep.subr.mxu0 0.0
  %1616 = vmatpush1.msra.mxu0 %v256
  %1617 = vmatprep.subr.mxu0 0.0
  %1618 = vmatpush1.msra.mxu0 0.0
  %1619 = vmatprep.subr.mxu0 0.0
  %1620 = vmatpush1.msra.mxu0 0.0
  %1621 = vmatprep.subr.mxu0 0.0
  %1622 = vmatpush1.msra.mxu0 0.0
  %1623 = vmatprep.subr.mxu0 0.0
  %1624 = vmatpush1.msra.mxu0 0.0
  %1625 = vmatprep.subr.mxu0 0.0
  %1626 = vmatpush1.msra.mxu0 0.0
  %1627 = vmatprep.subr.mxu0 0.0
  %1628 = vmatpush1.msra.mxu0 0.0
  %1629 = vmatprep.subr.mxu0 0.0
  %1630 = vmatpush1.msra.mxu0 0.0
  %1631 = vmatprep.subr.mxu0 0.0
  %1632 = vmatpush1.msra.mxu0 0.0
  %1633 = vmatprep.subr.mxu0 0.0
  %1634 = vmatpush1.msra.mxu0 0.0
  %1635 = vmatprep.subr.mxu0 0.0
  %1636 = vmatpush1.msra.mxu0 0.0
  %1637 = vmatprep.subr.mxu0 0.0
  %1638 = vmatpush1.msra.mxu0 0.0
  %1639 = vmatprep.subr.mxu0 0.0
  %1640 = vmatpush1.msra.mxu0 0.0
  %1641 = vmatprep.subr.mxu0 0.0
  %1642 = vmatpush1.msra.mxu0 0.0
  %1643 = vmatprep.subr.mxu0 0.0
  %1644 = vmatpush1.msra.mxu0 0.0
  %1645 = vmatprep.subr.mxu0 0.0
  %1646 = vmatpush1.msra.mxu0 0.0
  %1647 = vmatprep.subr.mxu0 0.0
  %1648 = vmatpush1.msra.mxu0 0.0
  %1649 = vmatprep.subr.mxu0 0.0
  %1650 = vmatpush1.msra.mxu0 0.0
  %1651 = vmatprep.subr.mxu0 0.0
  %1652 = vmatpush1.msra.mxu0 0.0
  %1653 = vmatprep.subr.mxu0 0.0
  %1654 = vmatpush1.msra.mxu0 0.0
  %1655 = vmatprep.subr.mxu0 0.0
  %1656 = vmatpush1.msra.mxu0 0.0
  %1657 = vmatprep.subr.mxu0 0.0
  %1658 = vmatpush1.msra.mxu0 0.0
  %1659 = vmatprep.subr.mxu0 0.0
  %1660 = vmatpush1.msra.mxu0 0.0
  %1661 = vmatprep.subr.mxu0 0.0
  %1662 = vmatpush1.msra.mxu0 0.0
  %1663 = vmatprep.subr.mxu0 0.0
  %1664 = vmatpush1.msra.mxu0 0.0
  %1665 = vmatprep.subr.mxu0 0.0
  %1666 = vmatpush1.msra.mxu0 0.0
  %1667 = vmatprep.subr.mxu0 0.0
  %1668 = vmatpush1.msra.mxu0 0.0
  %1669 = vmatprep.subr.mxu0 0.0
  %1670 = vmatpush1.msra.mxu0 0.0
  %1671 = vmatprep.subr.mxu0 0.0
  %1672 = vmatpush1.msra.mxu0 0.0
  %1673 = vmatprep.mubr.f32.mxu0 0.0
  %1674 = vmatmul.mubr.f32.gmra.mrb[0].mxu0 %v1607
  %v1675 = vpop.f32.mrb[0].mxu0
  %v1676 = vadd.f32 0.0, %v1675
  %v1677 = vpop.f32.mrb[0].mxu0
  %1678 = vdwg.mxu0
  %v1679 = vadd.f32 %v1606, %v1676
  %v1680 = vxor.u32 %v1604, 2147483648
  %v1681 = vmul.f32 %v1680, 1.442695
  %v1682 = vpow.pop %v1681
  %v1683 = vadd.f32 %v1682, 1.0
  %v1684 = vrcp.pop %v1683
  %v1685 = vmul.f32 1.0, %v1684
  %v1686 = vtanh.pop %v1604
  %v1687 = vmul.f32 %v1685, %v1487
  %1689 = vrot.lane.b32.xlu0 %v1686, 64
  %v1690 = vpop.permute.xlu0 %1689
  %v1692 = vmul.f32 %v1685, %v1690
  %1694 = vrot.lane.b32.xlu0 %v1692, 32
  %v1695 = vpop.permute.xlu0 %1694
  %v1697 = vadd.f32 %v1687, %v1695
  %v1698 = vtanh.pop %v1697
  %1700 = vrot.lane.b32.xlu0 %v1698, 64
  %v1701 = vpop.permute.xlu0 %1700
  %v1703 = vmul.f32 %v1685, %v1701
  %v1704 = vxor.u32 %v1679, 2147483648
  %v1705 = vmul.f32 %v1704, 1.442695
  %v1706 = vpow.pop %v1705
  %v1707 = vadd.f32 %v1706, 1.0
  %v1708 = vrcp.pop %v1707
  %v1709 = vmul.f32 1.0, %v1708
  %v1710 = vtanh.pop %v1679
  %v1711 = vmul.f32 %v1709, %v1511
  %1713 = vrot.lane.b32.xlu0 %v1710, 64
  %v1714 = vpop.permute.xlu0 %1713
  %v1716 = vmul.f32 %v1709, %v1714
  %1718 = vrot.lane.b32.xlu0 %v1716, 32
  %v1719 = vpop.permute.xlu0 %1718
  %v1721 = vadd.f32 %v1711, %v1719
  %v1722 = vtanh.pop %v1721
  %1724 = vrot.lane.b32.xlu0 %v1722, 64
  %v1725 = vpop.permute.xlu0 %1724
  %v1727 = vmul.f32 %v1709, %v1725
  %1729 = vrot.lane.b32.xlu0 %v1703, 32
  %v1730 = vpop.permute.xlu0 %1729
  %s1732 = scalar_lea.vmem %s10, 48
  %1733 = vst.msk [vmem:[%s1732] sm:$0xff] %vm262, %v1730
  %1735 = vrot.lane.b32.xlu0 %v1727, 32
  %v1736 = vpop.permute.xlu0 %1735
  %s1738 = scalar_lea.vmem %s11, 8
  %1739 = vst.msk [vmem:[%s1738] sm:$0xff] %vm262, %v1736
  %s1740 = scalar_lea.vmem [#allocation2], 56
  %v1741 = vld [vmem:[%s1740] sm:$0xff]
  %v1742 = vsel %vm262, %v1730, 0
  %1744 = vmatprep.subr.mxu0 0.0
  %1745 = vmatpush1.msra.mxu0 %v249
  %1746 = vmatprep.subr.mxu0 0.0
  %1747 = vmatpush1.msra.mxu0 %v250
  %1748 = vmatprep.subr.mxu0 0.0
  %1749 = vmatpush1.msra.mxu0 %v251
  %1750 = vmatprep.subr.mxu0 0.0
  %1751 = vmatpush1.msra.mxu0 %v252
  %1752 = vmatprep.subr.mxu0 0.0
  %1753 = vmatpush1.msra.mxu0 0.0
  %1754 = vmatprep.subr.mxu0 0.0
  %1755 = vmatpush1.msra.mxu0 0.0
  %1756 = vmatprep.subr.mxu0 0.0
  %1757 = vmatpush1.msra.mxu0 0.0
  %1758 = vmatprep.subr.mxu0 0.0
  %1759 = vmatpush1.msra.mxu0 0.0
  %1760 = vmatprep.subr.mxu0 0.0
  %1761 = vmatpush1.msra.mxu0 0.0
  %1762 = vmatprep.subr.mxu0 0.0
  %1763 = vmatpush1.msra.mxu0 0.0
  %1764 = vmatprep.subr.mxu0 0.0
  %1765 = vmatpush1.msra.mxu0 0.0
  %1766 = vmatprep.subr.mxu0 0.0
  %1767 = vmatpush1.msra.mxu0 0.0
  %1768 = vmatprep.subr.mxu0 0.0
  %1769 = vmatpush1.msra.mxu0 0.0
  %1770 = vmatprep.subr.mxu0 0.0
  %1771 = vmatpush1.msra.mxu0 0.0
  %1772 = vmatprep.subr.mxu0 0.0
  %1773 = vmatpush1.msra.mxu0 0.0
  %1774 = vmatprep.subr.mxu0 0.0
  %1775 = vmatpush1.msra.mxu0 0.0
  %1776 = vmatprep.subr.mxu0 0.0
  %1777 = vmatpush1.msra.mxu0 0.0
  %1778 = vmatprep.subr.mxu0 0.0
  %1779 = vmatpush1.msra.mxu0 0.0
  %1780 = vmatprep.subr.mxu0 0.0
  %1781 = vmatpush1.msra.mxu0 0.0
  %1782 = vmatprep.subr.mxu0 0.0
  %1783 = vmatpush1.msra.mxu0 0.0
  %1784 = vmatprep.subr.mxu0 0.0
  %1785 = vmatpush1.msra.mxu0 0.0
  %1786 = vmatprep.subr.mxu0 0.0
  %1787 = vmatpush1.msra.mxu0 0.0
  %1788 = vmatprep.subr.mxu0 0.0
  %1789 = vmatpush1.msra.mxu0 0.0
  %1790 = vmatprep.subr.mxu0 0.0
  %1791 = vmatpush1.msra.mxu0 0.0
  %1792 = vmatprep.subr.mxu0 0.0
  %1793 = vmatpush1.msra.mxu0 0.0
  %1794 = vmatprep.subr.mxu0 0.0
  %1795 = vmatpush1.msra.mxu0 0.0
  %1796 = vmatprep.subr.mxu0 0.0
  %1797 = vmatpush1.msra.mxu0 0.0
  %1798 = vmatprep.subr.mxu0 0.0
  %1799 = vmatpush1.msra.mxu0 0.0
  %1800 = vmatprep.subr.mxu0 0.0
  %1801 = vmatpush1.msra.mxu0 0.0
  %1802 = vmatprep.subr.mxu0 0.0
  %1803 = vmatpush1.msra.mxu0 0.0
  %1804 = vmatprep.subr.mxu0 0.0
  %1805 = vmatpush1.msra.mxu0 0.0
  %1806 = vmatprep.subr.mxu0 0.0
  %1807 = vmatpush1.msra.mxu0 0.0
  %1808 = vmatprep.mubr.f32.mxu0 0.0
  %1809 = vmatmul.mubr.f32.gmra.mrb[0].mxu0 %v1742
  %v1810 = vpop.f32.mrb[0].mxu0
  %v1811 = vadd.f32 0.0, %v1810
  %v1812 = vpop.f32.mrb[0].mxu0
  %1813 = vdwg.mxu0
  %v1814 = vadd.f32 %v1741, %v1811
  %v1815 = vld [vmem:[#allocation3] sm:$0xff]
  %v1816 = vsel %vm262, %v1736, 0
  %1818 = vmatprep.subr.mxu0 0.0
  %1819 = vmatpush1.msra.mxu0 %v253
  %1820 = vmatprep.subr.mxu0 0.0
  %1821 = vmatpush1.msra.mxu0 %v254
  %1822 = vmatprep.subr.mxu0 0.0
  %1823 = vmatpush1.msra.mxu0 %v255
  %1824 = vmatprep.subr.mxu0 0.0
  %1825 = vmatpush1.msra.mxu0 %v256
  %1826 = vmatprep.subr.mxu0 0.0
  %1827 = vmatpush1.msra.mxu0 0.0
  %1828 = vmatprep.subr.mxu0 0.0
  %1829 = vmatpush1.msra.mxu0 0.0
  %1830 = vmatprep.subr.mxu0 0.0
  %1831 = vmatpush1.msra.mxu0 0.0
  %1832 = vmatprep.subr.mxu0 0.0
  %1833 = vmatpush1.msra.mxu0 0.0
  %1834 = vmatprep.subr.mxu0 0.0
  %1835 = vmatpush1.msra.mxu0 0.0
  %1836 = vmatprep.subr.mxu0 0.0
  %1837 = vmatpush1.msra.mxu0 0.0
  %1838 = vmatprep.subr.mxu0 0.0
  %1839 = vmatpush1.msra.mxu0 0.0
  %1840 = vmatprep.subr.mxu0 0.0
  %1841 = vmatpush1.msra.mxu0 0.0
  %1842 = vmatprep.subr.mxu0 0.0
  %1843 = vmatpush1.msra.mxu0 0.0
  %1844 = vmatprep.subr.mxu0 0.0
  %1845 = vmatpush1.msra.mxu0 0.0
  %1846 = vmatprep.subr.mxu0 0.0
  %1847 = vmatpush1.msra.mxu0 0.0
  %1848 = vmatprep.subr.mxu0 0.0
  %1849 = vmatpush1.msra.mxu0 0.0
  %1850 = vmatprep.subr.mxu0 0.0
  %1851 = vmatpush1.msra.mxu0 0.0
  %1852 = vmatprep.subr.mxu0 0.0
  %1853 = vmatpush1.msra.mxu0 0.0
  %1854 = vmatprep.subr.mxu0 0.0
  %1855 = vmatpush1.msra.mxu0 0.0
  %1856 = vmatprep.subr.mxu0 0.0
  %1857 = vmatpush1.msra.mxu0 0.0
  %1858 = vmatprep.subr.mxu0 0.0
  %1859 = vmatpush1.msra.mxu0 0.0
  %1860 = vmatprep.subr.mxu0 0.0
  %1861 = vmatpush1.msra.mxu0 0.0
  %1862 = vmatprep.subr.mxu0 0.0
  %1863 = vmatpush1.msra.mxu0 0.0
  %1864 = vmatprep.subr.mxu0 0.0
  %1865 = vmatpush1.msra.mxu0 0.0
  %1866 = vmatprep.subr.mxu0 0.0
  %1867 = vmatpush1.msra.mxu0 0.0
  %1868 = vmatprep.subr.mxu0 0.0
  %1869 = vmatpush1.msra.mxu0 0.0
  %1870 = vmatprep.subr.mxu0 0.0
  %1871 = vmatpush1.msra.mxu0 0.0
  %1872 = vmatprep.subr.mxu0 0.0
  %1873 = vmatpush1.msra.mxu0 0.0
  %1874 = vmatprep.subr.mxu0 0.0
  %1875 = vmatpush1.msra.mxu0 0.0
  %1876 = vmatprep.subr.mxu0 0.0
  %1877 = vmatpush1.msra.mxu0 0.0
  %1878 = vmatprep.subr.mxu0 0.0
  %1879 = vmatpush1.msra.mxu0 0.0
  %1880 = vmatprep.subr.mxu0 0.0
  %1881 = vmatpush1.msra.mxu0 0.0
  %1882 = vmatprep.mubr.f32.mxu0 0.0
  %1883 = vmatmul.mubr.f32.gmra.mrb[0].mxu0 %v1816
  %v1884 = vpop.f32.mrb[0].mxu0
  %v1885 = vadd.f32 0.0, %v1884
  %v1886 = vpop.f32.mrb[0].mxu0
  %1887 = vdwg.mxu0
  %v1888 = vadd.f32 %v1815, %v1885
  %v1889 = vxor.u32 %v1814, 2147483648
  %v1890 = vmul.f32 %v1889, 1.442695
  %v1891 = vpow.pop %v1890
  %v1892 = vadd.f32 %v1891, 1.0
  %v1893 = vrcp.pop %v1892
  %v1894 = vmul.f32 1.0, %v1893
  %v1895 = vtanh.pop %v1814
  %v1896 = vmul.f32 %v1894, %v1697
  %1898 = vrot.lane.b32.xlu0 %v1895, 64
  %v1899 = vpop.permute.xlu0 %1898
  %v1901 = vmul.f32 %v1894, %v1899
  %1903 = vrot.lane.b32.xlu0 %v1901, 32
  %v1904 = vpop.permute.xlu0 %1903
  %v1906 = vadd.f32 %v1896, %v1904
  %v1907 = vtanh.pop %v1906
  %1909 = vrot.lane.b32.xlu0 %v1907, 64
  %v1910 = vpop.permute.xlu0 %1909
  %v1912 = vmul.f32 %v1894, %v1910
  %v1913 = vxor.u32 %v1888, 2147483648
  %v1914 = vmul.f32 %v1913, 1.442695
  %v1915 = vpow.pop %v1914
  %v1916 = vadd.f32 %v1915, 1.0
  %v1917 = vrcp.pop %v1916
  %v1918 = vmul.f32 1.0, %v1917
  %v1919 = vtanh.pop %v1888
  %v1920 = vmul.f32 %v1918, %v1721
  %1922 = vrot.lane.b32.xlu0 %v1919, 64
  %v1923 = vpop.permute.xlu0 %1922
  %v1925 = vmul.f32 %v1918, %v1923
  %1927 = vrot.lane.b32.xlu0 %v1925, 32
  %v1928 = vpop.permute.xlu0 %1927
  %v1930 = vadd.f32 %v1920, %v1928
  %v1931 = vtanh.pop %v1930
  %1933 = vrot.lane.b32.xlu0 %v1931, 64
  %v1934 = vpop.permute.xlu0 %1933
  %v1936 = vmul.f32 %v1918, %v1934
  %1938 = vrot.lane.b32.xlu0 %v1912, 32
  %v1939 = vpop.permute.xlu0 %1938
  %s1941 = scalar_lea.vmem %s10, 56
  %1942 = vst.msk [vmem:[%s1941] sm:$0xff] %vm262, %v1939
  %1944 = vrot.lane.b32.xlu0 %v1936, 32
  %v1945 = vpop.permute.xlu0 %1944
  %1947 = vst.msk [vmem:[%s11] sm:$0xff] %vm262, %v1945
  %1948 = vst.msk [vmem:[%s12] sm:$0xff] %vm262, %v1939
  %1949 = vst.msk [vmem:[%s13] sm:$0xff] %vm262, %v1945
  %1951 = vrot.lane.b32.xlu0 %v1906, 96
  %v1952 = vpop.permute.xlu0 %1951
  %1954 = vst.msk [vmem:[%s14] sm:$0xff] %vm262, %v1952
  %1956 = vrot.lane.b32.xlu0 %v1930, 96
  %v1957 = vpop.permute.xlu0 %1956
  %1959 = vst.msk [vmem:[%s15] sm:$0xff] %vm262, %v1957
  // Predicated region
  $region42: #{encoder_forward.3} parent=0 // pred_check
    _
  $region43: #{encoder_forward.3} parent=0 // pred_check_branch
    %1961 = sbr.rel (0) target = $region45
  $region44: #{encoder_forward.3} parent=0 // pred_region
    _
  $region45: #{encoder_forward.3} parent=0 // pred_fallthru
    _
  // Predicated region
  $region46: #{encoder_forward.3} parent=0 // pred_check
    _
  $region47: #{encoder_forward.3} parent=0 // pred_check_branch
    %1963 = sbr.rel (0) target = $region49
  $region48: #{encoder_forward.3} parent=0 // pred_region
    _
  $region49: #{encoder_forward.3} parent=0 // pred_fallthru
    _
  // Predicated region
  $region50: #{encoder_forward.3} parent=0 // pred_check
    _
  $region51: #{encoder_forward.3} parent=0 // pred_check_branch
    %1965 = sbr.rel (0) target = $region53
  $region52: #{encoder_forward.3} parent=0 // pred_region
    _
  $region53: #{encoder_forward.3} parent=0 // pred_fallthru
    _
  // Predicated region
  $region54: #{encoder_forward.3} parent=0 // pred_check
    _
  $region55: #{encoder_forward.3} parent=0 // pred_check_branch
    %1967 = sbr.rel (0) target = $region57
  $region56: #{encoder_forward.3} parent=0 // pred_region
    _
  $region57: #{encoder_forward.3} parent=0 // pred_fallthru
    _
  // Predicated region
  $region58: #{encoder_forward.3} parent=0 // pred_check
    _
  $region59: #{encoder_forward.3} parent=0 // pred_check_branch
    %1969 = sbr.rel (0) target = $region61
  $region60: #{encoder_forward.3} parent=0 // pred_region
    _
  $region61: #{encoder_forward.3} parent=0 // pred_fallthru
    _
  // Predicated region
  $region62: #{encoder_forward.3} parent=0 // pred_check
    _
  $region63: #{encoder_forward.3} parent=0 // pred_check_branch
    %1971 = sbr.rel (0) target = $region65
  $region64: #{encoder_forward.3} parent=0 // pred_region
    _
  $region65: #{encoder_forward.3} parent=0 // pred_fallthru
    _
  // Predicated region
  $region66: #{encoder_forward.3} parent=0 // pred_check
    _
  $region67: #{encoder_forward.3} parent=0 // pred_check_branch
    %1973 = sbr.rel (0) target = $region69
  $region68: #{encoder_forward.3} parent=0 // pred_region
    _
  $region69: #{encoder_forward.3} parent=0 // pred_fallthru
    _
  // Predicated region
  $region70: #{encoder_forward.3} parent=0 // pred_check
    _
  $region71: #{encoder_forward.3} parent=0 // pred_check_branch
    %1975 = sbr.rel (0) target = $region73
  $region72: #{encoder_forward.3} parent=0 // pred_region
    _
  $region73: #{encoder_forward.3} parent=0 // pred_fallthru
    _
  // Predicated region
  $region74: #{encoder_forward.3} parent=0 // pred_check
    _
  $region75: #{encoder_forward.3} parent=0 // pred_check_branch
    %1977 = sbr.rel (0) target = $region77
  $region76: #{encoder_forward.3} parent=0 // pred_region
    _
  $region77: #{encoder_forward.3} parent=0 // pred_fallthru
    _
  // Predicated region
  $region78: #{encoder_forward.3} parent=0 // pred_check
    _
  $region79: #{encoder_forward.3} parent=0 // pred_check_branch
    %1979 = sbr.rel (0) target = $region81
  $region80: #{encoder_forward.3} parent=0 // pred_region
    _
  $region81: #{encoder_forward.3} parent=0 // pred_fallthru
    _
  // Predicated region
  $region82: #{encoder_forward.3} parent=0 // pred_check
    _
  $region83: #{encoder_forward.3} parent=0 // pred_check_branch
    %1981 = sbr.rel (0) target = $region85
  $region84: #{encoder_forward.3} parent=0 // pred_region
    _
  $region85: #{encoder_forward.3} parent=0 // pred_fallthru
    _
  // Predicated region
  $region86: #{encoder_forward.3} parent=0 // pred_check
    _
  $region87: #{encoder_forward.3} parent=0 // pred_check_branch
    %1983 = sbr.rel (0) target = $region89
  $region88: #{encoder_forward.3} parent=0 // pred_region
    _
  $region89: #{encoder_forward.3} parent=0 // pred_fallthru
    _

</llo_original>
